<compile_context>
chip_gen: v7x
topology: tpu7x:2x2x1
jax: 0.10.0
libtpu: 0.0.40
codegen_flags: <defaults>
</compile_context>

<pallas_src>
import jax
import jax.numpy as jnp
from jax.experimental import pallas as pl
from jax.experimental.pallas import tpu as pltpu

# Fixed architecture constants implied by the module defaults.
IN_CH = 1
HID = 8                      # hidden_channel
OC1 = HID * 8                # 64  conv1 output channels
OC2 = HID                    # 8   conv2 output channels
K = 4                        # kernel_size
KK = K * K                   # 16 taps
CAT = 10                     # categories
POOL_HW = 12                 # floor((28-4+1)/2)
N_POOL = POOL_HW * POOL_HW   # 144 pooled positions per image
CONV2_HW = 9                 # 12 - 4 + 1
Q_LEN = (CONV2_HW - 1) * POOL_HW + CONV2_HW   # 105 conv2 output rows kept

B_BLK = 16                   # images per grid step (per-generation tunable:
                             # 32-64 on v5e/v6e w/ vmem_limit raised, <=16-32
                             # on v7x's 64 MiB VMEM)
PATCH_DTYPE = jnp.float32    # bf16 halves the HBM patch stream (looser tol)


# ----------------------------- Pallas kernel ------------------------------

def _fused_cnn_kernel(p1_ref, w1_ref, b1_ref, w2_ref, b2_ref,
                      f1p_ref, bf1_ref, grp_ref, f2w_ref, bf2_ref, o_ref):
    f32 = jnp.float32
    nb = p1_ref.shape[0]                     # static batch-block size

    # ---- conv1: ONE big MXU dot + aligned pool-group maxes + bias + ReLU --
    # p1_ref: [nb, 4, 144, 16]; row = b*576 + group*144 + (pi*12 + pj).
    p1 = p1_ref[...].reshape(nb * 4 * N_POOL, KK)        # layout-preserving
    y = jnp.dot(p1, w1_ref[...], preferred_element_type=f32)   # [nb*576, 64]
    y4 = y.reshape(nb, 4, N_POOL, OC1)                   # split, 144 % 8 == 0
    ymax = jnp.maximum(jnp.maximum(y4[:, 0], y4[:, 1]),
                       jnp.maximum(y4[:, 2], y4[:, 3]))  # [nb, 144, 64]
    pooled = jnp.maximum(ymax + b1_ref[...], 0.0)        # bias/ReLU after max

    # ---- conv2: ONE dot over all 16 taps, then 8-lane shifted gathers ------
    # w2_ref: [64, 128] with lane = tap*8 + c2 -> tp holds every tap's
    # contribution at every pooled position; no [.,1024] im2col is built.
    tp = jnp.dot(pooled.reshape(nb * N_POOL, OC1), w2_ref[...],
                 preferred_element_type=f32)             # [nb*144, 128]
    tp3 = tp.reshape(nb, N_POOL, KK * OC2)               # [nb, 144, 128]
    # acc[b, q=pi*12+pj, c2] = sum_taps tp3[b, q + ki*12 + kj, tap*8 + c2].
    # Rows with (q mod 12) in {9,10,11} are don't-care and get zero fc1 weight.
    acc = tp3[:, 0:Q_LEN, 0:OC2]                         # tap (0,0)
    for kk in range(1, KK):
        d = (kk // K) * POOL_HW + (kk % K)
        acc = acc + tp3[:, d:d + Q_LEN, kk * OC2:(kk + 1) * OC2]
    out2 = jnp.maximum(acc + b2_ref[...], 0.0)           # [nb, 105, 8]

    # ---- flatten + fc1: packed elementwise contraction + M=nb group-sum dot.
    # f1p lane = h*8 + c2 (zeros on the 24 invalid window rows); the 8x lane
    # tile is a cheap intra-vreg broadcast of an 8-lane array.
    prod = jnp.tile(out2, (1, 1, HID)) * f1p_ref[...]    # [nb, 105, 64]
    s = jnp.sum(prod, axis=1)                            # [nb, 64]
    h1 = jnp.maximum(
        jnp.dot(s, grp_ref[...], preferred_element_type=f32) + bf1_ref[...],
        0.0)                                             # [nb, 8]

    # ---- fc2 (M = nb) ------------------------------------------------------
    o_ref[...] = (jnp.dot(h1, f2w_ref[...], preferred_element_type=f32)
                  + bf2_ref[...])                        # [nb, 10]


# ------------------------------- JAX glue ----------------------------------

def _conv1_pool_patches(x):
    """x: [B,1,28,28] -> [B, 4, 144, 16] conv1 im2col patches in pool-GROUP
    major order: group g = di*2 + dj, position = pi*12 + pj, tap = ki*4 + kj,
    value = x[b, 0, 2*pi+di+ki, 2*pj+dj+kj].  Only the 24x24 region consumed
    by the floor-mode maxpool is materialized."""
    B = x.shape[0]
    x2 = x[:, 0]                                            # [B, 28, 28]
    taps = [x2[:, ki:ki + 24, kj:kj + 24]
            for ki in range(K) for kj in range(K)]
    p = jnp.stack(taps, axis=-1)                            # [B, 24, 24, 16]
    p = p.reshape(B, POOL_HW, 2, POOL_HW, 2, KK)            # (pi,di,pj,dj,kk)
    p = p.transpose(0, 2, 4, 1, 3, 5)                       # (di,dj,pi,pj,kk)
    return p.reshape(B, 4, N_POOL, KK).astype(PATCH_DTYPE)


def pack_params(params):
    """One-time repack of torch-layout params into kernel-friendly layouts."""
    c1_w, c1_b, c2_w, c2_b, f1_w, f1_b, f2_w, f2_b = params
    w1 = c1_w.reshape(OC1, KK).T.astype(PATCH_DTYPE)                 # [16, 64]
    b1 = c1_b.reshape(1, OC1).astype(jnp.float32)
    # conv2 weight -> [64, 128]: row = in-channel c, lane = tap*8 + c2.
    w2 = (c2_w.transpose(1, 2, 3, 0).reshape(OC1, KK * OC2)).astype(jnp.float32)
    b2 = c2_b.reshape(1, OC2).astype(jnp.float32)
    # fc1 weight [648, 8] (in ordered c2*81 + i*9 + j) -> [105, 64] with
    # row q = i*12 + j (zeros at j in {9,10,11}) and lane = h*8 + c2.
    f1 = f1_w.reshape(OC2, CONV2_HW, CONV2_HW, HID)          # (c2, i, j, h)
    f1p = jnp.zeros((CONV2_HW, POOL_HW, HID, OC2), jnp.float32)
    f1p = f1p.at[:, :CONV2_HW].set(jnp.transpose(f1, (1, 2, 3, 0)))
    f1p = f1p.reshape(CONV2_HW * POOL_HW, HID * OC2)[:Q_LEN]  # [105, 64]
    bf1 = f1_b.reshape(1, HID).astype(jnp.float32)
    # Group-sum one-hot (precomputed host-side, per review): [64, 8].
    grp = jnp.repeat(jnp.eye(HID, dtype=jnp.float32), OC2, axis=0)
    f2w = f2_w.astype(jnp.float32)                                   # [8, 10]
    bf2 = f2_b.reshape(1, CAT).astype(jnp.float32)
    return (w1, b1, w2, b2, f1p, bf1, grp, f2w, bf2)


def substitute_cnn_forward(x, packed, b_blk=B_BLK):
    w1, b1, w2, b2, f1p, bf1, grp, f2w, bf2 = packed
    B = x.shape[0]
    blk = min(b_blk, B)
    B_pad = ((B + blk - 1) // blk) * blk
    if B_pad != B:
        x = jnp.pad(x, ((0, B_pad - B), (0, 0), (0, 0), (0, 0)))
    p1 = _conv1_pool_patches(x)                     # [B_pad, 4, 144, 16]
    nblk = B_pad // blk

    out = pl.pallas_call(
        _fused_cnn_kernel,
        out_shape=jax.ShapeDtypeStruct((B_pad, CAT), jnp.float32),
        grid=(nblk,),
        in_specs=[
            pl.BlockSpec((blk, 4, N_POOL, KK), lambda i: (i, 0, 0, 0)),
            pl.BlockSpec((KK, OC1), lambda i: (0, 0)),
            pl.BlockSpec((1, OC1), lambda i: (0, 0)),
            pl.BlockSpec((OC1, KK * OC2), lambda i: (0, 0)),
            pl.BlockSpec((1, OC2), lambda i: (0, 0)),
            pl.BlockSpec((Q_LEN, HID * OC2), lambda i: (0, 0)),
            pl.BlockSpec((1, HID), lambda i: (0, 0)),
            pl.BlockSpec((HID * OC2, HID), lambda i: (0, 0)),
            pl.BlockSpec((HID, CAT), lambda i: (0, 0)),
            pl.BlockSpec((1, CAT), lambda i: (0, 0)),
        ],
        out_specs=pl.BlockSpec((blk, CAT), lambda i: (i, 0)),
        compiler_params=pltpu.CompilerParams(
            dimension_semantics=("parallel",)),
    )(p1, w1, b1, w2, b2, f1p, bf1, grp, f2w, bf2)
    return out[:B]


def init_params(key, in_channel=IN_CH, hidden_channel=HID, kernel_size=K,
                categories=CAT):
    oc1 = hidden_channel * 8
    ks = jax.random.split(key, 8)
    c1_w = jax.random.normal(ks[0], (oc1, in_channel, kernel_size, kernel_size),
                             jnp.float32) * 0.1
    c1_b = jax.random.normal(ks[1], (oc1,), jnp.float32) * 0.1
    c2_w = jax.random.normal(ks[2], (hidden_channel, oc1, kernel_size,
                                     kernel_size), jnp.float32) * 0.02
    c2_b = jax.random.normal(ks[3], (hidden_channel,), jnp.float32) * 0.1
    f1_w = jax.random.normal(ks[4], (hidden_channel * 9 * 9, hidden_channel),
                             jnp.float32) * 0.05
    f1_b = jax.random.normal(ks[5], (hidden_channel,), jnp.float32) * 0.1
    f2_w = jax.random.normal(ks[6], (hidden_channel, categories),
                             jnp.float32) * 0.1
    f2_b = jax.random.normal(ks[7], (categories,), jnp.float32) * 0.1
    return (c1_w, c1_b, c2_w, c2_b, f1_w, f1_b, f2_w, f2_b)


def _reference_forward(x, params):
    """Pure-JAX reference mirroring the PyTorch module, for validation."""
    c1_w, c1_b, c2_w, c2_b, f1_w, f1_b, f2_w, f2_b = params
    dn = ("NCHW", "OIHW", "NCHW")
    y = jax.lax.conv_general_dilated(x, c1_w, (1, 1), "VALID",
                                     dimension_numbers=dn)
    y = jax.nn.relu(y + c1_b[None, :, None, None])
    y = jax.lax.reduce_window(y, -jnp.inf, jax.lax.max,
                              (1, 1, 2, 2), (1, 1, 2, 2), "VALID")
    y = jax.lax.conv_general_dilated(y, c2_w, (1, 1), "VALID",
                                     dimension_numbers=dn)
    y = jax.nn.relu(y + c2_b[None, :, None, None])
    feat = y.reshape(y.shape[0], -1)
    h = jax.nn.relu(feat @ f1_w + f1_b)
    return h @ f2_w + f2_b


if __name__ == "__main__":
    key = jax.random.PRNGKey(0)
    pkey, xkey = jax.random.split(key)
    params = init_params(pkey)
    packed = pack_params(params)        # one-time weight repack (outside jit)
    # Input spatial size 28x28 is required by the fc layer (8 * 9 * 9 = 648).
    x = jax.random.normal(xkey, (2, 1, 28, 28), jnp.float32)

    fwd = jax.jit(substitute_cnn_forward)
    out = jax.block_until_ready(fwd(x, packed))

    assert out.shape == (2, CAT), out.shape
    assert bool(jnp.all(jnp.isfinite(out)))

    ref = jax.block_until_ready(_reference_forward(x, params))
    assert bool(jnp.allclose(out, ref, rtol=1e-3, atol=1e-3)), (
        float(jnp.max(jnp.abs(out - ref))))

    print("KERNEL_OK")
</pallas_src>

<mosaic_0001>
module attributes {stable_mosaic.version = 11 : i64} {
  func.func @_fused_cnn_kernel(%arg0: i32, %arg1: memref<2x4x144x16xf32, #tpu.memory_space<vmem>>, %arg2: memref<16x64xf32, #tpu.memory_space<vmem>>, %arg3: memref<1x64xf32, #tpu.memory_space<vmem>>, %arg4: memref<64x128xf32, #tpu.memory_space<vmem>>, %arg5: memref<1x8xf32, #tpu.memory_space<vmem>>, %arg6: memref<105x64xf32, #tpu.memory_space<vmem>>, %arg7: memref<1x8xf32, #tpu.memory_space<vmem>>, %arg8: memref<64x8xf32, #tpu.memory_space<vmem>>, %arg9: memref<8x10xf32, #tpu.memory_space<vmem>>, %arg10: memref<1x10xf32, #tpu.memory_space<vmem>>, %arg11: memref<2x10xf32, #tpu.memory_space<vmem>>) attributes {dimension_semantics = [#tpu.dimension_semantics<parallel>], iteration_bounds = array<i64: 1>, scalar_prefetch = 0 : i64, scratch_operands = 0 : i64, tpu.core_type = #tpu.core_type<tc>, window_params = [{transform_indices = @transform_0, window_bounds = array<i64: 2, 4, 144, 16>}, {pipeline_mode = #tpu.pipeline_mode<synchronous>, transform_indices = @transform_1, window_bounds = array<i64: 16, 64>}, {pipeline_mode = #tpu.pipeline_mode<synchronous>, transform_indices = @transform_2, window_bounds = array<i64: 1, 64>}, {pipeline_mode = #tpu.pipeline_mode<synchronous>, transform_indices = @transform_3, window_bounds = array<i64: 64, 128>}, {pipeline_mode = #tpu.pipeline_mode<synchronous>, transform_indices = @transform_4, window_bounds = array<i64: 1, 8>}, {pipeline_mode = #tpu.pipeline_mode<synchronous>, transform_indices = @transform_5, window_bounds = array<i64: 105, 64>}, {pipeline_mode = #tpu.pipeline_mode<synchronous>, transform_indices = @transform_6, window_bounds = array<i64: 1, 8>}, {pipeline_mode = #tpu.pipeline_mode<synchronous>, transform_indices = @transform_7, window_bounds = array<i64: 64, 8>}, {pipeline_mode = #tpu.pipeline_mode<synchronous>, transform_indices = @transform_8, window_bounds = array<i64: 8, 10>}, {pipeline_mode = #tpu.pipeline_mode<synchronous>, transform_indices = @transform_9, window_bounds = array<i64: 1, 10>}, {transform_indices = @transform_10, window_bounds = array<i64: 2, 10>}]} {
    %c0 = arith.constant 0 : index
    %c0_0 = arith.constant 0 : index
    %c0_1 = arith.constant 0 : index
    %c0_2 = arith.constant 0 : index
    %0 = vector.load %arg1[%c0, %c0_0, %c0_1, %c0_2] : memref<2x4x144x16xf32, #tpu.memory_space<vmem>>, vector<2x4x144x16xf32>
    %1 = vector.shape_cast %0 : vector<2x4x144x16xf32> to vector<1152x16xf32>
    %c0_3 = arith.constant 0 : index
    %c0_4 = arith.constant 0 : index
    %2 = vector.load %arg2[%c0_3, %c0_4] : memref<16x64xf32, #tpu.memory_space<vmem>>, vector<16x64xf32>
    %cst = arith.constant dense<0.000000e+00> : vector<1152x64xf32>
    %3 = tpu.matmul %1, %2, %cst {dimension_numbers = #tpu.dot_dimension_numbers<[1], [0], [0], [1], [0, 0, 1, 1], [], []>} : vector<1152x16xf32>, vector<16x64xf32>, vector<1152x64xf32> -> vector<1152x64xf32>
    %4 = vector.shape_cast %3 : vector<1152x64xf32> to vector<2x4x144x64xf32>
    %5 = vector.extract_strided_slice %4 {offsets = [0, 0, 0, 0], sizes = [2, 1, 144, 64], strides = [1, 1, 1, 1]} : vector<2x4x144x64xf32> to vector<2x1x144x64xf32>
    %6 = vector.shape_cast %5 : vector<2x1x144x64xf32> to vector<2x144x64xf32>
    %7 = vector.extract_strided_slice %4 {offsets = [0, 1, 0, 0], sizes = [2, 1, 144, 64], strides = [1, 1, 1, 1]} : vector<2x4x144x64xf32> to vector<2x1x144x64xf32>
    %8 = vector.shape_cast %7 : vector<2x1x144x64xf32> to vector<2x144x64xf32>
    %9 = arith.maximumf %6, %8 : vector<2x144x64xf32>
    %10 = vector.extract_strided_slice %4 {offsets = [0, 2, 0, 0], sizes = [2, 1, 144, 64], strides = [1, 1, 1, 1]} : vector<2x4x144x64xf32> to vector<2x1x144x64xf32>
    %11 = vector.shape_cast %10 : vector<2x1x144x64xf32> to vector<2x144x64xf32>
    %12 = vector.extract_strided_slice %4 {offsets = [0, 3, 0, 0], sizes = [2, 1, 144, 64], strides = [1, 1, 1, 1]} : vector<2x4x144x64xf32> to vector<2x1x144x64xf32>
    %13 = vector.shape_cast %12 : vector<2x1x144x64xf32> to vector<2x144x64xf32>
    %14 = arith.maximumf %11, %13 : vector<2x144x64xf32>
    %15 = arith.maximumf %9, %14 : vector<2x144x64xf32>
    %c0_5 = arith.constant 0 : index
    %c0_6 = arith.constant 0 : index
    %16 = vector.load %arg3[%c0_5, %c0_6] : memref<1x64xf32, #tpu.memory_space<vmem>>, vector<1x64xf32>
    %17 = vector.shape_cast %16 : vector<1x64xf32> to vector<1x1x64xf32>
    %18 = vector.broadcast %17 : vector<1x1x64xf32> to vector<2x144x64xf32>
    %19 = arith.addf %15, %18 : vector<2x144x64xf32>
    %cst_7 = arith.constant 0.000000e+00 : f32
    %20 = vector.broadcast %cst_7 : f32 to vector<2x144x64xf32>
    %21 = arith.maximumf %19, %20 : vector<2x144x64xf32>
    %22 = vector.shape_cast %21 : vector<2x144x64xf32> to vector<288x64xf32>
    %c0_8 = arith.constant 0 : index
    %c0_9 = arith.constant 0 : index
    %23 = vector.load %arg4[%c0_8, %c0_9] : memref<64x128xf32, #tpu.memory_space<vmem>>, vector<64x128xf32>
    %cst_10 = arith.constant dense<0.000000e+00> : vector<288x128xf32>
    %24 = tpu.matmul %22, %23, %cst_10 {dimension_numbers = #tpu.dot_dimension_numbers<[1], [0], [0], [1], [0, 0, 1, 1], [], []>} : vector<288x64xf32>, vector<64x128xf32>, vector<288x128xf32> -> vector<288x128xf32>
    %25 = vector.shape_cast %24 : vector<288x128xf32> to vector<2x144x128xf32>
    %26 = vector.extract_strided_slice %25 {offsets = [0, 0, 0], sizes = [2, 105, 8], strides = [1, 1, 1]} : vector<2x144x128xf32> to vector<2x105x8xf32>
    %27 = vector.extract_strided_slice %25 {offsets = [0, 1, 8], sizes = [2, 105, 8], strides = [1, 1, 1]} : vector<2x144x128xf32> to vector<2x105x8xf32>
    %28 = arith.addf %26, %27 : vector<2x105x8xf32>
    %29 = vector.extract_strided_slice %25 {offsets = [0, 2, 16], sizes = [2, 105, 8], strides = [1, 1, 1]} : vector<2x144x128xf32> to vector<2x105x8xf32>
    %30 = arith.addf %28, %29 : vector<2x105x8xf32>
    %31 = vector.extract_strided_slice %25 {offsets = [0, 3, 24], sizes = [2, 105, 8], strides = [1, 1, 1]} : vector<2x144x128xf32> to vector<2x105x8xf32>
    %32 = arith.addf %30, %31 : vector<2x105x8xf32>
    %33 = vector.extract_strided_slice %25 {offsets = [0, 12, 32], sizes = [2, 105, 8], strides = [1, 1, 1]} : vector<2x144x128xf32> to vector<2x105x8xf32>
    %34 = arith.addf %32, %33 : vector<2x105x8xf32>
    %35 = vector.extract_strided_slice %25 {offsets = [0, 13, 40], sizes = [2, 105, 8], strides = [1, 1, 1]} : vector<2x144x128xf32> to vector<2x105x8xf32>
    %36 = arith.addf %34, %35 : vector<2x105x8xf32>
    %37 = vector.extract_strided_slice %25 {offsets = [0, 14, 48], sizes = [2, 105, 8], strides = [1, 1, 1]} : vector<2x144x128xf32> to vector<2x105x8xf32>
    %38 = arith.addf %36, %37 : vector<2x105x8xf32>
    %39 = vector.extract_strided_slice %25 {offsets = [0, 15, 56], sizes = [2, 105, 8], strides = [1, 1, 1]} : vector<2x144x128xf32> to vector<2x105x8xf32>
    %40 = arith.addf %38, %39 : vector<2x105x8xf32>
    %41 = vector.extract_strided_slice %25 {offsets = [0, 24, 64], sizes = [2, 105, 8], strides = [1, 1, 1]} : vector<2x144x128xf32> to vector<2x105x8xf32>
    %42 = arith.addf %40, %41 : vector<2x105x8xf32>
    %43 = vector.extract_strided_slice %25 {offsets = [0, 25, 72], sizes = [2, 105, 8], strides = [1, 1, 1]} : vector<2x144x128xf32> to vector<2x105x8xf32>
    %44 = arith.addf %42, %43 : vector<2x105x8xf32>
    %45 = vector.extract_strided_slice %25 {offsets = [0, 26, 80], sizes = [2, 105, 8], strides = [1, 1, 1]} : vector<2x144x128xf32> to vector<2x105x8xf32>
    %46 = arith.addf %44, %45 : vector<2x105x8xf32>
    %47 = vector.extract_strided_slice %25 {offsets = [0, 27, 88], sizes = [2, 105, 8], strides = [1, 1, 1]} : vector<2x144x128xf32> to vector<2x105x8xf32>
    %48 = arith.addf %46, %47 : vector<2x105x8xf32>
    %49 = vector.extract_strided_slice %25 {offsets = [0, 36, 96], sizes = [2, 105, 8], strides = [1, 1, 1]} : vector<2x144x128xf32> to vector<2x105x8xf32>
    %50 = arith.addf %48, %49 : vector<2x105x8xf32>
    %51 = vector.extract_strided_slice %25 {offsets = [0, 37, 104], sizes = [2, 105, 8], strides = [1, 1, 1]} : vector<2x144x128xf32> to vector<2x105x8xf32>
    %52 = arith.addf %50, %51 : vector<2x105x8xf32>
    %53 = vector.extract_strided_slice %25 {offsets = [0, 38, 112], sizes = [2, 105, 8], strides = [1, 1, 1]} : vector<2x144x128xf32> to vector<2x105x8xf32>
    %54 = arith.addf %52, %53 : vector<2x105x8xf32>
    %55 = vector.extract_strided_slice %25 {offsets = [0, 39, 120], sizes = [2, 105, 8], strides = [1, 1, 1]} : vector<2x144x128xf32> to vector<2x105x8xf32>
    %56 = arith.addf %54, %55 : vector<2x105x8xf32>
    %c0_11 = arith.constant 0 : index
    %c0_12 = arith.constant 0 : index
    %57 = vector.load %arg5[%c0_11, %c0_12] : memref<1x8xf32, #tpu.memory_space<vmem>>, vector<1x8xf32>
    %58 = vector.shape_cast %57 : vector<1x8xf32> to vector<1x1x8xf32>
    %59 = vector.broadcast %58 : vector<1x1x8xf32> to vector<2x105x8xf32>
    %60 = arith.addf %56, %59 : vector<2x105x8xf32>
    %cst_13 = arith.constant 0.000000e+00 : f32
    %61 = vector.broadcast %cst_13 : f32 to vector<2x105x8xf32>
    %62 = arith.maximumf %60, %61 : vector<2x105x8xf32>
    %63 = tpu.concatenate %62, %62, %62, %62, %62, %62, %62, %62 in 2 : vector<2x105x8xf32>, vector<2x105x8xf32>, vector<2x105x8xf32>, vector<2x105x8xf32>, vector<2x105x8xf32>, vector<2x105x8xf32>, vector<2x105x8xf32>, vector<2x105x8xf32> -> vector<2x105x64xf32>
    %c0_14 = arith.constant 0 : index
    %c0_15 = arith.constant 0 : index
    %64 = vector.load %arg6[%c0_14, %c0_15] : memref<105x64xf32, #tpu.memory_space<vmem>>, vector<105x64xf32>
    %65 = vector.shape_cast %64 : vector<105x64xf32> to vector<1x105x64xf32>
    %66 = vector.broadcast %65 : vector<1x105x64xf32> to vector<2x105x64xf32>
    %67 = arith.mulf %63, %66 : vector<2x105x64xf32>
    %cst_16 = arith.constant dense<0.000000e+00> : vector<2x64xf32>
    %68 = vector.multi_reduction <add>, %67, %cst_16 [1] : vector<2x105x64xf32> to vector<2x64xf32>
    %c0_17 = arith.constant 0 : index
    %c0_18 = arith.constant 0 : index
    %69 = vector.load %arg8[%c0_17, %c0_18] : memref<64x8xf32, #tpu.memory_space<vmem>>, vector<64x8xf32>
    %cst_19 = arith.constant dense<0.000000e+00> : vector<2x8xf32>
    %70 = tpu.matmul %68, %69, %cst_19 {dimension_numbers = #tpu.dot_dimension_numbers<[1], [0], [0], [1], [0, 0, 1, 1], [], []>} : vector<2x64xf32>, vector<64x8xf32>, vector<2x8xf32> -> vector<2x8xf32>
    %c0_20 = arith.constant 0 : index
    %c0_21 = arith.constant 0 : index
    %71 = vector.load %arg7[%c0_20, %c0_21] : memref<1x8xf32, #tpu.memory_space<vmem>>, vector<1x8xf32>
    %72 = vector.broadcast %71 : vector<1x8xf32> to vector<2x8xf32>
    %73 = arith.addf %70, %72 : vector<2x8xf32>
    %cst_22 = arith.constant 0.000000e+00 : f32
    %74 = vector.broadcast %cst_22 : f32 to vector<2x8xf32>
    %75 = arith.maximumf %73, %74 : vector<2x8xf32>
    %c0_23 = arith.constant 0 : index
    %c0_24 = arith.constant 0 : index
    %76 = vector.load %arg9[%c0_23, %c0_24] : memref<8x10xf32, #tpu.memory_space<vmem>>, vector<8x10xf32>
    %cst_25 = arith.constant dense<0.000000e+00> : vector<2x10xf32>
    %77 = tpu.matmul %75, %76, %cst_25 {dimension_numbers = #tpu.dot_dimension_numbers<[1], [0], [0], [1], [0, 0, 1, 1], [], []>} : vector<2x8xf32>, vector<8x10xf32>, vector<2x10xf32> -> vector<2x10xf32>
    %c0_26 = arith.constant 0 : index
    %c0_27 = arith.constant 0 : index
    %78 = vector.load %arg10[%c0_26, %c0_27] : memref<1x10xf32, #tpu.memory_space<vmem>>, vector<1x10xf32>
    %79 = vector.broadcast %78 : vector<1x10xf32> to vector<2x10xf32>
    %80 = arith.addf %77, %79 : vector<2x10xf32>
    %c0_28 = arith.constant 0 : index
    %c0_29 = arith.constant 0 : index
    %81 = vector.load %arg11[%c0_28, %c0_29] : memref<2x10xf32, #tpu.memory_space<vmem>>, vector<2x10xf32>
    tpu.vector_store %arg11[%c0_28, %c0_29], %80 {strides = array<i32>} : memref<2x10xf32, #tpu.memory_space<vmem>>, vector<2x10xf32>,
    return
  }
  func.func @transform_0(%arg0: i32) -> (i32, i32, i32, i32) {
    %c0_i32 = arith.constant 0 : i32
    %c0_i32_0 = arith.constant 0 : i32
    %c0_i32_1 = arith.constant 0 : i32
    %c0_i32_2 = arith.constant 0 : i32
    return %arg0, %c0_i32, %c0_i32_0, %c0_i32_1 : i32, i32, i32, i32
  }
  func.func @transform_1(%arg0: i32) -> (i32, i32) {
    %c0_i32 = arith.constant 0 : i32
    %c0_i32_0 = arith.constant 0 : i32
    %c0_i32_1 = arith.constant 0 : i32
    return %c0_i32, %c0_i32_0 : i32, i32
  }
  func.func @transform_2(%arg0: i32) -> (i32, i32) {
    %c0_i32 = arith.constant 0 : i32
    %c0_i32_0 = arith.constant 0 : i32
    %c0_i32_1 = arith.constant 0 : i32
    return %c0_i32, %c0_i32_0 : i32, i32
  }
  func.func @transform_3(%arg0: i32) -> (i32, i32) {
    %c0_i32 = arith.constant 0 : i32
    %c0_i32_0 = arith.constant 0 : i32
    %c0_i32_1 = arith.constant 0 : i32
    return %c0_i32, %c0_i32_0 : i32, i32
  }
  func.func @transform_4(%arg0: i32) -> (i32, i32) {
    %c0_i32 = arith.constant 0 : i32
    %c0_i32_0 = arith.constant 0 : i32
    %c0_i32_1 = arith.constant 0 : i32
    return %c0_i32, %c0_i32_0 : i32, i32
  }
  func.func @transform_5(%arg0: i32) -> (i32, i32) {
    %c0_i32 = arith.constant 0 : i32
    %c0_i32_0 = arith.constant 0 : i32
    %c0_i32_1 = arith.constant 0 : i32
    return %c0_i32, %c0_i32_0 : i32, i32
  }
  func.func @transform_6(%arg0: i32) -> (i32, i32) {
    %c0_i32 = arith.constant 0 : i32
    %c0_i32_0 = arith.constant 0 : i32
    %c0_i32_1 = arith.constant 0 : i32
    return %c0_i32, %c0_i32_0 : i32, i32
  }
  func.func @transform_7(%arg0: i32) -> (i32, i32) {
    %c0_i32 = arith.constant 0 : i32
    %c0_i32_0 = arith.constant 0 : i32
    %c0_i32_1 = arith.constant 0 : i32
    return %c0_i32, %c0_i32_0 : i32, i32
  }
  func.func @transform_8(%arg0: i32) -> (i32, i32) {
    %c0_i32 = arith.constant 0 : i32
    %c0_i32_0 = arith.constant 0 : i32
    %c0_i32_1 = arith.constant 0 : i32
    return %c0_i32, %c0_i32_0 : i32, i32
  }
  func.func @transform_9(%arg0: i32) -> (i32, i32) {
    %c0_i32 = arith.constant 0 : i32
    %c0_i32_0 = arith.constant 0 : i32
    %c0_i32_1 = arith.constant 0 : i32
    return %c0_i32, %c0_i32_0 : i32, i32
  }
  func.func @transform_10(%arg0: i32) -> (i32, i32) {
    %c0_i32 = arith.constant 0 : i32
    %c0_i32_0 = arith.constant 0 : i32
    return %arg0, %c0_i32 : i32, i32
  }
}

</mosaic_0001>

<llo_original>
// kernel: substitute_cnn_forward.1
$region0: #{substitute_cnn_forward.1}
  #allocation0 [shape = 'u32[]', space=smem, size = 0x4, offset = 0x4, fixed_abs, tag = 'smem constant byte address 0x4 - core index']
  #allocation1 [shape = 'u32[144,128]{1,0:T(1,128)}', space=vmem, size = 0x12000, scoped, tag = 'internal scratch']
  %s0 = inlined_call_operand.vmem [shape: f32[2,4,144,16], index: 0, kind: input, shape index: {}]
  %s1 = inlined_call_operand.vmem [shape: f32[16,64], index: 1, kind: input, shape index: {}]
  %s2 = inlined_call_operand.vmem [shape: f32[1,64], index: 2, kind: input, shape index: {}]
  %s3 = inlined_call_operand.vmem [shape: f32[64,128], index: 3, kind: input, shape index: {}]
  %s4 = inlined_call_operand.vmem [shape: f32[1,8], index: 4, kind: input, shape index: {}]
  %s5 = inlined_call_operand.vmem [shape: f32[105,64], index: 5, kind: input, shape index: {}]
  %s6 = inlined_call_operand.vmem [shape: f32[1,8], index: 6, kind: input, shape index: {}]
  %s7 = inlined_call_operand.vmem [shape: f32[64,8], index: 7, kind: input, shape index: {}]
  %s8 = inlined_call_operand.vmem [shape: f32[8,10], index: 8, kind: input, shape index: {}]
  %s9 = inlined_call_operand.vmem [shape: f32[1,10], index: 9, kind: input, shape index: {}]
  %s10 = inlined_call_operand.hbm [shape: f32[2,10], index: 10, kind: output, shape index: {}]
  %s11 = sld [smem:[#allocation0]]
  $region50: #{substitute_cnn_forward.1} parent=0
    _
  %s13 = ssub.s32 1, %s11
  %s14 = scalar_select 0, %s13, %s11
  $region1: #{substitute_cnn_forward.1} parent=0
    #allocation2 [shape = 'u8[1024]{0}', space=vmem, size = 0x400, scoped, tag = 'output window, operand 0, single buffered']
    #allocation3 [shape = 's32[1]{0}', space=sflag, size = 0x4, scoped, tag = 'scoped memory for substitute_cnn_forward.1']
    %15 = vsyncpa [#allocation3], 0
    // Predicated region
    $region2: #{substitute_cnn_forward.1} parent=1 // pred_check
      _
    $region3: #{substitute_cnn_forward.1} parent=1 // pred_check_branch
      %17 = sbr.rel (0) target = $region5
    $region4: #{substitute_cnn_forward.1} parent=1 // pred_region
      _
    $region5: #{substitute_cnn_forward.1} parent=1 // pred_fallthru
      _
    // Predicated region
    $region6: #{substitute_cnn_forward.1} parent=1 // pred_check
      _
    $region7: #{substitute_cnn_forward.1} parent=1 // pred_check_branch
      %19 = sbr.rel (0) target = $region9
    $region8: #{substitute_cnn_forward.1} parent=1 // pred_region
      _
    $region9: #{substitute_cnn_forward.1} parent=1 // pred_fallthru
      _
    // Predicated region
    $region10: #{substitute_cnn_forward.1} parent=1 // pred_check
      _
    $region11: #{substitute_cnn_forward.1} parent=1 // pred_check_branch
      %21 = sbr.rel (0) target = $region13
    $region12: #{substitute_cnn_forward.1} parent=1 // pred_region
      _
    $region13: #{substitute_cnn_forward.1} parent=1 // pred_fallthru
      _
    // Predicated region
    $region14: #{substitute_cnn_forward.1} parent=1 // pred_check
      _
    $region15: #{substitute_cnn_forward.1} parent=1 // pred_check_branch
      %23 = sbr.rel (0) target = $region17
    $region16: #{substitute_cnn_forward.1} parent=1 // pred_region
      _
    $region17: #{substitute_cnn_forward.1} parent=1 // pred_fallthru
      _
    // Predicated region
    $region18: #{substitute_cnn_forward.1} parent=1 // pred_check
      _
    $region19: #{substitute_cnn_forward.1} parent=1 // pred_check_branch
      %25 = sbr.rel (0) target = $region21
    $region20: #{substitute_cnn_forward.1} parent=1 // pred_region
      _
    $region21: #{substitute_cnn_forward.1} parent=1 // pred_fallthru
      _
    // Predicated region
    $region22: #{substitute_cnn_forward.1} parent=1 // pred_check
      _
    $region23: #{substitute_cnn_forward.1} parent=1 // pred_check_branch
      %27 = sbr.rel (0) target = $region25
    $region24: #{substitute_cnn_forward.1} parent=1 // pred_region
      _
    $region25: #{substitute_cnn_forward.1} parent=1 // pred_fallthru
      _
    // Predicated region
    $region26: #{substitute_cnn_forward.1} parent=1 // pred_check
      _
    $region27: #{substitute_cnn_forward.1} parent=1 // pred_check_branch
      %29 = sbr.rel (0) target = $region29
    $region28: #{substitute_cnn_forward.1} parent=1 // pred_region
      _
    $region29: #{substitute_cnn_forward.1} parent=1 // pred_fallthru
      _
    // Predicated region
    $region30: #{substitute_cnn_forward.1} parent=1 // pred_check
      _
    $region31: #{substitute_cnn_forward.1} parent=1 // pred_check_branch
      %31 = sbr.rel (0) target = $region33
    $region32: #{substitute_cnn_forward.1} parent=1 // pred_region
      _
    $region33: #{substitute_cnn_forward.1} parent=1 // pred_fallthru
      _
    // Predicated region
    $region34: #{substitute_cnn_forward.1} parent=1 // pred_check
      _
    $region35: #{substitute_cnn_forward.1} parent=1 // pred_check_branch
      %33 = sbr.rel (0) target = $region37
    $region36: #{substitute_cnn_forward.1} parent=1 // pred_region
      _
    $region37: #{substitute_cnn_forward.1} parent=1 // pred_fallthru
      _
    // Predicated region
    $region38: #{substitute_cnn_forward.1} parent=1 // pred_check
      _
    $region39: #{substitute_cnn_forward.1} parent=1 // pred_check_branch
      %35 = sbr.rel (0) target = $region41
    $region40: #{substitute_cnn_forward.1} parent=1 // pred_region
      _
    $region41: #{substitute_cnn_forward.1} parent=1 // pred_fallthru
      _
    %v36 = vld [vmem:[%s0] sm:$0xff]
    %v37 = vld [vmem:[%s0 + $0x8] sm:$0xff]
    %v38 = vld [vmem:[%s0 + $0x10] sm:$0xff]
    %v39 = vld [vmem:[%s0 + $0x18] sm:$0xff]
    %v40 = vld [vmem:[%s0 + $0x20] sm:$0xff]
    %v41 = vld [vmem:[%s0 + $0x28] sm:$0xff]
    %v42 = vld [vmem:[%s0 + $0x30] sm:$0xff]
    %v43 = vld [vmem:[%s0 + $0x38] sm:$0xff]
    %v44 = vld [vmem:[%s0 + $0x40] sm:$0xff]
    %v45 = vld [vmem:[%s0 + $0x48] sm:$0xff]
    %v46 = vld [vmem:[%s0 + $0x50] sm:$0xff]
    %v47 = vld [vmem:[%s0 + $0x58] sm:$0xff]
    %v48 = vld [vmem:[%s0 + $0x60] sm:$0xff]
    %v49 = vld [vmem:[%s0 + $0x68] sm:$0xff]
    %v50 = vld [vmem:[%s0 + $0x70] sm:$0xff]
    %v51 = vld [vmem:[%s0 + $0x78] sm:$0xff]
    %v52 = vld [vmem:[%s0 + $0x80] sm:$0xff]
    %v53 = vld [vmem:[%s0 + $0x88] sm:$0xff]
    %v54 = vld [vmem:[%s0 + $0x90] sm:$0xff]
    %v55 = vld [vmem:[%s0 + $0x98] sm:$0xff]
    %v56 = vld [vmem:[%s0 + $0xa0] sm:$0xff]
    %v57 = vld [vmem:[%s0 + $0xa8] sm:$0xff]
    %v58 = vld [vmem:[%s0 + $0xb0] sm:$0xff]
    %v59 = vld [vmem:[%s0 + $0xb8] sm:$0xff]
    %v60 = vld [vmem:[%s0 + $0xc0] sm:$0xff]
    %v61 = vld [vmem:[%s0 + $0xc8] sm:$0xff]
    %v62 = vld [vmem:[%s0 + $0xd0] sm:$0xff]
    %v63 = vld [vmem:[%s0 + $0xd8] sm:$0xff]
    %v64 = vld [vmem:[%s0 + $0xe0] sm:$0xff]
    %v65 = vld [vmem:[%s0 + $0xe8] sm:$0xff]
    %v66 = vld [vmem:[%s0 + $0xf0] sm:$0xff]
    %v67 = vld [vmem:[%s0 + $0xf8] sm:$0xff]
    %v68 = vld [vmem:[%s0 + $0x100] sm:$0xff]
    %v69 = vld [vmem:[%s0 + $0x108] sm:$0xff]
    %v70 = vld [vmem:[%s0 + $0x110] sm:$0xff]
    %v71 = vld [vmem:[%s0 + $0x118] sm:$0xff]
    %v72 = vld [vmem:[%s0 + $0x120] sm:$0xff]
    %v73 = vld [vmem:[%s0 + $0x128] sm:$0xff]
    %v74 = vld [vmem:[%s0 + $0x130] sm:$0xff]
    %v75 = vld [vmem:[%s0 + $0x138] sm:$0xff]
    %v76 = vld [vmem:[%s0 + $0x140] sm:$0xff]
    %v77 = vld [vmem:[%s0 + $0x148] sm:$0xff]
    %v78 = vld [vmem:[%s0 + $0x150] sm:$0xff]
    %v79 = vld [vmem:[%s0 + $0x158] sm:$0xff]
    %v80 = vld [vmem:[%s0 + $0x160] sm:$0xff]
    %v81 = vld [vmem:[%s0 + $0x168] sm:$0xff]
    %v82 = vld [vmem:[%s0 + $0x170] sm:$0xff]
    %v83 = vld [vmem:[%s0 + $0x178] sm:$0xff]
    %v84 = vld [vmem:[%s0 + $0x180] sm:$0xff]
    %v85 = vld [vmem:[%s0 + $0x188] sm:$0xff]
    %v86 = vld [vmem:[%s0 + $0x190] sm:$0xff]
    %v87 = vld [vmem:[%s0 + $0x198] sm:$0xff]
    %v88 = vld [vmem:[%s0 + $0x1a0] sm:$0xff]
    %v89 = vld [vmem:[%s0 + $0x1a8] sm:$0xff]
    %v90 = vld [vmem:[%s0 + $0x1b0] sm:$0xff]
    %v91 = vld [vmem:[%s0 + $0x1b8] sm:$0xff]
    %v92 = vld [vmem:[%s0 + $0x1c0] sm:$0xff]
    %v93 = vld [vmem:[%s0 + $0x1c8] sm:$0xff]
    %v94 = vld [vmem:[%s0 + $0x1d0] sm:$0xff]
    %v95 = vld [vmem:[%s0 + $0x1d8] sm:$0xff]
    %v96 = vld [vmem:[%s0 + $0x1e0] sm:$0xff]
    %v97 = vld [vmem:[%s0 + $0x1e8] sm:$0xff]
    %v98 = vld [vmem:[%s0 + $0x1f0] sm:$0xff]
    %v99 = vld [vmem:[%s0 + $0x1f8] sm:$0xff]
    %v100 = vld [vmem:[%s0 + $0x200] sm:$0xff]
    %v101 = vld [vmem:[%s0 + $0x208] sm:$0xff]
    %v102 = vld [vmem:[%s0 + $0x210] sm:$0xff]
    %v103 = vld [vmem:[%s0 + $0x218] sm:$0xff]
    %v104 = vld [vmem:[%s0 + $0x220] sm:$0xff]
    %v105 = vld [vmem:[%s0 + $0x228] sm:$0xff]
    %v106 = vld [vmem:[%s0 + $0x230] sm:$0xff]
    %v107 = vld [vmem:[%s0 + $0x238] sm:$0xff]
    %v108 = vld [vmem:[%s0 + $0x240] sm:$0xff]
    %v109 = vld [vmem:[%s0 + $0x248] sm:$0xff]
    %v110 = vld [vmem:[%s0 + $0x250] sm:$0xff]
    %v111 = vld [vmem:[%s0 + $0x258] sm:$0xff]
    %v112 = vld [vmem:[%s0 + $0x260] sm:$0xff]
    %v113 = vld [vmem:[%s0 + $0x268] sm:$0xff]
    %v114 = vld [vmem:[%s0 + $0x270] sm:$0xff]
    %v115 = vld [vmem:[%s0 + $0x278] sm:$0xff]
    %v116 = vld [vmem:[%s0 + $0x280] sm:$0xff]
    %v117 = vld [vmem:[%s0 + $0x288] sm:$0xff]
    %v118 = vld [vmem:[%s0 + $0x290] sm:$0xff]
    %v119 = vld [vmem:[%s0 + $0x298] sm:$0xff]
    %v120 = vld [vmem:[%s0 + $0x2a0] sm:$0xff]
    %v121 = vld [vmem:[%s0 + $0x2a8] sm:$0xff]
    %v122 = vld [vmem:[%s0 + $0x2b0] sm:$0xff]
    %v123 = vld [vmem:[%s0 + $0x2b8] sm:$0xff]
    %v124 = vld [vmem:[%s0 + $0x2c0] sm:$0xff]
    %v125 = vld [vmem:[%s0 + $0x2c8] sm:$0xff]
    %v126 = vld [vmem:[%s0 + $0x2d0] sm:$0xff]
    %v127 = vld [vmem:[%s0 + $0x2d8] sm:$0xff]
    %v128 = vld [vmem:[%s0 + $0x2e0] sm:$0xff]
    %v129 = vld [vmem:[%s0 + $0x2e8] sm:$0xff]
    %v130 = vld [vmem:[%s0 + $0x2f0] sm:$0xff]
    %v131 = vld [vmem:[%s0 + $0x2f8] sm:$0xff]
    %v132 = vld [vmem:[%s0 + $0x300] sm:$0xff]
    %v133 = vld [vmem:[%s0 + $0x308] sm:$0xff]
    %v134 = vld [vmem:[%s0 + $0x310] sm:$0xff]
    %v135 = vld [vmem:[%s0 + $0x318] sm:$0xff]
    %v136 = vld [vmem:[%s0 + $0x320] sm:$0xff]
    %v137 = vld [vmem:[%s0 + $0x328] sm:$0xff]
    %v138 = vld [vmem:[%s0 + $0x330] sm:$0xff]
    %v139 = vld [vmem:[%s0 + $0x338] sm:$0xff]
    %v140 = vld [vmem:[%s0 + $0x340] sm:$0xff]
    %v141 = vld [vmem:[%s0 + $0x348] sm:$0xff]
    %v142 = vld [vmem:[%s0 + $0x350] sm:$0xff]
    %v143 = vld [vmem:[%s0 + $0x358] sm:$0xff]
    %v144 = vld [vmem:[%s0 + $0x360] sm:$0xff]
    %v145 = vld [vmem:[%s0 + $0x368] sm:$0xff]
    %v146 = vld [vmem:[%s0 + $0x370] sm:$0xff]
    %v147 = vld [vmem:[%s0 + $0x378] sm:$0xff]
    %v148 = vld [vmem:[%s0 + $0x380] sm:$0xff]
    %v149 = vld [vmem:[%s0 + $0x388] sm:$0xff]
    %v150 = vld [vmem:[%s0 + $0x390] sm:$0xff]
    %v151 = vld [vmem:[%s0 + $0x398] sm:$0xff]
    %v152 = vld [vmem:[%s0 + $0x3a0] sm:$0xff]
    %v153 = vld [vmem:[%s0 + $0x3a8] sm:$0xff]
    %v154 = vld [vmem:[%s0 + $0x3b0] sm:$0xff]
    %v155 = vld [vmem:[%s0 + $0x3b8] sm:$0xff]
    %v156 = vld [vmem:[%s0 + $0x3c0] sm:$0xff]
    %v157 = vld [vmem:[%s0 + $0x3c8] sm:$0xff]
    %v158 = vld [vmem:[%s0 + $0x3d0] sm:$0xff]
    %v159 = vld [vmem:[%s0 + $0x3d8] sm:$0xff]
    %v160 = vld [vmem:[%s0 + $0x3e0] sm:$0xff]
    %v161 = vld [vmem:[%s0 + $0x3e8] sm:$0xff]
    %v162 = vld [vmem:[%s0 + $0x3f0] sm:$0xff]
    %v163 = vld [vmem:[%s0 + $0x3f8] sm:$0xff]
    %v164 = vld [vmem:[%s0 + $0x400] sm:$0xff]
    %v165 = vld [vmem:[%s0 + $0x408] sm:$0xff]
    %v166 = vld [vmem:[%s0 + $0x410] sm:$0xff]
    %v167 = vld [vmem:[%s0 + $0x418] sm:$0xff]
    %v168 = vld [vmem:[%s0 + $0x420] sm:$0xff]
    %v169 = vld [vmem:[%s0 + $0x428] sm:$0xff]
    %v170 = vld [vmem:[%s0 + $0x430] sm:$0xff]
    %v171 = vld [vmem:[%s0 + $0x438] sm:$0xff]
    %v172 = vld [vmem:[%s0 + $0x440] sm:$0xff]
    %v173 = vld [vmem:[%s0 + $0x448] sm:$0xff]
    %v174 = vld [vmem:[%s0 + $0x450] sm:$0xff]
    %v175 = vld [vmem:[%s0 + $0x458] sm:$0xff]
    %v176 = vld [vmem:[%s0 + $0x460] sm:$0xff]
    %v177 = vld [vmem:[%s0 + $0x468] sm:$0xff]
    %v178 = vld [vmem:[%s0 + $0x470] sm:$0xff]
    %v179 = vld [vmem:[%s0 + $0x478] sm:$0xff]
    %v180 = vld [vmem:[%s1] sm:$0xff]
    %v181 = vld [vmem:[%s1 + $0x8] sm:$0xff]
    %vm182 = vcmask 130048
    %v184 = vsel %vm182, %v36, 0
    %v187 = vsel %vm182, %v37, 0
    %v190 = vsel %vm182, %v38, 0
    %v193 = vsel %vm182, %v39, 0
    %v196 = vsel %vm182, %v40, 0
    %v199 = vsel %vm182, %v41, 0
    %v202 = vsel %vm182, %v42, 0
    %v205 = vsel %vm182, %v43, 0
    %v208 = vsel %vm182, %v44, 0
    %v211 = vsel %vm182, %v45, 0
    %v214 = vsel %vm182, %v46, 0
    %v217 = vsel %vm182, %v47, 0
    %v220 = vsel %vm182, %v48, 0
    %v223 = vsel %vm182, %v49, 0
    %v226 = vsel %vm182, %v50, 0
    %v229 = vsel %vm182, %v51, 0
    %v232 = vsel %vm182, %v52, 0
    %v235 = vsel %vm182, %v53, 0
    %v238 = vsel %vm182, %v54, 0
    %v241 = vsel %vm182, %v55, 0
    %v244 = vsel %vm182, %v56, 0
    %v247 = vsel %vm182, %v57, 0
    %v250 = vsel %vm182, %v58, 0
    %v253 = vsel %vm182, %v59, 0
    %v256 = vsel %vm182, %v60, 0
    %v259 = vsel %vm182, %v61, 0
    %v262 = vsel %vm182, %v62, 0
    %v265 = vsel %vm182, %v63, 0
    %v268 = vsel %vm182, %v64, 0
    %v271 = vsel %vm182, %v65, 0
    %v274 = vsel %vm182, %v66, 0
    %v277 = vsel %vm182, %v67, 0
    %v280 = vsel %vm182, %v68, 0
    %v283 = vsel %vm182, %v69, 0
    %v286 = vsel %vm182, %v70, 0
    %v289 = vsel %vm182, %v71, 0
    %v292 = vsel %vm182, %v72, 0
    %v295 = vsel %vm182, %v73, 0
    %v298 = vsel %vm182, %v74, 0
    %v301 = vsel %vm182, %v75, 0
    %v304 = vsel %vm182, %v76, 0
    %v307 = vsel %vm182, %v77, 0
    %v310 = vsel %vm182, %v78, 0
    %v313 = vsel %vm182, %v79, 0
    %v316 = vsel %vm182, %v80, 0
    %v319 = vsel %vm182, %v81, 0
    %v322 = vsel %vm182, %v82, 0
    %v325 = vsel %vm182, %v83, 0
    %v328 = vsel %vm182, %v84, 0
    %v331 = vsel %vm182, %v85, 0
    %v334 = vsel %vm182, %v86, 0
    %v337 = vsel %vm182, %v87, 0
    %v340 = vsel %vm182, %v88, 0
    %v343 = vsel %vm182, %v89, 0
    %v346 = vsel %vm182, %v90, 0
    %v349 = vsel %vm182, %v91, 0
    %v352 = vsel %vm182, %v92, 0
    %v355 = vsel %vm182, %v93, 0
    %v358 = vsel %vm182, %v94, 0
    %v361 = vsel %vm182, %v95, 0
    %v364 = vsel %vm182, %v96, 0
    %v367 = vsel %vm182, %v97, 0
    %v370 = vsel %vm182, %v98, 0
    %v373 = vsel %vm182, %v99, 0
    %v376 = vsel %vm182, %v100, 0
    %v379 = vsel %vm182, %v101, 0
    %v382 = vsel %vm182, %v102, 0
    %v385 = vsel %vm182, %v103, 0
    %v388 = vsel %vm182, %v104, 0
    %v391 = vsel %vm182, %v105, 0
    %v394 = vsel %vm182, %v106, 0
    %v397 = vsel %vm182, %v107, 0
    %v400 = vsel %vm182, %v108, 0
    %v403 = vsel %vm182, %v109, 0
    %v406 = vsel %vm182, %v110, 0
    %v409 = vsel %vm182, %v111, 0
    %v412 = vsel %vm182, %v112, 0
    %v415 = vsel %vm182, %v113, 0
    %v418 = vsel %vm182, %v114, 0
    %v421 = vsel %vm182, %v115, 0
    %v424 = vsel %vm182, %v116, 0
    %v427 = vsel %vm182, %v117, 0
    %v430 = vsel %vm182, %v118, 0
    %v433 = vsel %vm182, %v119, 0
    %v436 = vsel %vm182, %v120, 0
    %v439 = vsel %vm182, %v121, 0
    %v442 = vsel %vm182, %v122, 0
    %v445 = vsel %vm182, %v123, 0
    %v448 = vsel %vm182, %v124, 0
    %v451 = vsel %vm182, %v125, 0
    %v454 = vsel %vm182, %v126, 0
    %v457 = vsel %vm182, %v127, 0
    %v460 = vsel %vm182, %v128, 0
    %v463 = vsel %vm182, %v129, 0
    %v466 = vsel %vm182, %v130, 0
    %v469 = vsel %vm182, %v131, 0
    %v472 = vsel %vm182, %v132, 0
    %v475 = vsel %vm182, %v133, 0
    %v478 = vsel %vm182, %v134, 0
    %v481 = vsel %vm182, %v135, 0
    %v484 = vsel %vm182, %v136, 0
    %v487 = vsel %vm182, %v137, 0
    %v490 = vsel %vm182, %v138, 0
    %v493 = vsel %vm182, %v139, 0
    %v496 = vsel %vm182, %v140, 0
    %v499 = vsel %vm182, %v141, 0
    %v502 = vsel %vm182, %v142, 0
    %v505 = vsel %vm182, %v143, 0
    %v508 = vsel %vm182, %v144, 0
    %v511 = vsel %vm182, %v145, 0
    %v514 = vsel %vm182, %v146, 0
    %v517 = vsel %vm182, %v147, 0
    %v520 = vsel %vm182, %v148, 0
    %v523 = vsel %vm182, %v149, 0
    %v526 = vsel %vm182, %v150, 0
    %v529 = vsel %vm182, %v151, 0
    %v532 = vsel %vm182, %v152, 0
    %v535 = vsel %vm182, %v153, 0
    %v538 = vsel %vm182, %v154, 0
    %v541 = vsel %vm182, %v155, 0
    %v544 = vsel %vm182, %v156, 0
    %v547 = vsel %vm182, %v157, 0
    %v550 = vsel %vm182, %v158, 0
    %v553 = vsel %vm182, %v159, 0
    %v556 = vsel %vm182, %v160, 0
    %v559 = vsel %vm182, %v161, 0
    %v562 = vsel %vm182, %v162, 0
    %v565 = vsel %vm182, %v163, 0
    %v568 = vsel %vm182, %v164, 0
    %v571 = vsel %vm182, %v165, 0
    %v574 = vsel %vm182, %v166, 0
    %v577 = vsel %vm182, %v167, 0
    %v580 = vsel %vm182, %v168, 0
    %v583 = vsel %vm182, %v169, 0
    %v586 = vsel %vm182, %v170, 0
    %v589 = vsel %vm182, %v171, 0
    %v592 = vsel %vm182, %v172, 0
    %v595 = vsel %vm182, %v173, 0
    %v598 = vsel %vm182, %v174, 0
    %v601 = vsel %vm182, %v175, 0
    %v604 = vsel %vm182, %v176, 0
    %v607 = vsel %vm182, %v177, 0
    %v610 = vsel %vm182, %v178, 0
    %v613 = vsel %vm182, %v179, 0
    %615 = vmatprep.subr.mxu0 0.0
    %616 = vmatpush1.msra.mxu0 %v180
    %617 = vmatprep.subr.mxu0 0.0
    %618 = vmatpush1.msra.mxu0 %v181
    %619 = vmatprep.subr.mxu0 0.0
    %620 = vmatpush1.msra.mxu0 0.0
    %621 = vmatprep.subr.mxu0 0.0
    %622 = vmatpush1.msra.mxu0 0.0
    %623 = vmatprep.subr.mxu0 0.0
    %624 = vmatpush1.msra.mxu0 0.0
    %625 = vmatprep.subr.mxu0 0.0
    %626 = vmatpush1.msra.mxu0 0.0
    %627 = vmatprep.subr.mxu0 0.0
    %628 = vmatpush1.msra.mxu0 0.0
    %629 = vmatprep.subr.mxu0 0.0
    %630 = vmatpush1.msra.mxu0 0.0
    %631 = vmatprep.subr.mxu0 0.0
    %632 = vmatpush1.msra.mxu0 0.0
    %633 = vmatprep.subr.mxu0 0.0
    %634 = vmatpush1.msra.mxu0 0.0
    %635 = vmatprep.subr.mxu0 0.0
    %636 = vmatpush1.msra.mxu0 0.0
    %637 = vmatprep.subr.mxu0 0.0
    %638 = vmatpush1.msra.mxu0 0.0
    %639 = vmatprep.subr.mxu0 0.0
    %640 = vmatpush1.msra.mxu0 0.0
    %641 = vmatprep.subr.mxu0 0.0
    %642 = vmatpush1.msra.mxu0 0.0
    %643 = vmatprep.subr.mxu0 0.0
    %644 = vmatpush1.msra.mxu0 0.0
    %645 = vmatprep.subr.mxu0 0.0
    %646 = vmatpush1.msra.mxu0 0.0
    %647 = vmatprep.subr.mxu0 0.0
    %648 = vmatpush1.msra.mxu0 0.0
    %649 = vmatprep.subr.mxu0 0.0
    %650 = vmatpush1.msra.mxu0 0.0
    %651 = vmatprep.subr.mxu0 0.0
    %652 = vmatpush1.msra.mxu0 0.0
    %653 = vmatprep.subr.mxu0 0.0
    %654 = vmatpush1.msra.mxu0 0.0
    %655 = vmatprep.subr.mxu0 0.0
    %656 = vmatpush1.msra.mxu0 0.0
    %657 = vmatprep.subr.mxu0 0.0
    %658 = vmatpush1.msra.mxu0 0.0
    %659 = vmatprep.subr.mxu0 0.0
    %660 = vmatpush1.msra.mxu0 0.0
    %661 = vmatprep.subr.mxu0 0.0
    %662 = vmatpush1.msra.mxu0 0.0
    %663 = vmatprep.subr.mxu0 0.0
    %664 = vmatpush1.msra.mxu0 0.0
    %665 = vmatprep.subr.mxu0 0.0
    %666 = vmatpush1.msra.mxu0 0.0
    %667 = vmatprep.subr.mxu0 0.0
    %668 = vmatpush1.msra.mxu0 0.0
    %669 = vmatprep.subr.mxu0 0.0
    %670 = vmatpush1.msra.mxu0 0.0
    %671 = vmatprep.subr.mxu0 0.0
    %672 = vmatpush1.msra.mxu0 0.0
    %673 = vmatprep.subr.mxu0 0.0
    %674 = vmatpush1.msra.mxu0 0.0
    %675 = vmatprep.subr.mxu0 0.0
    %676 = vmatpush1.msra.mxu0 0.0
    %677 = vmatprep.subr.mxu0 0.0
    %678 = vmatpush1.msra.mxu0 0.0
    %679 = vmatprep.mubr.f32.mxu0 0.0
    %680 = vmatmul.mubr.f32.gmra.mrb[0].mxu0 %v184
    %v681 = vpop.f32.mrb[0].mxu0
    %v682 = vadd.f32 0.0, %v681
    %v683 = vpop.f32.mrb[0].mxu0
    %684 = vmatprep.mubr.f32.mxu0 0.0
    %685 = vmatmul.mubr.f32.gmra.mrb[0].mxu0 %v187
    %v686 = vpop.f32.mrb[0].mxu0
    %v687 = vadd.f32 0.0, %v686
    %v688 = vpop.f32.mrb[0].mxu0
    %689 = vmatprep.mubr.f32.mxu0 0.0
    %690 = vmatmul.mubr.f32.gmra.mrb[0].mxu0 %v190
    %v691 = vpop.f32.mrb[0].mxu0
    %v692 = vadd.f32 0.0, %v691
    %v693 = vpop.f32.mrb[0].mxu0
    %694 = vmatprep.mubr.f32.mxu0 0.0
    %695 = vmatmul.mubr.f32.gmra.mrb[0].mxu0 %v193
    %v696 = vpop.f32.mrb[0].mxu0
    %v697 = vadd.f32 0.0, %v696
    %v698 = vpop.f32.mrb[0].mxu0
    %699 = vmatprep.mubr.f32.mxu0 0.0
    %700 = vmatmul.mubr.f32.gmra.mrb[0].mxu0 %v196
    %v701 = vpop.f32.mrb[0].mxu0
    %v702 = vadd.f32 0.0, %v701
    %v703 = vpop.f32.mrb[0].mxu0
    %704 = vmatprep.mubr.f32.mxu0 0.0
    %705 = vmatmul.mubr.f32.gmra.mrb[0].mxu0 %v199
    %v706 = vpop.f32.mrb[0].mxu0
    %v707 = vadd.f32 0.0, %v706
    %v708 = vpop.f32.mrb[0].mxu0
    %709 = vmatprep.mubr.f32.mxu0 0.0
    %710 = vmatmul.mubr.f32.gmra.mrb[0].mxu0 %v202
    %v711 = vpop.f32.mrb[0].mxu0
    %v712 = vadd.f32 0.0, %v711
    %v713 = vpop.f32.mrb[0].mxu0
    %714 = vmatprep.mubr.f32.mxu0 0.0
    %715 = vmatmul.mubr.f32.gmra.mrb[0].mxu0 %v205
    %v716 = vpop.f32.mrb[0].mxu0
    %v717 = vadd.f32 0.0, %v716
    %v718 = vpop.f32.mrb[0].mxu0
    %719 = vmatprep.mubr.f32.mxu0 0.0
    %720 = vmatmul.mubr.f32.gmra.mrb[0].mxu0 %v208
    %v721 = vpop.f32.mrb[0].mxu0
    %v722 = vadd.f32 0.0, %v721
    %v723 = vpop.f32.mrb[0].mxu0
    %724 = vmatprep.mubr.f32.mxu0 0.0
    %725 = vmatmul.mubr.f32.gmra.mrb[0].mxu0 %v211
    %v726 = vpop.f32.mrb[0].mxu0
    %v727 = vadd.f32 0.0, %v726
    %v728 = vpop.f32.mrb[0].mxu0
    %729 = vmatprep.mubr.f32.mxu0 0.0
    %730 = vmatmul.mubr.f32.gmra.mrb[0].mxu0 %v214
    %v731 = vpop.f32.mrb[0].mxu0
    %v732 = vadd.f32 0.0, %v731
    %v733 = vpop.f32.mrb[0].mxu0
    %734 = vmatprep.mubr.f32.mxu0 0.0
    %735 = vmatmul.mubr.f32.gmra.mrb[0].mxu0 %v217
    %v736 = vpop.f32.mrb[0].mxu0
    %v737 = vadd.f32 0.0, %v736
    %v738 = vpop.f32.mrb[0].mxu0
    %739 = vmatprep.mubr.f32.mxu0 0.0
    %740 = vmatmul.mubr.f32.gmra.mrb[0].mxu0 %v220
    %v741 = vpop.f32.mrb[0].mxu0
    %v742 = vadd.f32 0.0, %v741
    %v743 = vpop.f32.mrb[0].mxu0
    %744 = vmatprep.mubr.f32.mxu0 0.0
    %745 = vmatmul.mubr.f32.gmra.mrb[0].mxu0 %v223
    %v746 = vpop.f32.mrb[0].mxu0
    %v747 = vadd.f32 0.0, %v746
    %v748 = vpop.f32.mrb[0].mxu0
    %749 = vmatprep.mubr.f32.mxu0 0.0
    %750 = vmatmul.mubr.f32.gmra.mrb[0].mxu0 %v226
    %v751 = vpop.f32.mrb[0].mxu0
    %v752 = vadd.f32 0.0, %v751
    %v753 = vpop.f32.mrb[0].mxu0
    %754 = vmatprep.mubr.f32.mxu0 0.0
    %755 = vmatmul.mubr.f32.gmra.mrb[0].mxu0 %v229
    %v756 = vpop.f32.mrb[0].mxu0
    %v757 = vadd.f32 0.0, %v756
    %v758 = vpop.f32.mrb[0].mxu0
    %759 = vmatprep.mubr.f32.mxu0 0.0
    %760 = vmatmul.mubr.f32.gmra.mrb[0].mxu0 %v232
    %v761 = vpop.f32.mrb[0].mxu0
    %v762 = vadd.f32 0.0, %v761
    %v763 = vpop.f32.mrb[0].mxu0
    %764 = vmatprep.mubr.f32.mxu0 0.0
    %765 = vmatmul.mubr.f32.gmra.mrb[0].mxu0 %v235
    %v766 = vpop.f32.mrb[0].mxu0
    %v767 = vadd.f32 0.0, %v766
    %v768 = vpop.f32.mrb[0].mxu0
    %769 = vmatprep.mubr.f32.mxu0 0.0
    %770 = vmatmul.mubr.f32.gmra.mrb[0].mxu0 %v238
    %v771 = vpop.f32.mrb[0].mxu0
    %v772 = vadd.f32 0.0, %v771
    %v773 = vpop.f32.mrb[0].mxu0
    %774 = vmatprep.mubr.f32.mxu0 0.0
    %775 = vmatmul.mubr.f32.gmra.mrb[0].mxu0 %v241
    %v776 = vpop.f32.mrb[0].mxu0
    %v777 = vadd.f32 0.0, %v776
    %v778 = vpop.f32.mrb[0].mxu0
    %779 = vmatprep.mubr.f32.mxu0 0.0
    %780 = vmatmul.mubr.f32.gmra.mrb[0].mxu0 %v244
    %v781 = vpop.f32.mrb[0].mxu0
    %v782 = vadd.f32 0.0, %v781
    %v783 = vpop.f32.mrb[0].mxu0
    %784 = vmatprep.mubr.f32.mxu0 0.0
    %785 = vmatmul.mubr.f32.gmra.mrb[0].mxu0 %v247
    %v786 = vpop.f32.mrb[0].mxu0
    %v787 = vadd.f32 0.0, %v786
    %v788 = vpop.f32.mrb[0].mxu0
    %789 = vmatprep.mubr.f32.mxu0 0.0
    %790 = vmatmul.mubr.f32.gmra.mrb[0].mxu0 %v250
    %v791 = vpop.f32.mrb[0].mxu0
    %v792 = vadd.f32 0.0, %v791
    %v793 = vpop.f32.mrb[0].mxu0
    %794 = vmatprep.mubr.f32.mxu0 0.0
    %795 = vmatmul.mubr.f32.gmra.mrb[0].mxu0 %v253
    %v796 = vpop.f32.mrb[0].mxu0
    %v797 = vadd.f32 0.0, %v796
    %v798 = vpop.f32.mrb[0].mxu0
    %799 = vmatprep.mubr.f32.mxu0 0.0
    %800 = vmatmul.mubr.f32.gmra.mrb[0].mxu0 %v256
    %v801 = vpop.f32.mrb[0].mxu0
    %v802 = vadd.f32 0.0, %v801
    %v803 = vpop.f32.mrb[0].mxu0
    %804 = vmatprep.mubr.f32.mxu0 0.0
    %805 = vmatmul.mubr.f32.gmra.mrb[0].mxu0 %v259
    %v806 = vpop.f32.mrb[0].mxu0
    %v807 = vadd.f32 0.0, %v806
    %v808 = vpop.f32.mrb[0].mxu0
    %809 = vmatprep.mubr.f32.mxu0 0.0
    %810 = vmatmul.mubr.f32.gmra.mrb[0].mxu0 %v262
    %v811 = vpop.f32.mrb[0].mxu0
    %v812 = vadd.f32 0.0, %v811
    %v813 = vpop.f32.mrb[0].mxu0
    %814 = vmatprep.mubr.f32.mxu0 0.0
    %815 = vmatmul.mubr.f32.gmra.mrb[0].mxu0 %v265
    %v816 = vpop.f32.mrb[0].mxu0
    %v817 = vadd.f32 0.0, %v816
    %v818 = vpop.f32.mrb[0].mxu0
    %819 = vmatprep.mubr.f32.mxu0 0.0
    %820 = vmatmul.mubr.f32.gmra.mrb[0].mxu0 %v268
    %v821 = vpop.f32.mrb[0].mxu0
    %v822 = vadd.f32 0.0, %v821
    %v823 = vpop.f32.mrb[0].mxu0
    %824 = vmatprep.mubr.f32.mxu0 0.0
    %825 = vmatmul.mubr.f32.gmra.mrb[0].mxu0 %v271
    %v826 = vpop.f32.mrb[0].mxu0
    %v827 = vadd.f32 0.0, %v826
    %v828 = vpop.f32.mrb[0].mxu0
    %829 = vmatprep.mubr.f32.mxu0 0.0
    %830 = vmatmul.mubr.f32.gmra.mrb[0].mxu0 %v274
    %v831 = vpop.f32.mrb[0].mxu0
    %v832 = vadd.f32 0.0, %v831
    %v833 = vpop.f32.mrb[0].mxu0
    %834 = vmatprep.mubr.f32.mxu0 0.0
    %835 = vmatmul.mubr.f32.gmra.mrb[0].mxu0 %v277
    %v836 = vpop.f32.mrb[0].mxu0
    %v837 = vadd.f32 0.0, %v836
    %v838 = vpop.f32.mrb[0].mxu0
    %839 = vmatprep.mubr.f32.mxu0 0.0
    %840 = vmatmul.mubr.f32.gmra.mrb[0].mxu0 %v280
    %v841 = vpop.f32.mrb[0].mxu0
    %v842 = vadd.f32 0.0, %v841
    %v843 = vpop.f32.mrb[0].mxu0
    %844 = vmatprep.mubr.f32.mxu0 0.0
    %845 = vmatmul.mubr.f32.gmra.mrb[0].mxu0 %v283
    %v846 = vpop.f32.mrb[0].mxu0
    %v847 = vadd.f32 0.0, %v846
    %v848 = vpop.f32.mrb[0].mxu0
    %849 = vmatprep.mubr.f32.mxu0 0.0
    %850 = vmatmul.mubr.f32.gmra.mrb[0].mxu0 %v286
    %v851 = vpop.f32.mrb[0].mxu0
    %v852 = vadd.f32 0.0, %v851
    %v853 = vpop.f32.mrb[0].mxu0
    %854 = vmatprep.mubr.f32.mxu0 0.0
    %855 = vmatmul.mubr.f32.gmra.mrb[0].mxu0 %v289
    %v856 = vpop.f32.mrb[0].mxu0
    %v857 = vadd.f32 0.0, %v856
    %v858 = vpop.f32.mrb[0].mxu0
    %859 = vmatprep.mubr.f32.mxu0 0.0
    %860 = vmatmul.mubr.f32.gmra.mrb[0].mxu0 %v292
    %v861 = vpop.f32.mrb[0].mxu0
    %v862 = vadd.f32 0.0, %v861
    %v863 = vpop.f32.mrb[0].mxu0
    %864 = vmatprep.mubr.f32.mxu0 0.0
    %865 = vmatmul.mubr.f32.gmra.mrb[0].mxu0 %v295
    %v866 = vpop.f32.mrb[0].mxu0
    %v867 = vadd.f32 0.0, %v866
    %v868 = vpop.f32.mrb[0].mxu0
    %869 = vmatprep.mubr.f32.mxu0 0.0
    %870 = vmatmul.mubr.f32.gmra.mrb[0].mxu0 %v298
    %v871 = vpop.f32.mrb[0].mxu0
    %v872 = vadd.f32 0.0, %v871
    %v873 = vpop.f32.mrb[0].mxu0
    %874 = vmatprep.mubr.f32.mxu0 0.0
    %875 = vmatmul.mubr.f32.gmra.mrb[0].mxu0 %v301
    %v876 = vpop.f32.mrb[0].mxu0
    %v877 = vadd.f32 0.0, %v876
    %v878 = vpop.f32.mrb[0].mxu0
    %879 = vmatprep.mubr.f32.mxu0 0.0
    %880 = vmatmul.mubr.f32.gmra.mrb[0].mxu0 %v304
    %v881 = vpop.f32.mrb[0].mxu0
    %v882 = vadd.f32 0.0, %v881
    %v883 = vpop.f32.mrb[0].mxu0
    %884 = vmatprep.mubr.f32.mxu0 0.0
    %885 = vmatmul.mubr.f32.gmra.mrb[0].mxu0 %v307
    %v886 = vpop.f32.mrb[0].mxu0
    %v887 = vadd.f32 0.0, %v886
    %v888 = vpop.f32.mrb[0].mxu0
    %889 = vmatprep.mubr.f32.mxu0 0.0
    %890 = vmatmul.mubr.f32.gmra.mrb[0].mxu0 %v310
    %v891 = vpop.f32.mrb[0].mxu0
    %v892 = vadd.f32 0.0, %v891
    %v893 = vpop.f32.mrb[0].mxu0
    %894 = vmatprep.mubr.f32.mxu0 0.0
    %895 = vmatmul.mubr.f32.gmra.mrb[0].mxu0 %v313
    %v896 = vpop.f32.mrb[0].mxu0
    %v897 = vadd.f32 0.0, %v896
    %v898 = vpop.f32.mrb[0].mxu0
    %899 = vmatprep.mubr.f32.mxu0 0.0
    %900 = vmatmul.mubr.f32.gmra.mrb[0].mxu0 %v316
    %v901 = vpop.f32.mrb[0].mxu0
    %v902 = vadd.f32 0.0, %v901
    %v903 = vpop.f32.mrb[0].mxu0
    %904 = vmatprep.mubr.f32.mxu0 0.0
    %905 = vmatmul.mubr.f32.gmra.mrb[0].mxu0 %v319
    %v906 = vpop.f32.mrb[0].mxu0
    %v907 = vadd.f32 0.0, %v906
    %v908 = vpop.f32.mrb[0].mxu0
    %909 = vmatprep.mubr.f32.mxu0 0.0
    %910 = vmatmul.mubr.f32.gmra.mrb[0].mxu0 %v322
    %v911 = vpop.f32.mrb[0].mxu0
    %v912 = vadd.f32 0.0, %v911
    %v913 = vpop.f32.mrb[0].mxu0
    %914 = vmatprep.mubr.f32.mxu0 0.0
    %915 = vmatmul.mubr.f32.gmra.mrb[0].mxu0 %v325
    %v916 = vpop.f32.mrb[0].mxu0
    %v917 = vadd.f32 0.0, %v916
    %v918 = vpop.f32.mrb[0].mxu0
    %919 = vmatprep.mubr.f32.mxu0 0.0
    %920 = vmatmul.mubr.f32.gmra.mrb[0].mxu0 %v328
    %v921 = vpop.f32.mrb[0].mxu0
    %v922 = vadd.f32 0.0, %v921
    %v923 = vpop.f32.mrb[0].mxu0
    %924 = vmatprep.mubr.f32.mxu0 0.0
    %925 = vmatmul.mubr.f32.gmra.mrb[0].mxu0 %v331
    %v926 = vpop.f32.mrb[0].mxu0
    %v927 = vadd.f32 0.0, %v926
    %v928 = vpop.f32.mrb[0].mxu0
    %929 = vmatprep.mubr.f32.mxu0 0.0
    %930 = vmatmul.mubr.f32.gmra.mrb[0].mxu0 %v334
    %v931 = vpop.f32.mrb[0].mxu0
    %v932 = vadd.f32 0.0, %v931
    %v933 = vpop.f32.mrb[0].mxu0
    %934 = vmatprep.mubr.f32.mxu0 0.0
    %935 = vmatmul.mubr.f32.gmra.mrb[0].mxu0 %v337
    %v936 = vpop.f32.mrb[0].mxu0
    %v937 = vadd.f32 0.0, %v936
    %v938 = vpop.f32.mrb[0].mxu0
    %939 = vmatprep.mubr.f32.mxu0 0.0
    %940 = vmatmul.mubr.f32.gmra.mrb[0].mxu0 %v340
    %v941 = vpop.f32.mrb[0].mxu0
    %v942 = vadd.f32 0.0, %v941
    %v943 = vpop.f32.mrb[0].mxu0
    %944 = vmatprep.mubr.f32.mxu0 0.0
    %945 = vmatmul.mubr.f32.gmra.mrb[0].mxu0 %v343
    %v946 = vpop.f32.mrb[0].mxu0
    %v947 = vadd.f32 0.0, %v946
    %v948 = vpop.f32.mrb[0].mxu0
    %949 = vmatprep.mubr.f32.mxu0 0.0
    %950 = vmatmul.mubr.f32.gmra.mrb[0].mxu0 %v346
    %v951 = vpop.f32.mrb[0].mxu0
    %v952 = vadd.f32 0.0, %v951
    %v953 = vpop.f32.mrb[0].mxu0
    %954 = vmatprep.mubr.f32.mxu0 0.0
    %955 = vmatmul.mubr.f32.gmra.mrb[0].mxu0 %v349
    %v956 = vpop.f32.mrb[0].mxu0
    %v957 = vadd.f32 0.0, %v956
    %v958 = vpop.f32.mrb[0].mxu0
    %959 = vmatprep.mubr.f32.mxu0 0.0
    %960 = vmatmul.mubr.f32.gmra.mrb[0].mxu0 %v352
    %v961 = vpop.f32.mrb[0].mxu0
    %v962 = vadd.f32 0.0, %v961
    %v963 = vpop.f32.mrb[0].mxu0
    %964 = vmatprep.mubr.f32.mxu0 0.0
    %965 = vmatmul.mubr.f32.gmra.mrb[0].mxu0 %v355
    %v966 = vpop.f32.mrb[0].mxu0
    %v967 = vadd.f32 0.0, %v966
    %v968 = vpop.f32.mrb[0].mxu0
    %969 = vmatprep.mubr.f32.mxu0 0.0
    %970 = vmatmul.mubr.f32.gmra.mrb[0].mxu0 %v358
    %v971 = vpop.f32.mrb[0].mxu0
    %v972 = vadd.f32 0.0, %v971
    %v973 = vpop.f32.mrb[0].mxu0
    %974 = vmatprep.mubr.f32.mxu0 0.0
    %975 = vmatmul.mubr.f32.gmra.mrb[0].mxu0 %v361
    %v976 = vpop.f32.mrb[0].mxu0
    %v977 = vadd.f32 0.0, %v976
    %v978 = vpop.f32.mrb[0].mxu0
    %979 = vmatprep.mubr.f32.mxu0 0.0
    %980 = vmatmul.mubr.f32.gmra.mrb[0].mxu0 %v364
    %v981 = vpop.f32.mrb[0].mxu0
    %v982 = vadd.f32 0.0, %v981
    %v983 = vpop.f32.mrb[0].mxu0
    %984 = vmatprep.mubr.f32.mxu0 0.0
    %985 = vmatmul.mubr.f32.gmra.mrb[0].mxu0 %v367
    %v986 = vpop.f32.mrb[0].mxu0
    %v987 = vadd.f32 0.0, %v986
    %v988 = vpop.f32.mrb[0].mxu0
    %989 = vmatprep.mubr.f32.mxu0 0.0
    %990 = vmatmul.mubr.f32.gmra.mrb[0].mxu0 %v370
    %v991 = vpop.f32.mrb[0].mxu0
    %v992 = vadd.f32 0.0, %v991
    %v993 = vpop.f32.mrb[0].mxu0
    %994 = vmatprep.mubr.f32.mxu0 0.0
    %995 = vmatmul.mubr.f32.gmra.mrb[0].mxu0 %v373
    %v996 = vpop.f32.mrb[0].mxu0
    %v997 = vadd.f32 0.0, %v996
    %v998 = vpop.f32.mrb[0].mxu0
    %999 = vmatprep.mubr.f32.mxu0 0.0
    %1000 = vmatmul.mubr.f32.gmra.mrb[0].mxu0 %v376
    %v1001 = vpop.f32.mrb[0].mxu0
    %v1002 = vadd.f32 0.0, %v1001
    %v1003 = vpop.f32.mrb[0].mxu0
    %1004 = vmatprep.mubr.f32.mxu0 0.0
    %1005 = vmatmul.mubr.f32.gmra.mrb[0].mxu0 %v379
    %v1006 = vpop.f32.mrb[0].mxu0
    %v1007 = vadd.f32 0.0, %v1006
    %v1008 = vpop.f32.mrb[0].mxu0
    %1009 = vmatprep.mubr.f32.mxu0 0.0
    %1010 = vmatmul.mubr.f32.gmra.mrb[0].mxu0 %v382
    %v1011 = vpop.f32.mrb[0].mxu0
    %v1012 = vadd.f32 0.0, %v1011
    %v1013 = vpop.f32.mrb[0].mxu0
    %1014 = vmatprep.mubr.f32.mxu0 0.0
    %1015 = vmatmul.mubr.f32.gmra.mrb[0].mxu0 %v385
    %v1016 = vpop.f32.mrb[0].mxu0
    %v1017 = vadd.f32 0.0, %v1016
    %v1018 = vpop.f32.mrb[0].mxu0
    %1019 = vmatprep.mubr.f32.mxu0 0.0
    %1020 = vmatmul.mubr.f32.gmra.mrb[0].mxu0 %v388
    %v1021 = vpop.f32.mrb[0].mxu0
    %v1022 = vadd.f32 0.0, %v1021
    %v1023 = vpop.f32.mrb[0].mxu0
    %1024 = vmatprep.mubr.f32.mxu0 0.0
    %1025 = vmatmul.mubr.f32.gmra.mrb[0].mxu0 %v391
    %v1026 = vpop.f32.mrb[0].mxu0
    %v1027 = vadd.f32 0.0, %v1026
    %v1028 = vpop.f32.mrb[0].mxu0
    %1029 = vmatprep.mubr.f32.mxu0 0.0
    %1030 = vmatmul.mubr.f32.gmra.mrb[0].mxu0 %v394
    %v1031 = vpop.f32.mrb[0].mxu0
    %v1032 = vadd.f32 0.0, %v1031
    %v1033 = vpop.f32.mrb[0].mxu0
    %1034 = vmatprep.mubr.f32.mxu0 0.0
    %1035 = vmatmul.mubr.f32.gmra.mrb[0].mxu0 %v397
    %v1036 = vpop.f32.mrb[0].mxu0
    %v1037 = vadd.f32 0.0, %v1036
    %v1038 = vpop.f32.mrb[0].mxu0
    %1039 = vmatprep.mubr.f32.mxu0 0.0
    %1040 = vmatmul.mubr.f32.gmra.mrb[0].mxu0 %v400
    %v1041 = vpop.f32.mrb[0].mxu0
    %v1042 = vadd.f32 0.0, %v1041
    %v1043 = vpop.f32.mrb[0].mxu0
    %1044 = vmatprep.mubr.f32.mxu0 0.0
    %1045 = vmatmul.mubr.f32.gmra.mrb[0].mxu0 %v403
    %v1046 = vpop.f32.mrb[0].mxu0
    %v1047 = vadd.f32 0.0, %v1046
    %v1048 = vpop.f32.mrb[0].mxu0
    %1049 = vmatprep.mubr.f32.mxu0 0.0
    %1050 = vmatmul.mubr.f32.gmra.mrb[0].mxu0 %v406
    %v1051 = vpop.f32.mrb[0].mxu0
    %v1052 = vadd.f32 0.0, %v1051
    %v1053 = vpop.f32.mrb[0].mxu0
    %1054 = vmatprep.mubr.f32.mxu0 0.0
    %1055 = vmatmul.mubr.f32.gmra.mrb[0].mxu0 %v409
    %v1056 = vpop.f32.mrb[0].mxu0
    %v1057 = vadd.f32 0.0, %v1056
    %v1058 = vpop.f32.mrb[0].mxu0
    %1059 = vmatprep.mubr.f32.mxu0 0.0
    %1060 = vmatmul.mubr.f32.gmra.mrb[0].mxu0 %v412
    %v1061 = vpop.f32.mrb[0].mxu0
    %v1062 = vadd.f32 0.0, %v1061
    %v1063 = vpop.f32.mrb[0].mxu0
    %1064 = vmatprep.mubr.f32.mxu0 0.0
    %1065 = vmatmul.mubr.f32.gmra.mrb[0].mxu0 %v415
    %v1066 = vpop.f32.mrb[0].mxu0
    %v1067 = vadd.f32 0.0, %v1066
    %v1068 = vpop.f32.mrb[0].mxu0
    %1069 = vmatprep.mubr.f32.mxu0 0.0
    %1070 = vmatmul.mubr.f32.gmra.mrb[0].mxu0 %v418
    %v1071 = vpop.f32.mrb[0].mxu0
    %v1072 = vadd.f32 0.0, %v1071
    %v1073 = vpop.f32.mrb[0].mxu0
    %1074 = vmatprep.mubr.f32.mxu0 0.0
    %1075 = vmatmul.mubr.f32.gmra.mrb[0].mxu0 %v421
    %v1076 = vpop.f32.mrb[0].mxu0
    %v1077 = vadd.f32 0.0, %v1076
    %v1078 = vpop.f32.mrb[0].mxu0
    %1079 = vmatprep.mubr.f32.mxu0 0.0
    %1080 = vmatmul.mubr.f32.gmra.mrb[0].mxu0 %v424
    %v1081 = vpop.f32.mrb[0].mxu0
    %v1082 = vadd.f32 0.0, %v1081
    %v1083 = vpop.f32.mrb[0].mxu0
    %1084 = vmatprep.mubr.f32.mxu0 0.0
    %1085 = vmatmul.mubr.f32.gmra.mrb[0].mxu0 %v427
    %v1086 = vpop.f32.mrb[0].mxu0
    %v1087 = vadd.f32 0.0, %v1086
    %v1088 = vpop.f32.mrb[0].mxu0
    %1089 = vmatprep.mubr.f32.mxu0 0.0
    %1090 = vmatmul.mubr.f32.gmra.mrb[0].mxu0 %v430
    %v1091 = vpop.f32.mrb[0].mxu0
    %v1092 = vadd.f32 0.0, %v1091
    %v1093 = vpop.f32.mrb[0].mxu0
    %1094 = vmatprep.mubr.f32.mxu0 0.0
    %1095 = vmatmul.mubr.f32.gmra.mrb[0].mxu0 %v433
    %v1096 = vpop.f32.mrb[0].mxu0
    %v1097 = vadd.f32 0.0, %v1096
    %v1098 = vpop.f32.mrb[0].mxu0
    %1099 = vmatprep.mubr.f32.mxu0 0.0
    %1100 = vmatmul.mubr.f32.gmra.mrb[0].mxu0 %v436
    %v1101 = vpop.f32.mrb[0].mxu0
    %v1102 = vadd.f32 0.0, %v1101
    %v1103 = vpop.f32.mrb[0].mxu0
    %1104 = vmatprep.mubr.f32.mxu0 0.0
    %1105 = vmatmul.mubr.f32.gmra.mrb[0].mxu0 %v439
    %v1106 = vpop.f32.mrb[0].mxu0
    %v1107 = vadd.f32 0.0, %v1106
    %v1108 = vpop.f32.mrb[0].mxu0
    %1109 = vmatprep.mubr.f32.mxu0 0.0
    %1110 = vmatmul.mubr.f32.gmra.mrb[0].mxu0 %v442
    %v1111 = vpop.f32.mrb[0].mxu0
    %v1112 = vadd.f32 0.0, %v1111
    %v1113 = vpop.f32.mrb[0].mxu0
    %1114 = vmatprep.mubr.f32.mxu0 0.0
    %1115 = vmatmul.mubr.f32.gmra.mrb[0].mxu0 %v445
    %v1116 = vpop.f32.mrb[0].mxu0
    %v1117 = vadd.f32 0.0, %v1116
    %v1118 = vpop.f32.mrb[0].mxu0
    %1119 = vmatprep.mubr.f32.mxu0 0.0
    %1120 = vmatmul.mubr.f32.gmra.mrb[0].mxu0 %v448
    %v1121 = vpop.f32.mrb[0].mxu0
    %v1122 = vadd.f32 0.0, %v1121
    %v1123 = vpop.f32.mrb[0].mxu0
    %1124 = vmatprep.mubr.f32.mxu0 0.0
    %1125 = vmatmul.mubr.f32.gmra.mrb[0].mxu0 %v451
    %v1126 = vpop.f32.mrb[0].mxu0
    %v1127 = vadd.f32 0.0, %v1126
    %v1128 = vpop.f32.mrb[0].mxu0
    %1129 = vmatprep.mubr.f32.mxu0 0.0
    %1130 = vmatmul.mubr.f32.gmra.mrb[0].mxu0 %v454
    %v1131 = vpop.f32.mrb[0].mxu0
    %v1132 = vadd.f32 0.0, %v1131
    %v1133 = vpop.f32.mrb[0].mxu0
    %1134 = vmatprep.mubr.f32.mxu0 0.0
    %1135 = vmatmul.mubr.f32.gmra.mrb[0].mxu0 %v457
    %v1136 = vpop.f32.mrb[0].mxu0
    %v1137 = vadd.f32 0.0, %v1136
    %v1138 = vpop.f32.mrb[0].mxu0
    %1139 = vmatprep.mubr.f32.mxu0 0.0
    %1140 = vmatmul.mubr.f32.gmra.mrb[0].mxu0 %v460
    %v1141 = vpop.f32.mrb[0].mxu0
    %v1142 = vadd.f32 0.0, %v1141
    %v1143 = vpop.f32.mrb[0].mxu0
    %1144 = vmatprep.mubr.f32.mxu0 0.0
    %1145 = vmatmul.mubr.f32.gmra.mrb[0].mxu0 %v463
    %v1146 = vpop.f32.mrb[0].mxu0
    %v1147 = vadd.f32 0.0, %v1146
    %v1148 = vpop.f32.mrb[0].mxu0
    %1149 = vmatprep.mubr.f32.mxu0 0.0
    %1150 = vmatmul.mubr.f32.gmra.mrb[0].mxu0 %v466
    %v1151 = vpop.f32.mrb[0].mxu0
    %v1152 = vadd.f32 0.0, %v1151
    %v1153 = vpop.f32.mrb[0].mxu0
    %1154 = vmatprep.mubr.f32.mxu0 0.0
    %1155 = vmatmul.mubr.f32.gmra.mrb[0].mxu0 %v469
    %v1156 = vpop.f32.mrb[0].mxu0
    %v1157 = vadd.f32 0.0, %v1156
    %v1158 = vpop.f32.mrb[0].mxu0
    %1159 = vmatprep.mubr.f32.mxu0 0.0
    %1160 = vmatmul.mubr.f32.gmra.mrb[0].mxu0 %v472
    %v1161 = vpop.f32.mrb[0].mxu0
    %v1162 = vadd.f32 0.0, %v1161
    %v1163 = vpop.f32.mrb[0].mxu0
    %1164 = vmatprep.mubr.f32.mxu0 0.0
    %1165 = vmatmul.mubr.f32.gmra.mrb[0].mxu0 %v475
    %v1166 = vpop.f32.mrb[0].mxu0
    %v1167 = vadd.f32 0.0, %v1166
    %v1168 = vpop.f32.mrb[0].mxu0
    %1169 = vmatprep.mubr.f32.mxu0 0.0
    %1170 = vmatmul.mubr.f32.gmra.mrb[0].mxu0 %v478
    %v1171 = vpop.f32.mrb[0].mxu0
    %v1172 = vadd.f32 0.0, %v1171
    %v1173 = vpop.f32.mrb[0].mxu0
    %1174 = vmatprep.mubr.f32.mxu0 0.0
    %1175 = vmatmul.mubr.f32.gmra.mrb[0].mxu0 %v481
    %v1176 = vpop.f32.mrb[0].mxu0
    %v1177 = vadd.f32 0.0, %v1176
    %v1178 = vpop.f32.mrb[0].mxu0
    %1179 = vmatprep.mubr.f32.mxu0 0.0
    %1180 = vmatmul.mubr.f32.gmra.mrb[0].mxu0 %v484
    %v1181 = vpop.f32.mrb[0].mxu0
    %v1182 = vadd.f32 0.0, %v1181
    %v1183 = vpop.f32.mrb[0].mxu0
    %1184 = vmatprep.mubr.f32.mxu0 0.0
    %1185 = vmatmul.mubr.f32.gmra.mrb[0].mxu0 %v487
    %v1186 = vpop.f32.mrb[0].mxu0
    %v1187 = vadd.f32 0.0, %v1186
    %v1188 = vpop.f32.mrb[0].mxu0
    %1189 = vmatprep.mubr.f32.mxu0 0.0
    %1190 = vmatmul.mubr.f32.gmra.mrb[0].mxu0 %v490
    %v1191 = vpop.f32.mrb[0].mxu0
    %v1192 = vadd.f32 0.0, %v1191
    %v1193 = vpop.f32.mrb[0].mxu0
    %1194 = vmatprep.mubr.f32.mxu0 0.0
    %1195 = vmatmul.mubr.f32.gmra.mrb[0].mxu0 %v493
    %v1196 = vpop.f32.mrb[0].mxu0
    %v1197 = vadd.f32 0.0, %v1196
    %v1198 = vpop.f32.mrb[0].mxu0
    %1199 = vmatprep.mubr.f32.mxu0 0.0
    %1200 = vmatmul.mubr.f32.gmra.mrb[0].mxu0 %v496
    %v1201 = vpop.f32.mrb[0].mxu0
    %v1202 = vadd.f32 0.0, %v1201
    %v1203 = vpop.f32.mrb[0].mxu0
    %1204 = vmatprep.mubr.f32.mxu0 0.0
    %1205 = vmatmul.mubr.f32.gmra.mrb[0].mxu0 %v499
    %v1206 = vpop.f32.mrb[0].mxu0
    %v1207 = vadd.f32 0.0, %v1206
    %v1208 = vpop.f32.mrb[0].mxu0
    %1209 = vmatprep.mubr.f32.mxu0 0.0
    %1210 = vmatmul.mubr.f32.gmra.mrb[0].mxu0 %v502
    %v1211 = vpop.f32.mrb[0].mxu0
    %v1212 = vadd.f32 0.0, %v1211
    %v1213 = vpop.f32.mrb[0].mxu0
    %1214 = vmatprep.mubr.f32.mxu0 0.0
    %1215 = vmatmul.mubr.f32.gmra.mrb[0].mxu0 %v505
    %v1216 = vpop.f32.mrb[0].mxu0
    %v1217 = vadd.f32 0.0, %v1216
    %v1218 = vpop.f32.mrb[0].mxu0
    %1219 = vmatprep.mubr.f32.mxu0 0.0
    %1220 = vmatmul.mubr.f32.gmra.mrb[0].mxu0 %v508
    %v1221 = vpop.f32.mrb[0].mxu0
    %v1222 = vadd.f32 0.0, %v1221
    %v1223 = vpop.f32.mrb[0].mxu0
    %1224 = vmatprep.mubr.f32.mxu0 0.0
    %1225 = vmatmul.mubr.f32.gmra.mrb[0].mxu0 %v511
    %v1226 = vpop.f32.mrb[0].mxu0
    %v1227 = vadd.f32 0.0, %v1226
    %v1228 = vpop.f32.mrb[0].mxu0
    %1229 = vmatprep.mubr.f32.mxu0 0.0
    %1230 = vmatmul.mubr.f32.gmra.mrb[0].mxu0 %v514
    %v1231 = vpop.f32.mrb[0].mxu0
    %v1232 = vadd.f32 0.0, %v1231
    %v1233 = vpop.f32.mrb[0].mxu0
    %1234 = vmatprep.mubr.f32.mxu0 0.0
    %1235 = vmatmul.mubr.f32.gmra.mrb[0].mxu0 %v517
    %v1236 = vpop.f32.mrb[0].mxu0
    %v1237 = vadd.f32 0.0, %v1236
    %v1238 = vpop.f32.mrb[0].mxu0
    %1239 = vmatprep.mubr.f32.mxu0 0.0
    %1240 = vmatmul.mubr.f32.gmra.mrb[0].mxu0 %v520
    %v1241 = vpop.f32.mrb[0].mxu0
    %v1242 = vadd.f32 0.0, %v1241
    %v1243 = vpop.f32.mrb[0].mxu0
    %1244 = vmatprep.mubr.f32.mxu0 0.0
    %1245 = vmatmul.mubr.f32.gmra.mrb[0].mxu0 %v523
    %v1246 = vpop.f32.mrb[0].mxu0
    %v1247 = vadd.f32 0.0, %v1246
    %v1248 = vpop.f32.mrb[0].mxu0
    %1249 = vmatprep.mubr.f32.mxu0 0.0
    %1250 = vmatmul.mubr.f32.gmra.mrb[0].mxu0 %v526
    %v1251 = vpop.f32.mrb[0].mxu0
    %v1252 = vadd.f32 0.0, %v1251
    %v1253 = vpop.f32.mrb[0].mxu0
    %1254 = vmatprep.mubr.f32.mxu0 0.0
    %1255 = vmatmul.mubr.f32.gmra.mrb[0].mxu0 %v529
    %v1256 = vpop.f32.mrb[0].mxu0
    %v1257 = vadd.f32 0.0, %v1256
    %v1258 = vpop.f32.mrb[0].mxu0
    %1259 = vmatprep.mubr.f32.mxu0 0.0
    %1260 = vmatmul.mubr.f32.gmra.mrb[0].mxu0 %v532
    %v1261 = vpop.f32.mrb[0].mxu0
    %v1262 = vadd.f32 0.0, %v1261
    %v1263 = vpop.f32.mrb[0].mxu0
    %1264 = vmatprep.mubr.f32.mxu0 0.0
    %1265 = vmatmul.mubr.f32.gmra.mrb[0].mxu0 %v535
    %v1266 = vpop.f32.mrb[0].mxu0
    %v1267 = vadd.f32 0.0, %v1266
    %v1268 = vpop.f32.mrb[0].mxu0
    %1269 = vmatprep.mubr.f32.mxu0 0.0
    %1270 = vmatmul.mubr.f32.gmra.mrb[0].mxu0 %v538
    %v1271 = vpop.f32.mrb[0].mxu0
    %v1272 = vadd.f32 0.0, %v1271
    %v1273 = vpop.f32.mrb[0].mxu0
    %1274 = vmatprep.mubr.f32.mxu0 0.0
    %1275 = vmatmul.mubr.f32.gmra.mrb[0].mxu0 %v541
    %v1276 = vpop.f32.mrb[0].mxu0
    %v1277 = vadd.f32 0.0, %v1276
    %v1278 = vpop.f32.mrb[0].mxu0
    %1279 = vmatprep.mubr.f32.mxu0 0.0
    %1280 = vmatmul.mubr.f32.gmra.mrb[0].mxu0 %v544
    %v1281 = vpop.f32.mrb[0].mxu0
    %v1282 = vadd.f32 0.0, %v1281
    %v1283 = vpop.f32.mrb[0].mxu0
    %1284 = vmatprep.mubr.f32.mxu0 0.0
    %1285 = vmatmul.mubr.f32.gmra.mrb[0].mxu0 %v547
    %v1286 = vpop.f32.mrb[0].mxu0
    %v1287 = vadd.f32 0.0, %v1286
    %v1288 = vpop.f32.mrb[0].mxu0
    %1289 = vmatprep.mubr.f32.mxu0 0.0
    %1290 = vmatmul.mubr.f32.gmra.mrb[0].mxu0 %v550
    %v1291 = vpop.f32.mrb[0].mxu0
    %v1292 = vadd.f32 0.0, %v1291
    %v1293 = vpop.f32.mrb[0].mxu0
    %1294 = vmatprep.mubr.f32.mxu0 0.0
    %1295 = vmatmul.mubr.f32.gmra.mrb[0].mxu0 %v553
    %v1296 = vpop.f32.mrb[0].mxu0
    %v1297 = vadd.f32 0.0, %v1296
    %v1298 = vpop.f32.mrb[0].mxu0
    %1299 = vmatprep.mubr.f32.mxu0 0.0
    %1300 = vmatmul.mubr.f32.gmra.mrb[0].mxu0 %v556
    %v1301 = vpop.f32.mrb[0].mxu0
    %v1302 = vadd.f32 0.0, %v1301
    %v1303 = vpop.f32.mrb[0].mxu0
    %1304 = vmatprep.mubr.f32.mxu0 0.0
    %1305 = vmatmul.mubr.f32.gmra.mrb[0].mxu0 %v559
    %v1306 = vpop.f32.mrb[0].mxu0
    %v1307 = vadd.f32 0.0, %v1306
    %v1308 = vpop.f32.mrb[0].mxu0
    %1309 = vmatprep.mubr.f32.mxu0 0.0
    %1310 = vmatmul.mubr.f32.gmra.mrb[0].mxu0 %v562
    %v1311 = vpop.f32.mrb[0].mxu0
    %v1312 = vadd.f32 0.0, %v1311
    %v1313 = vpop.f32.mrb[0].mxu0
    %1314 = vmatprep.mubr.f32.mxu0 0.0
    %1315 = vmatmul.mubr.f32.gmra.mrb[0].mxu0 %v565
    %v1316 = vpop.f32.mrb[0].mxu0
    %v1317 = vadd.f32 0.0, %v1316
    %v1318 = vpop.f32.mrb[0].mxu0
    %1319 = vmatprep.mubr.f32.mxu0 0.0
    %1320 = vmatmul.mubr.f32.gmra.mrb[0].mxu0 %v568
    %v1321 = vpop.f32.mrb[0].mxu0
    %v1322 = vadd.f32 0.0, %v1321
    %v1323 = vpop.f32.mrb[0].mxu0
    %1324 = vmatprep.mubr.f32.mxu0 0.0
    %1325 = vmatmul.mubr.f32.gmra.mrb[0].mxu0 %v571
    %v1326 = vpop.f32.mrb[0].mxu0
    %v1327 = vadd.f32 0.0, %v1326
    %v1328 = vpop.f32.mrb[0].mxu0
    %1329 = vmatprep.mubr.f32.mxu0 0.0
    %1330 = vmatmul.mubr.f32.gmra.mrb[0].mxu0 %v574
    %v1331 = vpop.f32.mrb[0].mxu0
    %v1332 = vadd.f32 0.0, %v1331
    %v1333 = vpop.f32.mrb[0].mxu0
    %1334 = vmatprep.mubr.f32.mxu0 0.0
    %1335 = vmatmul.mubr.f32.gmra.mrb[0].mxu0 %v577
    %v1336 = vpop.f32.mrb[0].mxu0
    %v1337 = vadd.f32 0.0, %v1336
    %v1338 = vpop.f32.mrb[0].mxu0
    %1339 = vmatprep.mubr.f32.mxu0 0.0
    %1340 = vmatmul.mubr.f32.gmra.mrb[0].mxu0 %v580
    %v1341 = vpop.f32.mrb[0].mxu0
    %v1342 = vadd.f32 0.0, %v1341
    %v1343 = vpop.f32.mrb[0].mxu0
    %1344 = vmatprep.mubr.f32.mxu0 0.0
    %1345 = vmatmul.mubr.f32.gmra.mrb[0].mxu0 %v583
    %v1346 = vpop.f32.mrb[0].mxu0
    %v1347 = vadd.f32 0.0, %v1346
    %v1348 = vpop.f32.mrb[0].mxu0
    %1349 = vmatprep.mubr.f32.mxu0 0.0
    %1350 = vmatmul.mubr.f32.gmra.mrb[0].mxu0 %v586
    %v1351 = vpop.f32.mrb[0].mxu0
    %v1352 = vadd.f32 0.0, %v1351
    %v1353 = vpop.f32.mrb[0].mxu0
    %1354 = vmatprep.mubr.f32.mxu0 0.0
    %1355 = vmatmul.mubr.f32.gmra.mrb[0].mxu0 %v589
    %v1356 = vpop.f32.mrb[0].mxu0
    %v1357 = vadd.f32 0.0, %v1356
    %v1358 = vpop.f32.mrb[0].mxu0
    %1359 = vmatprep.mubr.f32.mxu0 0.0
    %1360 = vmatmul.mubr.f32.gmra.mrb[0].mxu0 %v592
    %v1361 = vpop.f32.mrb[0].mxu0
    %v1362 = vadd.f32 0.0, %v1361
    %v1363 = vpop.f32.mrb[0].mxu0
    %1364 = vmatprep.mubr.f32.mxu0 0.0
    %1365 = vmatmul.mubr.f32.gmra.mrb[0].mxu0 %v595
    %v1366 = vpop.f32.mrb[0].mxu0
    %v1367 = vadd.f32 0.0, %v1366
    %v1368 = vpop.f32.mrb[0].mxu0
    %1369 = vmatprep.mubr.f32.mxu0 0.0
    %1370 = vmatmul.mubr.f32.gmra.mrb[0].mxu0 %v598
    %v1371 = vpop.f32.mrb[0].mxu0
    %v1372 = vadd.f32 0.0, %v1371
    %v1373 = vpop.f32.mrb[0].mxu0
    %1374 = vmatprep.mubr.f32.mxu0 0.0
    %1375 = vmatmul.mubr.f32.gmra.mrb[0].mxu0 %v601
    %v1376 = vpop.f32.mrb[0].mxu0
    %v1377 = vadd.f32 0.0, %v1376
    %v1378 = vpop.f32.mrb[0].mxu0
    %1379 = vmatprep.mubr.f32.mxu0 0.0
    %1380 = vmatmul.mubr.f32.gmra.mrb[0].mxu0 %v604
    %v1381 = vpop.f32.mrb[0].mxu0
    %v1382 = vadd.f32 0.0, %v1381
    %v1383 = vpop.f32.mrb[0].mxu0
    %1384 = vmatprep.mubr.f32.mxu0 0.0
    %1385 = vmatmul.mubr.f32.gmra.mrb[0].mxu0 %v607
    %v1386 = vpop.f32.mrb[0].mxu0
    %v1387 = vadd.f32 0.0, %v1386
    %v1388 = vpop.f32.mrb[0].mxu0
    %1389 = vmatprep.mubr.f32.mxu0 0.0
    %1390 = vmatmul.mubr.f32.gmra.mrb[0].mxu0 %v610
    %v1391 = vpop.f32.mrb[0].mxu0
    %v1392 = vadd.f32 0.0, %v1391
    %v1393 = vpop.f32.mrb[0].mxu0
    %1394 = vmatprep.mubr.f32.mxu0 0.0
    %1395 = vmatmul.mubr.f32.gmra.mrb[0].mxu0 %v613
    %v1396 = vpop.f32.mrb[0].mxu0
    %v1397 = vadd.f32 0.0, %v1396
    %v1398 = vpop.f32.mrb[0].mxu0
    %1399 = vdwg.mxu0
    %v1400 = vmax.f32 %v682, %v772
    %v1401 = vmax.f32 %v687, %v777
    %v1402 = vmax.f32 %v692, %v782
    %v1403 = vmax.f32 %v697, %v787
    %v1404 = vmax.f32 %v702, %v792
    %v1405 = vmax.f32 %v707, %v797
    %v1406 = vmax.f32 %v712, %v802
    %v1407 = vmax.f32 %v717, %v807
    %v1408 = vmax.f32 %v722, %v812
    %v1409 = vmax.f32 %v727, %v817
    %v1410 = vmax.f32 %v732, %v822
    %v1411 = vmax.f32 %v737, %v827
    %v1412 = vmax.f32 %v742, %v832
    %v1413 = vmax.f32 %v747, %v837
    %v1414 = vmax.f32 %v752, %v842
    %v1415 = vmax.f32 %v757, %v847
    %v1416 = vmax.f32 %v762, %v852
    %v1417 = vmax.f32 %v767, %v857
    %v1418 = vmax.f32 %v1042, %v1132
    %v1419 = vmax.f32 %v1047, %v1137
    %v1420 = vmax.f32 %v1052, %v1142
    %v1421 = vmax.f32 %v1057, %v1147
    %v1422 = vmax.f32 %v1062, %v1152
    %v1423 = vmax.f32 %v1067, %v1157
    %v1424 = vmax.f32 %v1072, %v1162
    %v1425 = vmax.f32 %v1077, %v1167
    %v1426 = vmax.f32 %v1082, %v1172
    %v1427 = vmax.f32 %v1087, %v1177
    %v1428 = vmax.f32 %v1092, %v1182
    %v1429 = vmax.f32 %v1097, %v1187
    %v1430 = vmax.f32 %v1102, %v1192
    %v1431 = vmax.f32 %v1107, %v1197
    %v1432 = vmax.f32 %v1112, %v1202
    %v1433 = vmax.f32 %v1117, %v1207
    %v1434 = vmax.f32 %v1122, %v1212
    %v1435 = vmax.f32 %v1127, %v1217
    %v1436 = vmax.f32 %v862, %v952
    %v1437 = vmax.f32 %v867, %v957
    %v1438 = vmax.f32 %v872, %v962
    %v1439 = vmax.f32 %v877, %v967
    %v1440 = vmax.f32 %v882, %v972
    %v1441 = vmax.f32 %v887, %v977
    %v1442 = vmax.f32 %v892, %v982
    %v1443 = vmax.f32 %v897, %v987
    %v1444 = vmax.f32 %v902, %v992
    %v1445 = vmax.f32 %v907, %v997
    %v1446 = vmax.f32 %v912, %v1002
    %v1447 = vmax.f32 %v917, %v1007
    %v1448 = vmax.f32 %v922, %v1012
    %v1449 = vmax.f32 %v927, %v1017
    %v1450 = vmax.f32 %v932, %v1022
    %v1451 = vmax.f32 %v937, %v1027
    %v1452 = vmax.f32 %v942, %v1032
    %v1453 = vmax.f32 %v947, %v1037
    %v1454 = vmax.f32 %v1222, %v1312
    %v1455 = vmax.f32 %v1227, %v1317
    %v1456 = vmax.f32 %v1232, %v1322
    %v1457 = vmax.f32 %v1237, %v1327
    %v1458 = vmax.f32 %v1242, %v1332
    %v1459 = vmax.f32 %v1247, %v1337
    %v1460 = vmax.f32 %v1252, %v1342
    %v1461 = vmax.f32 %v1257, %v1347
    %v1462 = vmax.f32 %v1262, %v1352
    %v1463 = vmax.f32 %v1267, %v1357
    %v1464 = vmax.f32 %v1272, %v1362
    %v1465 = vmax.f32 %v1277, %v1367
    %v1466 = vmax.f32 %v1282, %v1372
    %v1467 = vmax.f32 %v1287, %v1377
    %v1468 = vmax.f32 %v1292, %v1382
    %v1469 = vmax.f32 %v1297, %v1387
    %v1470 = vmax.f32 %v1302, %v1392
    %v1471 = vmax.f32 %v1307, %v1397
    %v1472 = vmax.f32 %v1400, %v1436
    %v1473 = vmax.f32 %v1401, %v1437
    %v1474 = vmax.f32 %v1402, %v1438
    %v1475 = vmax.f32 %v1403, %v1439
    %v1476 = vmax.f32 %v1404, %v1440
    %v1477 = vmax.f32 %v1405, %v1441
    %v1478 = vmax.f32 %v1406, %v1442
    %v1479 = vmax.f32 %v1407, %v1443
    %v1480 = vmax.f32 %v1408, %v1444
    %v1481 = vmax.f32 %v1409, %v1445
    %v1482 = vmax.f32 %v1410, %v1446
    %v1483 = vmax.f32 %v1411, %v1447
    %v1484 = vmax.f32 %v1412, %v1448
    %v1485 = vmax.f32 %v1413, %v1449
    %v1486 = vmax.f32 %v1414, %v1450
    %v1487 = vmax.f32 %v1415, %v1451
    %v1488 = vmax.f32 %v1416, %v1452
    %v1489 = vmax.f32 %v1417, %v1453
    %v1490 = vmax.f32 %v1418, %v1454
    %v1491 = vmax.f32 %v1419, %v1455
    %v1492 = vmax.f32 %v1420, %v1456
    %v1493 = vmax.f32 %v1421, %v1457
    %v1494 = vmax.f32 %v1422, %v1458
    %v1495 = vmax.f32 %v1423, %v1459
    %v1496 = vmax.f32 %v1424, %v1460
    %v1497 = vmax.f32 %v1425, %v1461
    %v1498 = vmax.f32 %v1426, %v1462
    %v1499 = vmax.f32 %v1427, %v1463
    %v1500 = vmax.f32 %v1428, %v1464
    %v1501 = vmax.f32 %v1429, %v1465
    %v1502 = vmax.f32 %v1430, %v1466
    %v1503 = vmax.f32 %v1431, %v1467
    %v1504 = vmax.f32 %v1432, %v1468
    %v1505 = vmax.f32 %v1433, %v1469
    %v1506 = vmax.f32 %v1434, %v1470
    %v1507 = vmax.f32 %v1435, %v1471
    %v1508 = vld [vmem:[%s2] sm:$0x1]
    %v1510 = vlaneseq
    %v1511 = vshrl.u32 %v1510, 7
    %v1512 = vsub.s32 0, %v1511
    %v1513 = vrot.slane %v1508, %v1512
    %v1515 = vadd.f32 %v1472, %v1513
    %v1516 = vadd.f32 %v1473, %v1513
    %v1517 = vadd.f32 %v1474, %v1513
    %v1518 = vadd.f32 %v1475, %v1513
    %v1519 = vadd.f32 %v1476, %v1513
    %v1520 = vadd.f32 %v1477, %v1513
    %v1521 = vadd.f32 %v1478, %v1513
    %v1522 = vadd.f32 %v1479, %v1513
    %v1523 = vadd.f32 %v1480, %v1513
    %v1524 = vadd.f32 %v1481, %v1513
    %v1525 = vadd.f32 %v1482, %v1513
    %v1526 = vadd.f32 %v1483, %v1513
    %v1527 = vadd.f32 %v1484, %v1513
    %v1528 = vadd.f32 %v1485, %v1513
    %v1529 = vadd.f32 %v1486, %v1513
    %v1530 = vadd.f32 %v1487, %v1513
    %v1531 = vadd.f32 %v1488, %v1513
    %v1532 = vadd.f32 %v1489, %v1513
    %v1533 = vadd.f32 %v1490, %v1513
    %v1534 = vadd.f32 %v1491, %v1513
    %v1535 = vadd.f32 %v1492, %v1513
    %v1536 = vadd.f32 %v1493, %v1513
    %v1537 = vadd.f32 %v1494, %v1513
    %v1538 = vadd.f32 %v1495, %v1513
    %v1539 = vadd.f32 %v1496, %v1513
    %v1540 = vadd.f32 %v1497, %v1513
    %v1541 = vadd.f32 %v1498, %v1513
    %v1542 = vadd.f32 %v1499, %v1513
    %v1543 = vadd.f32 %v1500, %v1513
    %v1544 = vadd.f32 %v1501, %v1513
    %v1545 = vadd.f32 %v1502, %v1513
    %v1546 = vadd.f32 %v1503, %v1513
    %v1547 = vadd.f32 %v1504, %v1513
    %v1548 = vadd.f32 %v1505, %v1513
    %v1549 = vadd.f32 %v1506, %v1513
    %v1550 = vadd.f32 %v1507, %v1513
    %v1551 = vmax.f32 %v1515, 0.0
    %v1552 = vmax.f32 %v1516, 0.0
    %v1553 = vmax.f32 %v1517, 0.0
    %v1554 = vmax.f32 %v1518, 0.0
    %v1555 = vmax.f32 %v1519, 0.0
    %v1556 = vmax.f32 %v1520, 0.0
    %v1557 = vmax.f32 %v1521, 0.0
    %v1558 = vmax.f32 %v1522, 0.0
    %v1559 = vmax.f32 %v1523, 0.0
    %v1560 = vmax.f32 %v1524, 0.0
    %v1561 = vmax.f32 %v1525, 0.0
    %v1562 = vmax.f32 %v1526, 0.0
    %v1563 = vmax.f32 %v1527, 0.0
    %v1564 = vmax.f32 %v1528, 0.0
    %v1565 = vmax.f32 %v1529, 0.0
    %v1566 = vmax.f32 %v1530, 0.0
    %v1567 = vmax.f32 %v1531, 0.0
    %v1568 = vmax.f32 %v1532, 0.0
    %v1569 = vmax.f32 %v1533, 0.0
    %v1570 = vmax.f32 %v1534, 0.0
    %v1571 = vmax.f32 %v1535, 0.0
    %v1572 = vmax.f32 %v1536, 0.0
    %v1573 = vmax.f32 %v1537, 0.0
    %v1574 = vmax.f32 %v1538, 0.0
    %v1575 = vmax.f32 %v1539, 0.0
    %v1576 = vmax.f32 %v1540, 0.0
    %v1577 = vmax.f32 %v1541, 0.0
    %v1578 = vmax.f32 %v1542, 0.0
    %v1579 = vmax.f32 %v1543, 0.0
    %v1580 = vmax.f32 %v1544, 0.0
    %v1581 = vmax.f32 %v1545, 0.0
    %v1582 = vmax.f32 %v1546, 0.0
    %v1583 = vmax.f32 %v1547, 0.0
    %v1584 = vmax.f32 %v1548, 0.0
    %v1585 = vmax.f32 %v1549, 0.0
    %v1586 = vmax.f32 %v1550, 0.0
    %v1587 = vld [vmem:[%s3] sm:$0xff]
    %v1588 = vld [vmem:[%s3 + $0x8] sm:$0xff]
    %v1589 = vld [vmem:[%s3 + $0x10] sm:$0xff]
    %v1590 = vld [vmem:[%s3 + $0x18] sm:$0xff]
    %v1591 = vld [vmem:[%s3 + $0x20] sm:$0xff]
    %v1592 = vld [vmem:[%s3 + $0x28] sm:$0xff]
    %v1593 = vld [vmem:[%s3 + $0x30] sm:$0xff]
    %v1594 = vld [vmem:[%s3 + $0x38] sm:$0xff]
    %vm1595 = vcmask 523264
    %v1597 = vsel %vm1595, %v1551, 0
    %v1600 = vsel %vm1595, %v1552, 0
    %v1603 = vsel %vm1595, %v1553, 0
    %v1606 = vsel %vm1595, %v1554, 0
    %v1609 = vsel %vm1595, %v1555, 0
    %v1612 = vsel %vm1595, %v1556, 0
    %v1615 = vsel %vm1595, %v1557, 0
    %v1618 = vsel %vm1595, %v1558, 0
    %v1621 = vsel %vm1595, %v1559, 0
    %v1624 = vsel %vm1595, %v1560, 0
    %v1627 = vsel %vm1595, %v1561, 0
    %v1630 = vsel %vm1595, %v1562, 0
    %v1633 = vsel %vm1595, %v1563, 0
    %v1636 = vsel %vm1595, %v1564, 0
    %v1639 = vsel %vm1595, %v1565, 0
    %v1642 = vsel %vm1595, %v1566, 0
    %v1645 = vsel %vm1595, %v1567, 0
    %v1648 = vsel %vm1595, %v1568, 0
    %v1651 = vsel %vm1595, %v1569, 0
    %v1654 = vsel %vm1595, %v1570, 0
    %v1657 = vsel %vm1595, %v1571, 0
    %v1660 = vsel %vm1595, %v1572, 0
    %v1663 = vsel %vm1595, %v1573, 0
    %v1666 = vsel %vm1595, %v1574, 0
    %v1669 = vsel %vm1595, %v1575, 0
    %v1672 = vsel %vm1595, %v1576, 0
    %v1675 = vsel %vm1595, %v1577, 0
    %v1678 = vsel %vm1595, %v1578, 0
    %v1681 = vsel %vm1595, %v1579, 0
    %v1684 = vsel %vm1595, %v1580, 0
    %v1687 = vsel %vm1595, %v1581, 0
    %v1690 = vsel %vm1595, %v1582, 0
    %v1693 = vsel %vm1595, %v1583, 0
    %v1696 = vsel %vm1595, %v1584, 0
    %v1699 = vsel %vm1595, %v1585, 0
    %v1702 = vsel %vm1595, %v1586, 0
    %1704 = vmatprep.subr.mxu0 0.0
    %1705 = vmatpush1.msra.mxu0 %v1587
    %1706 = vmatprep.subr.mxu0 0.0
    %1707 = vmatpush1.msra.mxu0 %v1588
    %1708 = vmatprep.subr.mxu0 0.0
    %1709 = vmatpush1.msra.mxu0 %v1589
    %1710 = vmatprep.subr.mxu0 0.0
    %1711 = vmatpush1.msra.mxu0 %v1590
    %1712 = vmatprep.subr.mxu0 0.0
    %1713 = vmatpush1.msra.mxu0 %v1591
    %1714 = vmatprep.subr.mxu0 0.0
    %1715 = vmatpush1.msra.mxu0 %v1592
    %1716 = vmatprep.subr.mxu0 0.0
    %1717 = vmatpush1.msra.mxu0 %v1593
    %1718 = vmatprep.subr.mxu0 0.0
    %1719 = vmatpush1.msra.mxu0 %v1594
    %1720 = vmatprep.subr.mxu0 0.0
    %1721 = vmatpush1.msra.mxu0 0.0
    %1722 = vmatprep.subr.mxu0 0.0
    %1723 = vmatpush1.msra.mxu0 0.0
    %1724 = vmatprep.subr.mxu0 0.0
    %1725 = vmatpush1.msra.mxu0 0.0
    %1726 = vmatprep.subr.mxu0 0.0
    %1727 = vmatpush1.msra.mxu0 0.0
    %1728 = vmatprep.subr.mxu0 0.0
    %1729 = vmatpush1.msra.mxu0 0.0
    %1730 = vmatprep.subr.mxu0 0.0
    %1731 = vmatpush1.msra.mxu0 0.0
    %1732 = vmatprep.subr.mxu0 0.0
    %1733 = vmatpush1.msra.mxu0 0.0
    %1734 = vmatprep.subr.mxu0 0.0
    %1735 = vmatpush1.msra.mxu0 0.0
    %1736 = vmatprep.subr.mxu0 0.0
    %1737 = vmatpush1.msra.mxu0 0.0
    %1738 = vmatprep.subr.mxu0 0.0
    %1739 = vmatpush1.msra.mxu0 0.0
    %1740 = vmatprep.subr.mxu0 0.0
    %1741 = vmatpush1.msra.mxu0 0.0
    %1742 = vmatprep.subr.mxu0 0.0
    %1743 = vmatpush1.msra.mxu0 0.0
    %1744 = vmatprep.subr.mxu0 0.0
    %1745 = vmatpush1.msra.mxu0 0.0
    %1746 = vmatprep.subr.mxu0 0.0
    %1747 = vmatpush1.msra.mxu0 0.0
    %1748 = vmatprep.subr.mxu0 0.0
    %1749 = vmatpush1.msra.mxu0 0.0
    %1750 = vmatprep.subr.mxu0 0.0
    %1751 = vmatpush1.msra.mxu0 0.0
    %1752 = vmatprep.subr.mxu0 0.0
    %1753 = vmatpush1.msra.mxu0 0.0
    %1754 = vmatprep.subr.mxu0 0.0
    %1755 = vmatpush1.msra.mxu0 0.0
    %1756 = vmatprep.subr.mxu0 0.0
    %1757 = vmatpush1.msra.mxu0 0.0
    %1758 = vmatprep.subr.mxu0 0.0
    %1759 = vmatpush1.msra.mxu0 0.0
    %1760 = vmatprep.subr.mxu0 0.0
    %1761 = vmatpush1.msra.mxu0 0.0
    %1762 = vmatprep.subr.mxu0 0.0
    %1763 = vmatpush1.msra.mxu0 0.0
    %1764 = vmatprep.subr.mxu0 0.0
    %1765 = vmatpush1.msra.mxu0 0.0
    %1766 = vmatprep.subr.mxu0 0.0
    %1767 = vmatpush1.msra.mxu0 0.0
    %1768 = vmatprep.mubr.f32.mxu0 0.0
    %1769 = vmatmul.mubr.f32.gmra.mrb[0].mxu0 %v1597
    %v1770 = vpop.f32.mrb[0].mxu0
    %v1771 = vadd.f32 0.0, %v1770
    %v1772 = vpop.f32.mrb[0].mxu0
    %1773 = vmatprep.mubr.f32.mxu0 0.0
    %1774 = vmatmul.mubr.f32.gmra.mrb[0].mxu0 %v1600
    %v1775 = vpop.f32.mrb[0].mxu0
    %v1776 = vadd.f32 0.0, %v1775
    %v1777 = vpop.f32.mrb[0].mxu0
    %1778 = vmatprep.mubr.f32.mxu0 0.0
    %1779 = vmatmul.mubr.f32.gmra.mrb[0].mxu0 %v1603
    %v1780 = vpop.f32.mrb[0].mxu0
    %v1781 = vadd.f32 0.0, %v1780
    %v1782 = vpop.f32.mrb[0].mxu0
    %1783 = vmatprep.mubr.f32.mxu0 0.0
    %1784 = vmatmul.mubr.f32.gmra.mrb[0].mxu0 %v1606
    %v1785 = vpop.f32.mrb[0].mxu0
    %v1786 = vadd.f32 0.0, %v1785
    %v1787 = vpop.f32.mrb[0].mxu0
    %1788 = vmatprep.mubr.f32.mxu0 0.0
    %1789 = vmatmul.mubr.f32.gmra.mrb[0].mxu0 %v1609
    %v1790 = vpop.f32.mrb[0].mxu0
    %v1791 = vadd.f32 0.0, %v1790
    %v1792 = vpop.f32.mrb[0].mxu0
    %1793 = vmatprep.mubr.f32.mxu0 0.0
    %1794 = vmatmul.mubr.f32.gmra.mrb[0].mxu0 %v1612
    %v1795 = vpop.f32.mrb[0].mxu0
    %v1796 = vadd.f32 0.0, %v1795
    %v1797 = vpop.f32.mrb[0].mxu0
    %1798 = vmatprep.mubr.f32.mxu0 0.0
    %1799 = vmatmul.mubr.f32.gmra.mrb[0].mxu0 %v1615
    %v1800 = vpop.f32.mrb[0].mxu0
    %v1801 = vadd.f32 0.0, %v1800
    %v1802 = vpop.f32.mrb[0].mxu0
    %1803 = vmatprep.mubr.f32.mxu0 0.0
    %1804 = vmatmul.mubr.f32.gmra.mrb[0].mxu0 %v1618
    %v1805 = vpop.f32.mrb[0].mxu0
    %v1806 = vadd.f32 0.0, %v1805
    %v1807 = vpop.f32.mrb[0].mxu0
    %1808 = vmatprep.mubr.f32.mxu0 0.0
    %1809 = vmatmul.mubr.f32.gmra.mrb[0].mxu0 %v1621
    %v1810 = vpop.f32.mrb[0].mxu0
    %v1811 = vadd.f32 0.0, %v1810
    %v1812 = vpop.f32.mrb[0].mxu0
    %1813 = vmatprep.mubr.f32.mxu0 0.0
    %1814 = vmatmul.mubr.f32.gmra.mrb[0].mxu0 %v1624
    %v1815 = vpop.f32.mrb[0].mxu0
    %v1816 = vadd.f32 0.0, %v1815
    %v1817 = vpop.f32.mrb[0].mxu0
    %1818 = vmatprep.mubr.f32.mxu0 0.0
    %1819 = vmatmul.mubr.f32.gmra.mrb[0].mxu0 %v1627
    %v1820 = vpop.f32.mrb[0].mxu0
    %v1821 = vadd.f32 0.0, %v1820
    %v1822 = vpop.f32.mrb[0].mxu0
    %1823 = vmatprep.mubr.f32.mxu0 0.0
    %1824 = vmatmul.mubr.f32.gmra.mrb[0].mxu0 %v1630
    %v1825 = vpop.f32.mrb[0].mxu0
    %v1826 = vadd.f32 0.0, %v1825
    %v1827 = vpop.f32.mrb[0].mxu0
    %1828 = vmatprep.mubr.f32.mxu0 0.0
    %1829 = vmatmul.mubr.f32.gmra.mrb[0].mxu0 %v1633
    %v1830 = vpop.f32.mrb[0].mxu0
    %v1831 = vadd.f32 0.0, %v1830
    %v1832 = vpop.f32.mrb[0].mxu0
    %1833 = vmatprep.mubr.f32.mxu0 0.0
    %1834 = vmatmul.mubr.f32.gmra.mrb[0].mxu0 %v1636
    %v1835 = vpop.f32.mrb[0].mxu0
    %v1836 = vadd.f32 0.0, %v1835
    %v1837 = vpop.f32.mrb[0].mxu0
    %1838 = vmatprep.mubr.f32.mxu0 0.0
    %1839 = vmatmul.mubr.f32.gmra.mrb[0].mxu0 %v1639
    %v1840 = vpop.f32.mrb[0].mxu0
    %v1841 = vadd.f32 0.0, %v1840
    %v1842 = vpop.f32.mrb[0].mxu0
    %1843 = vmatprep.mubr.f32.mxu0 0.0
    %1844 = vmatmul.mubr.f32.gmra.mrb[0].mxu0 %v1642
    %v1845 = vpop.f32.mrb[0].mxu0
    %v1846 = vadd.f32 0.0, %v1845
    %v1847 = vpop.f32.mrb[0].mxu0
    %1848 = vmatprep.mubr.f32.mxu0 0.0
    %1849 = vmatmul.mubr.f32.gmra.mrb[0].mxu0 %v1645
    %v1850 = vpop.f32.mrb[0].mxu0
    %v1851 = vadd.f32 0.0, %v1850
    %v1852 = vpop.f32.mrb[0].mxu0
    %1853 = vmatprep.mubr.f32.mxu0 0.0
    %1854 = vmatmul.mubr.f32.gmra.mrb[0].mxu0 %v1648
    %v1855 = vpop.f32.mrb[0].mxu0
    %v1856 = vadd.f32 0.0, %v1855
    %v1857 = vpop.f32.mrb[0].mxu0
    %1858 = vmatprep.mubr.f32.mxu0 0.0
    %1859 = vmatmul.mubr.f32.gmra.mrb[0].mxu0 %v1651
    %v1860 = vpop.f32.mrb[0].mxu0
    %v1861 = vadd.f32 0.0, %v1860
    %v1862 = vpop.f32.mrb[0].mxu0
    %1863 = vmatprep.mubr.f32.mxu0 0.0
    %1864 = vmatmul.mubr.f32.gmra.mrb[0].mxu0 %v1654
    %v1865 = vpop.f32.mrb[0].mxu0
    %v1866 = vadd.f32 0.0, %v1865
    %v1867 = vpop.f32.mrb[0].mxu0
    %1868 = vmatprep.mubr.f32.mxu0 0.0
    %1869 = vmatmul.mubr.f32.gmra.mrb[0].mxu0 %v1657
    %v1870 = vpop.f32.mrb[0].mxu0
    %v1871 = vadd.f32 0.0, %v1870
    %v1872 = vpop.f32.mrb[0].mxu0
    %1873 = vmatprep.mubr.f32.mxu0 0.0
    %1874 = vmatmul.mubr.f32.gmra.mrb[0].mxu0 %v1660
    %v1875 = vpop.f32.mrb[0].mxu0
    %v1876 = vadd.f32 0.0, %v1875
    %v1877 = vpop.f32.mrb[0].mxu0
    %1878 = vmatprep.mubr.f32.mxu0 0.0
    %1879 = vmatmul.mubr.f32.gmra.mrb[0].mxu0 %v1663
    %v1880 = vpop.f32.mrb[0].mxu0
    %v1881 = vadd.f32 0.0, %v1880
    %v1882 = vpop.f32.mrb[0].mxu0
    %1883 = vmatprep.mubr.f32.mxu0 0.0
    %1884 = vmatmul.mubr.f32.gmra.mrb[0].mxu0 %v1666
    %v1885 = vpop.f32.mrb[0].mxu0
    %v1886 = vadd.f32 0.0, %v1885
    %v1887 = vpop.f32.mrb[0].mxu0
    %1888 = vmatprep.mubr.f32.mxu0 0.0
    %1889 = vmatmul.mubr.f32.gmra.mrb[0].mxu0 %v1669
    %v1890 = vpop.f32.mrb[0].mxu0
    %v1891 = vadd.f32 0.0, %v1890
    %v1892 = vpop.f32.mrb[0].mxu0
    %1893 = vmatprep.mubr.f32.mxu0 0.0
    %1894 = vmatmul.mubr.f32.gmra.mrb[0].mxu0 %v1672
    %v1895 = vpop.f32.mrb[0].mxu0
    %v1896 = vadd.f32 0.0, %v1895
    %v1897 = vpop.f32.mrb[0].mxu0
    %1898 = vmatprep.mubr.f32.mxu0 0.0
    %1899 = vmatmul.mubr.f32.gmra.mrb[0].mxu0 %v1675
    %v1900 = vpop.f32.mrb[0].mxu0
    %v1901 = vadd.f32 0.0, %v1900
    %v1902 = vpop.f32.mrb[0].mxu0
    %1903 = vmatprep.mubr.f32.mxu0 0.0
    %1904 = vmatmul.mubr.f32.gmra.mrb[0].mxu0 %v1678
    %v1905 = vpop.f32.mrb[0].mxu0
    %v1906 = vadd.f32 0.0, %v1905
    %v1907 = vpop.f32.mrb[0].mxu0
    %1908 = vmatprep.mubr.f32.mxu0 0.0
    %1909 = vmatmul.mubr.f32.gmra.mrb[0].mxu0 %v1681
    %v1910 = vpop.f32.mrb[0].mxu0
    %v1911 = vadd.f32 0.0, %v1910
    %v1912 = vpop.f32.mrb[0].mxu0
    %1913 = vmatprep.mubr.f32.mxu0 0.0
    %1914 = vmatmul.mubr.f32.gmra.mrb[0].mxu0 %v1684
    %v1915 = vpop.f32.mrb[0].mxu0
    %v1916 = vadd.f32 0.0, %v1915
    %v1917 = vpop.f32.mrb[0].mxu0
    %1918 = vmatprep.mubr.f32.mxu0 0.0
    %1919 = vmatmul.mubr.f32.gmra.mrb[0].mxu0 %v1687
    %v1920 = vpop.f32.mrb[0].mxu0
    %v1921 = vadd.f32 0.0, %v1920
    %v1922 = vpop.f32.mrb[0].mxu0
    %1923 = vmatprep.mubr.f32.mxu0 0.0
    %1924 = vmatmul.mubr.f32.gmra.mrb[0].mxu0 %v1690
    %v1925 = vpop.f32.mrb[0].mxu0
    %v1926 = vadd.f32 0.0, %v1925
    %v1927 = vpop.f32.mrb[0].mxu0
    %1928 = vmatprep.mubr.f32.mxu0 0.0
    %1929 = vmatmul.mubr.f32.gmra.mrb[0].mxu0 %v1693
    %v1930 = vpop.f32.mrb[0].mxu0
    %v1931 = vadd.f32 0.0, %v1930
    %v1932 = vpop.f32.mrb[0].mxu0
    %1933 = vmatprep.mubr.f32.mxu0 0.0
    %1934 = vmatmul.mubr.f32.gmra.mrb[0].mxu0 %v1696
    %v1935 = vpop.f32.mrb[0].mxu0
    %v1936 = vadd.f32 0.0, %v1935
    %v1937 = vpop.f32.mrb[0].mxu0
    %1938 = vmatprep.mubr.f32.mxu0 0.0
    %1939 = vmatmul.mubr.f32.gmra.mrb[0].mxu0 %v1699
    %v1940 = vpop.f32.mrb[0].mxu0
    %v1941 = vadd.f32 0.0, %v1940
    %v1942 = vpop.f32.mrb[0].mxu0
    %1943 = vmatprep.mubr.f32.mxu0 0.0
    %1944 = vmatmul.mubr.f32.gmra.mrb[0].mxu0 %v1702
    %v1945 = vpop.f32.mrb[0].mxu0
    %v1946 = vadd.f32 0.0, %v1945
    %v1947 = vpop.f32.mrb[0].mxu0
    %1948 = vdwg.mxu0
    %vm1977 = vcmask 1046528
    %v1978 = vrot.slane %v1771, 1
    %v1979 = vrot.slane %v1776, 1
    %v1980 = vsel %vm1977, %v1978, %v1979
    %v1981 = vrot.slane %v1781, 1
    %v1982 = vsel %vm1977, %v1979, %v1981
    %v1983 = vrot.slane %v1786, 1
    %v1984 = vsel %vm1977, %v1981, %v1983
    %v1985 = vrot.slane %v1791, 1
    %v1986 = vsel %vm1977, %v1983, %v1985
    %v1987 = vrot.slane %v1796, 1
    %v1988 = vsel %vm1977, %v1985, %v1987
    %v1989 = vrot.slane %v1801, 1
    %v1990 = vsel %vm1977, %v1987, %v1989
    %v1991 = vrot.slane %v1806, 1
    %v1992 = vsel %vm1977, %v1989, %v1991
    %v1993 = vrot.slane %v1811, 1
    %v1994 = vsel %vm1977, %v1991, %v1993
    %v1995 = vrot.slane %v1816, 1
    %v1996 = vsel %vm1977, %v1993, %v1995
    %v1997 = vrot.slane %v1821, 1
    %v1998 = vsel %vm1977, %v1995, %v1997
    %v1999 = vrot.slane %v1826, 1
    %v2000 = vsel %vm1977, %v1997, %v1999
    %v2001 = vrot.slane %v1831, 1
    %v2002 = vsel %vm1977, %v1999, %v2001
    %v2003 = vrot.slane %v1836, 1
    %v2004 = vsel %vm1977, %v2001, %v2003
    %v2005 = vrot.slane %v1861, 1
    %v2006 = vrot.slane %v1866, 1
    %v2007 = vsel %vm1977, %v2005, %v2006
    %v2008 = vrot.slane %v1871, 1
    %v2009 = vsel %vm1977, %v2006, %v2008
    %v2010 = vrot.slane %v1876, 1
    %v2011 = vsel %vm1977, %v2008, %v2010
    %v2012 = vrot.slane %v1881, 1
    %v2013 = vsel %vm1977, %v2010, %v2012
    %v2014 = vrot.slane %v1886, 1
    %v2015 = vsel %vm1977, %v2012, %v2014
    %v2016 = vrot.slane %v1891, 1
    %v2017 = vsel %vm1977, %v2014, %v2016
    %v2018 = vrot.slane %v1896, 1
    %v2019 = vsel %vm1977, %v2016, %v2018
    %v2020 = vrot.slane %v1901, 1
    %v2021 = vsel %vm1977, %v2018, %v2020
    %v2022 = vrot.slane %v1906, 1
    %v2023 = vsel %vm1977, %v2020, %v2022
    %v2024 = vrot.slane %v1911, 1
    %v2025 = vsel %vm1977, %v2022, %v2024
    %v2026 = vrot.slane %v1916, 1
    %v2027 = vsel %vm1977, %v2024, %v2026
    %v2028 = vrot.slane %v1921, 1
    %v2029 = vsel %vm1977, %v2026, %v2028
    %v2030 = vrot.slane %v1926, 1
    %v2031 = vsel %vm1977, %v2028, %v2030
    %2032 = vrot.lane.b32.xlu0 %v1980, 120
    %v2033 = vpop.permute.xlu0 %2032
    %2034 = vrot.lane.b32.xlu0 %v1982, 120
    %v2035 = vpop.permute.xlu0 %2034
    %2036 = vrot.lane.b32.xlu0 %v1984, 120
    %v2037 = vpop.permute.xlu0 %2036
    %2038 = vrot.lane.b32.xlu0 %v1986, 120
    %v2039 = vpop.permute.xlu0 %2038
    %2040 = vrot.lane.b32.xlu0 %v1988, 120
    %v2041 = vpop.permute.xlu0 %2040
    %2042 = vrot.lane.b32.xlu0 %v1990, 120
    %v2043 = vpop.permute.xlu0 %2042
    %2044 = vrot.lane.b32.xlu0 %v1992, 120
    %v2045 = vpop.permute.xlu0 %2044
    %2046 = vrot.lane.b32.xlu0 %v1994, 120
    %v2047 = vpop.permute.xlu0 %2046
    %2048 = vrot.lane.b32.xlu0 %v1996, 120
    %v2049 = vpop.permute.xlu0 %2048
    %2050 = vrot.lane.b32.xlu0 %v1998, 120
    %v2051 = vpop.permute.xlu0 %2050
    %2052 = vrot.lane.b32.xlu0 %v2000, 120
    %v2053 = vpop.permute.xlu0 %2052
    %2054 = vrot.lane.b32.xlu0 %v2002, 120
    %v2055 = vpop.permute.xlu0 %2054
    %2056 = vrot.lane.b32.xlu0 %v2004, 120
    %v2057 = vpop.permute.xlu0 %2056
    %2058 = vrot.lane.b32.xlu0 %v2003, 120
    %v2059 = vpop.permute.xlu0 %2058
    %2060 = vrot.lane.b32.xlu0 %v2007, 120
    %v2061 = vpop.permute.xlu0 %2060
    %2062 = vrot.lane.b32.xlu0 %v2009, 120
    %v2063 = vpop.permute.xlu0 %2062
    %2064 = vrot.lane.b32.xlu0 %v2011, 120
    %v2065 = vpop.permute.xlu0 %2064
    %2066 = vrot.lane.b32.xlu0 %v2013, 120
    %v2067 = vpop.permute.xlu0 %2066
    %2068 = vrot.lane.b32.xlu0 %v2015, 120
    %v2069 = vpop.permute.xlu0 %2068
    %2070 = vrot.lane.b32.xlu0 %v2017, 120
    %v2071 = vpop.permute.xlu0 %2070
    %2072 = vrot.lane.b32.xlu0 %v2019, 120
    %v2073 = vpop.permute.xlu0 %2072
    %2074 = vrot.lane.b32.xlu0 %v2021, 120
    %v2075 = vpop.permute.xlu0 %2074
    %2076 = vrot.lane.b32.xlu0 %v2023, 120
    %v2077 = vpop.permute.xlu0 %2076
    %2078 = vrot.lane.b32.xlu0 %v2025, 120
    %v2079 = vpop.permute.xlu0 %2078
    %2080 = vrot.lane.b32.xlu0 %v2027, 120
    %v2081 = vpop.permute.xlu0 %2080
    %2082 = vrot.lane.b32.xlu0 %v2029, 120
    %v2083 = vpop.permute.xlu0 %2082
    %2084 = vrot.lane.b32.xlu0 %v2031, 120
    %v2085 = vpop.permute.xlu0 %2084
    %2086 = vrot.lane.b32.xlu0 %v2030, 120
    %v2087 = vpop.permute.xlu0 %2086
    %v2116 = vadd.f32 %v1771, %v2033
    %v2117 = vadd.f32 %v1776, %v2035
    %v2118 = vadd.f32 %v1781, %v2037
    %v2119 = vadd.f32 %v1786, %v2039
    %v2120 = vadd.f32 %v1791, %v2041
    %v2121 = vadd.f32 %v1796, %v2043
    %v2122 = vadd.f32 %v1801, %v2045
    %v2123 = vadd.f32 %v1806, %v2047
    %v2124 = vadd.f32 %v1811, %v2049
    %v2125 = vadd.f32 %v1816, %v2051
    %v2126 = vadd.f32 %v1821, %v2053
    %v2127 = vadd.f32 %v1826, %v2055
    %v2128 = vadd.f32 %v1831, %v2057
    %v2129 = vadd.f32 %v1836, %v2059
    %v2130 = vadd.f32 %v1861, %v2061
    %v2131 = vadd.f32 %v1866, %v2063
    %v2132 = vadd.f32 %v1871, %v2065
    %v2133 = vadd.f32 %v1876, %v2067
    %v2134 = vadd.f32 %v1881, %v2069
    %v2135 = vadd.f32 %v1886, %v2071
    %v2136 = vadd.f32 %v1891, %v2073
    %v2137 = vadd.f32 %v1896, %v2075
    %v2138 = vadd.f32 %v1901, %v2077
    %v2139 = vadd.f32 %v1906, %v2079
    %v2140 = vadd.f32 %v1911, %v2081
    %v2141 = vadd.f32 %v1916, %v2083
    %v2142 = vadd.f32 %v1921, %v2085
    %v2143 = vadd.f32 %v1926, %v2087
    %vm2144 = vcmask 1045504
    %v2145 = vrot.slane %v1771, 2
    %v2146 = vrot.slane %v1776, 2
    %v2147 = vsel %vm2144, %v2145, %v2146
    %v2148 = vrot.slane %v1781, 2
    %v2149 = vsel %vm2144, %v2146, %v2148
    %v2150 = vrot.slane %v1786, 2
    %v2151 = vsel %vm2144, %v2148, %v2150
    %v2152 = vrot.slane %v1791, 2
    %v2153 = vsel %vm2144, %v2150, %v2152
    %v2154 = vrot.slane %v1796, 2
    %v2155 = vsel %vm2144, %v2152, %v2154
    %v2156 = vrot.slane %v1801, 2
    %v2157 = vsel %vm2144, %v2154, %v2156
    %v2158 = vrot.slane %v1806, 2
    %v2159 = vsel %vm2144, %v2156, %v2158
    %v2160 = vrot.slane %v1811, 2
    %v2161 = vsel %vm2144, %v2158, %v2160
    %v2162 = vrot.slane %v1816, 2
    %v2163 = vsel %vm2144, %v2160, %v2162
    %v2164 = vrot.slane %v1821, 2
    %v2165 = vsel %vm2144, %v2162, %v2164
    %v2166 = vrot.slane %v1826, 2
    %v2167 = vsel %vm2144, %v2164, %v2166
    %v2168 = vrot.slane %v1831, 2
    %v2169 = vsel %vm2144, %v2166, %v2168
    %v2170 = vrot.slane %v1836, 2
    %v2171 = vsel %vm2144, %v2168, %v2170
    %v2172 = vrot.slane %v1861, 2
    %v2173 = vrot.slane %v1866, 2
    %v2174 = vsel %vm2144, %v2172, %v2173
    %v2175 = vrot.slane %v1871, 2
    %v2176 = vsel %vm2144, %v2173, %v2175
    %v2177 = vrot.slane %v1876, 2
    %v2178 = vsel %vm2144, %v2175, %v2177
    %v2179 = vrot.slane %v1881, 2
    %v2180 = vsel %vm2144, %v2177, %v2179
    %v2181 = vrot.slane %v1886, 2
    %v2182 = vsel %vm2144, %v2179, %v2181
    %v2183 = vrot.slane %v1891, 2
    %v2184 = vsel %vm2144, %v2181, %v2183
    %v2185 = vrot.slane %v1896, 2
    %v2186 = vsel %vm2144, %v2183, %v2185
    %v2187 = vrot.slane %v1901, 2
    %v2188 = vsel %vm2144, %v2185, %v2187
    %v2189 = vrot.slane %v1906, 2
    %v2190 = vsel %vm2144, %v2187, %v2189
    %v2191 = vrot.slane %v1911, 2
    %v2192 = vsel %vm2144, %v2189, %v2191
    %v2193 = vrot.slane %v1916, 2
    %v2194 = vsel %vm2144, %v2191, %v2193
    %v2195 = vrot.slane %v1921, 2
    %v2196 = vsel %vm2144, %v2193, %v2195
    %v2197 = vrot.slane %v1926, 2
    %v2198 = vsel %vm2144, %v2195, %v2197
    %2199 = vrot.lane.b32.xlu0 %v2147, 112
    %v2200 = vpop.permute.xlu0 %2199
    %2201 = vrot.lane.b32.xlu0 %v2149, 112
    %v2202 = vpop.permute.xlu0 %2201
    %2203 = vrot.lane.b32.xlu0 %v2151, 112
    %v2204 = vpop.permute.xlu0 %2203
    %2205 = vrot.lane.b32.xlu0 %v2153, 112
    %v2206 = vpop.permute.xlu0 %2205
    %2207 = vrot.lane.b32.xlu0 %v2155, 112
    %v2208 = vpop.permute.xlu0 %2207
    %2209 = vrot.lane.b32.xlu0 %v2157, 112
    %v2210 = vpop.permute.xlu0 %2209
    %2211 = vrot.lane.b32.xlu0 %v2159, 112
    %v2212 = vpop.permute.xlu0 %2211
    %2213 = vrot.lane.b32.xlu0 %v2161, 112
    %v2214 = vpop.permute.xlu0 %2213
    %2215 = vrot.lane.b32.xlu0 %v2163, 112
    %v2216 = vpop.permute.xlu0 %2215
    %2217 = vrot.lane.b32.xlu0 %v2165, 112
    %v2218 = vpop.permute.xlu0 %2217
    %2219 = vrot.lane.b32.xlu0 %v2167, 112
    %v2220 = vpop.permute.xlu0 %2219
    %2221 = vrot.lane.b32.xlu0 %v2169, 112
    %v2222 = vpop.permute.xlu0 %2221
    %2223 = vrot.lane.b32.xlu0 %v2171, 112
    %v2224 = vpop.permute.xlu0 %2223
    %2225 = vrot.lane.b32.xlu0 %v2170, 112
    %v2226 = vpop.permute.xlu0 %2225
    %2227 = vrot.lane.b32.xlu0 %v2174, 112
    %v2228 = vpop.permute.xlu0 %2227
    %2229 = vrot.lane.b32.xlu0 %v2176, 112
    %v2230 = vpop.permute.xlu0 %2229
    %2231 = vrot.lane.b32.xlu0 %v2178, 112
    %v2232 = vpop.permute.xlu0 %2231
    %2233 = vrot.lane.b32.xlu0 %v2180, 112
    %v2234 = vpop.permute.xlu0 %2233
    %2235 = vrot.lane.b32.xlu0 %v2182, 112
    %v2236 = vpop.permute.xlu0 %2235
    %2237 = vrot.lane.b32.xlu0 %v2184, 112
    %v2238 = vpop.permute.xlu0 %2237
    %2239 = vrot.lane.b32.xlu0 %v2186, 112
    %v2240 = vpop.permute.xlu0 %2239
    %2241 = vrot.lane.b32.xlu0 %v2188, 112
    %v2242 = vpop.permute.xlu0 %2241
    %2243 = vrot.lane.b32.xlu0 %v2190, 112
    %v2244 = vpop.permute.xlu0 %2243
    %2245 = vrot.lane.b32.xlu0 %v2192, 112
    %v2246 = vpop.permute.xlu0 %2245
    %2247 = vrot.lane.b32.xlu0 %v2194, 112
    %v2248 = vpop.permute.xlu0 %2247
    %2249 = vrot.lane.b32.xlu0 %v2196, 112
    %v2250 = vpop.permute.xlu0 %2249
    %2251 = vrot.lane.b32.xlu0 %v2198, 112
    %v2252 = vpop.permute.xlu0 %2251
    %2253 = vrot.lane.b32.xlu0 %v2197, 112
    %v2254 = vpop.permute.xlu0 %2253
    %v2283 = vadd.f32 %v2116, %v2200
    %v2284 = vadd.f32 %v2117, %v2202
    %v2285 = vadd.f32 %v2118, %v2204
    %v2286 = vadd.f32 %v2119, %v2206
    %v2287 = vadd.f32 %v2120, %v2208
    %v2288 = vadd.f32 %v2121, %v2210
    %v2289 = vadd.f32 %v2122, %v2212
    %v2290 = vadd.f32 %v2123, %v2214
    %v2291 = vadd.f32 %v2124, %v2216
    %v2292 = vadd.f32 %v2125, %v2218
    %v2293 = vadd.f32 %v2126, %v2220
    %v2294 = vadd.f32 %v2127, %v2222
    %v2295 = vadd.f32 %v2128, %v2224
    %v2296 = vadd.f32 %v2129, %v2226
    %v2297 = vadd.f32 %v2130, %v2228
    %v2298 = vadd.f32 %v2131, %v2230
    %v2299 = vadd.f32 %v2132, %v2232
    %v2300 = vadd.f32 %v2133, %v2234
    %v2301 = vadd.f32 %v2134, %v2236
    %v2302 = vadd.f32 %v2135, %v2238
    %v2303 = vadd.f32 %v2136, %v2240
    %v2304 = vadd.f32 %v2137, %v2242
    %v2305 = vadd.f32 %v2138, %v2244
    %v2306 = vadd.f32 %v2139, %v2246
    %v2307 = vadd.f32 %v2140, %v2248
    %v2308 = vadd.f32 %v2141, %v2250
    %v2309 = vadd.f32 %v2142, %v2252
    %v2310 = vadd.f32 %v2143, %v2254
    %vm2311 = vcmask 1044480
    %v2312 = vrot.slane %v1771, 3
    %v2313 = vrot.slane %v1776, 3
    %v2314 = vsel %vm2311, %v2312, %v2313
    %v2315 = vrot.slane %v1781, 3
    %v2316 = vsel %vm2311, %v2313, %v2315
    %v2317 = vrot.slane %v1786, 3
    %v2318 = vsel %vm2311, %v2315, %v2317
    %v2319 = vrot.slane %v1791, 3
    %v2320 = vsel %vm2311, %v2317, %v2319
    %v2321 = vrot.slane %v1796, 3
    %v2322 = vsel %vm2311, %v2319, %v2321
    %v2323 = vrot.slane %v1801, 3
    %v2324 = vsel %vm2311, %v2321, %v2323
    %v2325 = vrot.slane %v1806, 3
    %v2326 = vsel %vm2311, %v2323, %v2325
    %v2327 = vrot.slane %v1811, 3
    %v2328 = vsel %vm2311, %v2325, %v2327
    %v2329 = vrot.slane %v1816, 3
    %v2330 = vsel %vm2311, %v2327, %v2329
    %v2331 = vrot.slane %v1821, 3
    %v2332 = vsel %vm2311, %v2329, %v2331
    %v2333 = vrot.slane %v1826, 3
    %v2334 = vsel %vm2311, %v2331, %v2333
    %v2335 = vrot.slane %v1831, 3
    %v2336 = vsel %vm2311, %v2333, %v2335
    %v2337 = vrot.slane %v1836, 3
    %v2338 = vsel %vm2311, %v2335, %v2337
    %v2339 = vrot.slane %v1861, 3
    %v2340 = vrot.slane %v1866, 3
    %v2341 = vsel %vm2311, %v2339, %v2340
    %v2342 = vrot.slane %v1871, 3
    %v2343 = vsel %vm2311, %v2340, %v2342
    %v2344 = vrot.slane %v1876, 3
    %v2345 = vsel %vm2311, %v2342, %v2344
    %v2346 = vrot.slane %v1881, 3
    %v2347 = vsel %vm2311, %v2344, %v2346
    %v2348 = vrot.slane %v1886, 3
    %v2349 = vsel %vm2311, %v2346, %v2348
    %v2350 = vrot.slane %v1891, 3
    %v2351 = vsel %vm2311, %v2348, %v2350
    %v2352 = vrot.slane %v1896, 3
    %v2353 = vsel %vm2311, %v2350, %v2352
    %v2354 = vrot.slane %v1901, 3
    %v2355 = vsel %vm2311, %v2352, %v2354
    %v2356 = vrot.slane %v1906, 3
    %v2357 = vsel %vm2311, %v2354, %v2356
    %v2358 = vrot.slane %v1911, 3
    %v2359 = vsel %vm2311, %v2356, %v2358
    %v2360 = vrot.slane %v1916, 3
    %v2361 = vsel %vm2311, %v2358, %v2360
    %v2362 = vrot.slane %v1921, 3
    %v2363 = vsel %vm2311, %v2360, %v2362
    %v2364 = vrot.slane %v1926, 3
    %v2365 = vsel %vm2311, %v2362, %v2364
    %2366 = vrot.lane.b32.xlu0 %v2314, 104
    %v2367 = vpop.permute.xlu0 %2366
    %2368 = vrot.lane.b32.xlu0 %v2316, 104
    %v2369 = vpop.permute.xlu0 %2368
    %2370 = vrot.lane.b32.xlu0 %v2318, 104
    %v2371 = vpop.permute.xlu0 %2370
    %2372 = vrot.lane.b32.xlu0 %v2320, 104
    %v2373 = vpop.permute.xlu0 %2372
    %2374 = vrot.lane.b32.xlu0 %v2322, 104
    %v2375 = vpop.permute.xlu0 %2374
    %2376 = vrot.lane.b32.xlu0 %v2324, 104
    %v2377 = vpop.permute.xlu0 %2376
    %2378 = vrot.lane.b32.xlu0 %v2326, 104
    %v2379 = vpop.permute.xlu0 %2378
    %2380 = vrot.lane.b32.xlu0 %v2328, 104
    %v2381 = vpop.permute.xlu0 %2380
    %2382 = vrot.lane.b32.xlu0 %v2330, 104
    %v2383 = vpop.permute.xlu0 %2382
    %2384 = vrot.lane.b32.xlu0 %v2332, 104
    %v2385 = vpop.permute.xlu0 %2384
    %2386 = vrot.lane.b32.xlu0 %v2334, 104
    %v2387 = vpop.permute.xlu0 %2386
    %2388 = vrot.lane.b32.xlu0 %v2336, 104
    %v2389 = vpop.permute.xlu0 %2388
    %2390 = vrot.lane.b32.xlu0 %v2338, 104
    %v2391 = vpop.permute.xlu0 %2390
    %2392 = vrot.lane.b32.xlu0 %v2337, 104
    %v2393 = vpop.permute.xlu0 %2392
    %2394 = vrot.lane.b32.xlu0 %v2341, 104
    %v2395 = vpop.permute.xlu0 %2394
    %2396 = vrot.lane.b32.xlu0 %v2343, 104
    %v2397 = vpop.permute.xlu0 %2396
    %2398 = vrot.lane.b32.xlu0 %v2345, 104
    %v2399 = vpop.permute.xlu0 %2398
    %2400 = vrot.lane.b32.xlu0 %v2347, 104
    %v2401 = vpop.permute.xlu0 %2400
    %2402 = vrot.lane.b32.xlu0 %v2349, 104
    %v2403 = vpop.permute.xlu0 %2402
    %2404 = vrot.lane.b32.xlu0 %v2351, 104
    %v2405 = vpop.permute.xlu0 %2404
    %2406 = vrot.lane.b32.xlu0 %v2353, 104
    %v2407 = vpop.permute.xlu0 %2406
    %2408 = vrot.lane.b32.xlu0 %v2355, 104
    %v2409 = vpop.permute.xlu0 %2408
    %2410 = vrot.lane.b32.xlu0 %v2357, 104
    %v2411 = vpop.permute.xlu0 %2410
    %2412 = vrot.lane.b32.xlu0 %v2359, 104
    %v2413 = vpop.permute.xlu0 %2412
    %2414 = vrot.lane.b32.xlu0 %v2361, 104
    %v2415 = vpop.permute.xlu0 %2414
    %2416 = vrot.lane.b32.xlu0 %v2363, 104
    %v2417 = vpop.permute.xlu0 %2416
    %2418 = vrot.lane.b32.xlu0 %v2365, 104
    %v2419 = vpop.permute.xlu0 %2418
    %2420 = vrot.lane.b32.xlu0 %v2364, 104
    %v2421 = vpop.permute.xlu0 %2420
    %v2450 = vadd.f32 %v2283, %v2367
    %v2451 = vadd.f32 %v2284, %v2369
    %v2452 = vadd.f32 %v2285, %v2371
    %v2453 = vadd.f32 %v2286, %v2373
    %v2454 = vadd.f32 %v2287, %v2375
    %v2455 = vadd.f32 %v2288, %v2377
    %v2456 = vadd.f32 %v2289, %v2379
    %v2457 = vadd.f32 %v2290, %v2381
    %v2458 = vadd.f32 %v2291, %v2383
    %v2459 = vadd.f32 %v2292, %v2385
    %v2460 = vadd.f32 %v2293, %v2387
    %v2461 = vadd.f32 %v2294, %v2389
    %v2462 = vadd.f32 %v2295, %v2391
    %v2463 = vadd.f32 %v2296, %v2393
    %v2464 = vadd.f32 %v2297, %v2395
    %v2465 = vadd.f32 %v2298, %v2397
    %v2466 = vadd.f32 %v2299, %v2399
    %v2467 = vadd.f32 %v2300, %v2401
    %v2468 = vadd.f32 %v2301, %v2403
    %v2469 = vadd.f32 %v2302, %v2405
    %v2470 = vadd.f32 %v2303, %v2407
    %v2471 = vadd.f32 %v2304, %v2409
    %v2472 = vadd.f32 %v2305, %v2411
    %v2473 = vadd.f32 %v2306, %v2413
    %v2474 = vadd.f32 %v2307, %v2415
    %v2475 = vadd.f32 %v2308, %v2417
    %v2476 = vadd.f32 %v2309, %v2419
    %v2477 = vadd.f32 %v2310, %v2421
    %vm2480 = vcmask 1043456
    %v2481 = vrot.slane %v1776, 4
    %v2482 = vrot.slane %v1781, 4
    %v2483 = vsel %vm2480, %v2481, %v2482
    %v2484 = vrot.slane %v1786, 4
    %v2485 = vsel %vm2480, %v2482, %v2484
    %v2486 = vrot.slane %v1791, 4
    %v2487 = vsel %vm2480, %v2484, %v2486
    %v2488 = vrot.slane %v1796, 4
    %v2489 = vsel %vm2480, %v2486, %v2488
    %v2490 = vrot.slane %v1801, 4
    %v2491 = vsel %vm2480, %v2488, %v2490
    %v2492 = vrot.slane %v1806, 4
    %v2493 = vsel %vm2480, %v2490, %v2492
    %v2494 = vrot.slane %v1811, 4
    %v2495 = vsel %vm2480, %v2492, %v2494
    %v2496 = vrot.slane %v1816, 4
    %v2497 = vsel %vm2480, %v2494, %v2496
    %v2498 = vrot.slane %v1821, 4
    %v2499 = vsel %vm2480, %v2496, %v2498
    %v2500 = vrot.slane %v1826, 4
    %v2501 = vsel %vm2480, %v2498, %v2500
    %v2502 = vrot.slane %v1831, 4
    %v2503 = vsel %vm2480, %v2500, %v2502
    %v2504 = vrot.slane %v1836, 4
    %v2505 = vsel %vm2480, %v2502, %v2504
    %v2506 = vrot.slane %v1841, 4
    %v2507 = vsel %vm2480, %v2504, %v2506
    %v2508 = vrot.slane %v1866, 4
    %v2509 = vrot.slane %v1871, 4
    %v2510 = vsel %vm2480, %v2508, %v2509
    %v2511 = vrot.slane %v1876, 4
    %v2512 = vsel %vm2480, %v2509, %v2511
    %v2513 = vrot.slane %v1881, 4
    %v2514 = vsel %vm2480, %v2511, %v2513
    %v2515 = vrot.slane %v1886, 4
    %v2516 = vsel %vm2480, %v2513, %v2515
    %v2517 = vrot.slane %v1891, 4
    %v2518 = vsel %vm2480, %v2515, %v2517
    %v2519 = vrot.slane %v1896, 4
    %v2520 = vsel %vm2480, %v2517, %v2519
    %v2521 = vrot.slane %v1901, 4
    %v2522 = vsel %vm2480, %v2519, %v2521
    %v2523 = vrot.slane %v1906, 4
    %v2524 = vsel %vm2480, %v2521, %v2523
    %v2525 = vrot.slane %v1911, 4
    %v2526 = vsel %vm2480, %v2523, %v2525
    %v2527 = vrot.slane %v1916, 4
    %v2528 = vsel %vm2480, %v2525, %v2527
    %v2529 = vrot.slane %v1921, 4
    %v2530 = vsel %vm2480, %v2527, %v2529
    %v2531 = vrot.slane %v1926, 4
    %v2532 = vsel %vm2480, %v2529, %v2531
    %v2533 = vrot.slane %v1931, 4
    %v2534 = vsel %vm2480, %v2531, %v2533
    %2535 = vrot.lane.b32.xlu0 %v2483, 96
    %v2536 = vpop.permute.xlu0 %2535
    %2537 = vrot.lane.b32.xlu0 %v2485, 96
    %v2538 = vpop.permute.xlu0 %2537
    %2539 = vrot.lane.b32.xlu0 %v2487, 96
    %v2540 = vpop.permute.xlu0 %2539
    %2541 = vrot.lane.b32.xlu0 %v2489, 96
    %v2542 = vpop.permute.xlu0 %2541
    %2543 = vrot.lane.b32.xlu0 %v2491, 96
    %v2544 = vpop.permute.xlu0 %2543
    %2545 = vrot.lane.b32.xlu0 %v2493, 96
    %v2546 = vpop.permute.xlu0 %2545
    %2547 = vrot.lane.b32.xlu0 %v2495, 96
    %v2548 = vpop.permute.xlu0 %2547
    %2549 = vrot.lane.b32.xlu0 %v2497, 96
    %v2550 = vpop.permute.xlu0 %2549
    %2551 = vrot.lane.b32.xlu0 %v2499, 96
    %v2552 = vpop.permute.xlu0 %2551
    %2553 = vrot.lane.b32.xlu0 %v2501, 96
    %v2554 = vpop.permute.xlu0 %2553
    %2555 = vrot.lane.b32.xlu0 %v2503, 96
    %v2556 = vpop.permute.xlu0 %2555
    %2557 = vrot.lane.b32.xlu0 %v2505, 96
    %v2558 = vpop.permute.xlu0 %2557
    %2559 = vrot.lane.b32.xlu0 %v2507, 96
    %v2560 = vpop.permute.xlu0 %2559
    %2561 = vrot.lane.b32.xlu0 %v2506, 96
    %v2562 = vpop.permute.xlu0 %2561
    %2563 = vrot.lane.b32.xlu0 %v2510, 96
    %v2564 = vpop.permute.xlu0 %2563
    %2565 = vrot.lane.b32.xlu0 %v2512, 96
    %v2566 = vpop.permute.xlu0 %2565
    %2567 = vrot.lane.b32.xlu0 %v2514, 96
    %v2568 = vpop.permute.xlu0 %2567
    %2569 = vrot.lane.b32.xlu0 %v2516, 96
    %v2570 = vpop.permute.xlu0 %2569
    %2571 = vrot.lane.b32.xlu0 %v2518, 96
    %v2572 = vpop.permute.xlu0 %2571
    %2573 = vrot.lane.b32.xlu0 %v2520, 96
    %v2574 = vpop.permute.xlu0 %2573
    %2575 = vrot.lane.b32.xlu0 %v2522, 96
    %v2576 = vpop.permute.xlu0 %2575
    %2577 = vrot.lane.b32.xlu0 %v2524, 96
    %v2578 = vpop.permute.xlu0 %2577
    %2579 = vrot.lane.b32.xlu0 %v2526, 96
    %v2580 = vpop.permute.xlu0 %2579
    %2581 = vrot.lane.b32.xlu0 %v2528, 96
    %v2582 = vpop.permute.xlu0 %2581
    %2583 = vrot.lane.b32.xlu0 %v2530, 96
    %v2584 = vpop.permute.xlu0 %2583
    %2585 = vrot.lane.b32.xlu0 %v2532, 96
    %v2586 = vpop.permute.xlu0 %2585
    %2587 = vrot.lane.b32.xlu0 %v2534, 96
    %v2588 = vpop.permute.xlu0 %2587
    %2589 = vrot.lane.b32.xlu0 %v2533, 96
    %v2590 = vpop.permute.xlu0 %2589
    %v2619 = vadd.f32 %v2450, %v2536
    %v2620 = vadd.f32 %v2451, %v2538
    %v2621 = vadd.f32 %v2452, %v2540
    %v2622 = vadd.f32 %v2453, %v2542
    %v2623 = vadd.f32 %v2454, %v2544
    %v2624 = vadd.f32 %v2455, %v2546
    %v2625 = vadd.f32 %v2456, %v2548
    %v2626 = vadd.f32 %v2457, %v2550
    %v2627 = vadd.f32 %v2458, %v2552
    %v2628 = vadd.f32 %v2459, %v2554
    %v2629 = vadd.f32 %v2460, %v2556
    %v2630 = vadd.f32 %v2461, %v2558
    %v2631 = vadd.f32 %v2462, %v2560
    %v2632 = vadd.f32 %v2463, %v2562
    %v2633 = vadd.f32 %v2464, %v2564
    %v2634 = vadd.f32 %v2465, %v2566
    %v2635 = vadd.f32 %v2466, %v2568
    %v2636 = vadd.f32 %v2467, %v2570
    %v2637 = vadd.f32 %v2468, %v2572
    %v2638 = vadd.f32 %v2469, %v2574
    %v2639 = vadd.f32 %v2470, %v2576
    %v2640 = vadd.f32 %v2471, %v2578
    %v2641 = vadd.f32 %v2472, %v2580
    %v2642 = vadd.f32 %v2473, %v2582
    %v2643 = vadd.f32 %v2474, %v2584
    %v2644 = vadd.f32 %v2475, %v2586
    %v2645 = vadd.f32 %v2476, %v2588
    %v2646 = vadd.f32 %v2477, %v2590
    %vm2647 = vcmask 1042432
    %v2648 = vrot.slane %v1776, 5
    %v2649 = vrot.slane %v1781, 5
    %v2650 = vsel %vm2647, %v2648, %v2649
    %v2651 = vrot.slane %v1786, 5
    %v2652 = vsel %vm2647, %v2649, %v2651
    %v2653 = vrot.slane %v1791, 5
    %v2654 = vsel %vm2647, %v2651, %v2653
    %v2655 = vrot.slane %v1796, 5
    %v2656 = vsel %vm2647, %v2653, %v2655
    %v2657 = vrot.slane %v1801, 5
    %v2658 = vsel %vm2647, %v2655, %v2657
    %v2659 = vrot.slane %v1806, 5
    %v2660 = vsel %vm2647, %v2657, %v2659
    %v2661 = vrot.slane %v1811, 5
    %v2662 = vsel %vm2647, %v2659, %v2661
    %v2663 = vrot.slane %v1816, 5
    %v2664 = vsel %vm2647, %v2661, %v2663
    %v2665 = vrot.slane %v1821, 5
    %v2666 = vsel %vm2647, %v2663, %v2665
    %v2667 = vrot.slane %v1826, 5
    %v2668 = vsel %vm2647, %v2665, %v2667
    %v2669 = vrot.slane %v1831, 5
    %v2670 = vsel %vm2647, %v2667, %v2669
    %v2671 = vrot.slane %v1836, 5
    %v2672 = vsel %vm2647, %v2669, %v2671
    %v2673 = vrot.slane %v1841, 5
    %v2674 = vsel %vm2647, %v2671, %v2673
    %v2675 = vrot.slane %v1866, 5
    %v2676 = vrot.slane %v1871, 5
    %v2677 = vsel %vm2647, %v2675, %v2676
    %v2678 = vrot.slane %v1876, 5
    %v2679 = vsel %vm2647, %v2676, %v2678
    %v2680 = vrot.slane %v1881, 5
    %v2681 = vsel %vm2647, %v2678, %v2680
    %v2682 = vrot.slane %v1886, 5
    %v2683 = vsel %vm2647, %v2680, %v2682
    %v2684 = vrot.slane %v1891, 5
    %v2685 = vsel %vm2647, %v2682, %v2684
    %v2686 = vrot.slane %v1896, 5
    %v2687 = vsel %vm2647, %v2684, %v2686
    %v2688 = vrot.slane %v1901, 5
    %v2689 = vsel %vm2647, %v2686, %v2688
    %v2690 = vrot.slane %v1906, 5
    %v2691 = vsel %vm2647, %v2688, %v2690
    %v2692 = vrot.slane %v1911, 5
    %v2693 = vsel %vm2647, %v2690, %v2692
    %v2694 = vrot.slane %v1916, 5
    %v2695 = vsel %vm2647, %v2692, %v2694
    %v2696 = vrot.slane %v1921, 5
    %v2697 = vsel %vm2647, %v2694, %v2696
    %v2698 = vrot.slane %v1926, 5
    %v2699 = vsel %vm2647, %v2696, %v2698
    %v2700 = vrot.slane %v1931, 5
    %v2701 = vsel %vm2647, %v2698, %v2700
    %2702 = vrot.lane.b32.xlu0 %v2650, 88
    %v2703 = vpop.permute.xlu0 %2702
    %2704 = vrot.lane.b32.xlu0 %v2652, 88
    %v2705 = vpop.permute.xlu0 %2704
    %2706 = vrot.lane.b32.xlu0 %v2654, 88
    %v2707 = vpop.permute.xlu0 %2706
    %2708 = vrot.lane.b32.xlu0 %v2656, 88
    %v2709 = vpop.permute.xlu0 %2708
    %2710 = vrot.lane.b32.xlu0 %v2658, 88
    %v2711 = vpop.permute.xlu0 %2710
    %2712 = vrot.lane.b32.xlu0 %v2660, 88
    %v2713 = vpop.permute.xlu0 %2712
    %2714 = vrot.lane.b32.xlu0 %v2662, 88
    %v2715 = vpop.permute.xlu0 %2714
    %2716 = vrot.lane.b32.xlu0 %v2664, 88
    %v2717 = vpop.permute.xlu0 %2716
    %2718 = vrot.lane.b32.xlu0 %v2666, 88
    %v2719 = vpop.permute.xlu0 %2718
    %2720 = vrot.lane.b32.xlu0 %v2668, 88
    %v2721 = vpop.permute.xlu0 %2720
    %2722 = vrot.lane.b32.xlu0 %v2670, 88
    %v2723 = vpop.permute.xlu0 %2722
    %2724 = vrot.lane.b32.xlu0 %v2672, 88
    %v2725 = vpop.permute.xlu0 %2724
    %2726 = vrot.lane.b32.xlu0 %v2674, 88
    %v2727 = vpop.permute.xlu0 %2726
    %2728 = vrot.lane.b32.xlu0 %v2673, 88
    %v2729 = vpop.permute.xlu0 %2728
    %2730 = vrot.lane.b32.xlu0 %v2677, 88
    %v2731 = vpop.permute.xlu0 %2730
    %2732 = vrot.lane.b32.xlu0 %v2679, 88
    %v2733 = vpop.permute.xlu0 %2732
    %2734 = vrot.lane.b32.xlu0 %v2681, 88
    %v2735 = vpop.permute.xlu0 %2734
    %2736 = vrot.lane.b32.xlu0 %v2683, 88
    %v2737 = vpop.permute.xlu0 %2736
    %2738 = vrot.lane.b32.xlu0 %v2685, 88
    %v2739 = vpop.permute.xlu0 %2738
    %2740 = vrot.lane.b32.xlu0 %v2687, 88
    %v2741 = vpop.permute.xlu0 %2740
    %2742 = vrot.lane.b32.xlu0 %v2689, 88
    %v2743 = vpop.permute.xlu0 %2742
    %2744 = vrot.lane.b32.xlu0 %v2691, 88
    %v2745 = vpop.permute.xlu0 %2744
    %2746 = vrot.lane.b32.xlu0 %v2693, 88
    %v2747 = vpop.permute.xlu0 %2746
    %2748 = vrot.lane.b32.xlu0 %v2695, 88
    %v2749 = vpop.permute.xlu0 %2748
    %2750 = vrot.lane.b32.xlu0 %v2697, 88
    %v2751 = vpop.permute.xlu0 %2750
    %2752 = vrot.lane.b32.xlu0 %v2699, 88
    %v2753 = vpop.permute.xlu0 %2752
    %2754 = vrot.lane.b32.xlu0 %v2701, 88
    %v2755 = vpop.permute.xlu0 %2754
    %2756 = vrot.lane.b32.xlu0 %v2700, 88
    %v2757 = vpop.permute.xlu0 %2756
    %v2786 = vadd.f32 %v2619, %v2703
    %v2787 = vadd.f32 %v2620, %v2705
    %v2788 = vadd.f32 %v2621, %v2707
    %v2789 = vadd.f32 %v2622, %v2709
    %v2790 = vadd.f32 %v2623, %v2711
    %v2791 = vadd.f32 %v2624, %v2713
    %v2792 = vadd.f32 %v2625, %v2715
    %v2793 = vadd.f32 %v2626, %v2717
    %v2794 = vadd.f32 %v2627, %v2719
    %v2795 = vadd.f32 %v2628, %v2721
    %v2796 = vadd.f32 %v2629, %v2723
    %v2797 = vadd.f32 %v2630, %v2725
    %v2798 = vadd.f32 %v2631, %v2727
    %v2799 = vadd.f32 %v2632, %v2729
    %v2800 = vadd.f32 %v2633, %v2731
    %v2801 = vadd.f32 %v2634, %v2733
    %v2802 = vadd.f32 %v2635, %v2735
    %v2803 = vadd.f32 %v2636, %v2737
    %v2804 = vadd.f32 %v2637, %v2739
    %v2805 = vadd.f32 %v2638, %v2741
    %v2806 = vadd.f32 %v2639, %v2743
    %v2807 = vadd.f32 %v2640, %v2745
    %v2808 = vadd.f32 %v2641, %v2747
    %v2809 = vadd.f32 %v2642, %v2749
    %v2810 = vadd.f32 %v2643, %v2751
    %v2811 = vadd.f32 %v2644, %v2753
    %v2812 = vadd.f32 %v2645, %v2755
    %v2813 = vadd.f32 %v2646, %v2757
    %vm2814 = vcmask 1041408
    %v2815 = vrot.slane %v1776, 6
    %v2816 = vrot.slane %v1781, 6
    %v2817 = vsel %vm2814, %v2815, %v2816
    %v2818 = vrot.slane %v1786, 6
    %v2819 = vsel %vm2814, %v2816, %v2818
    %v2820 = vrot.slane %v1791, 6
    %v2821 = vsel %vm2814, %v2818, %v2820
    %v2822 = vrot.slane %v1796, 6
    %v2823 = vsel %vm2814, %v2820, %v2822
    %v2824 = vrot.slane %v1801, 6
    %v2825 = vsel %vm2814, %v2822, %v2824
    %v2826 = vrot.slane %v1806, 6
    %v2827 = vsel %vm2814, %v2824, %v2826
    %v2828 = vrot.slane %v1811, 6
    %v2829 = vsel %vm2814, %v2826, %v2828
    %v2830 = vrot.slane %v1816, 6
    %v2831 = vsel %vm2814, %v2828, %v2830
    %v2832 = vrot.slane %v1821, 6
    %v2833 = vsel %vm2814, %v2830, %v2832
    %v2834 = vrot.slane %v1826, 6
    %v2835 = vsel %vm2814, %v2832, %v2834
    %v2836 = vrot.slane %v1831, 6
    %v2837 = vsel %vm2814, %v2834, %v2836
    %v2838 = vrot.slane %v1836, 6
    %v2839 = vsel %vm2814, %v2836, %v2838
    %v2840 = vrot.slane %v1841, 6
    %v2841 = vsel %vm2814, %v2838, %v2840
    %v2842 = vrot.slane %v1866, 6
    %v2843 = vrot.slane %v1871, 6
    %v2844 = vsel %vm2814, %v2842, %v2843
    %v2845 = vrot.slane %v1876, 6
    %v2846 = vsel %vm2814, %v2843, %v2845
    %v2847 = vrot.slane %v1881, 6
    %v2848 = vsel %vm2814, %v2845, %v2847
    %v2849 = vrot.slane %v1886, 6
    %v2850 = vsel %vm2814, %v2847, %v2849
    %v2851 = vrot.slane %v1891, 6
    %v2852 = vsel %vm2814, %v2849, %v2851
    %v2853 = vrot.slane %v1896, 6
    %v2854 = vsel %vm2814, %v2851, %v2853
    %v2855 = vrot.slane %v1901, 6
    %v2856 = vsel %vm2814, %v2853, %v2855
    %v2857 = vrot.slane %v1906, 6
    %v2858 = vsel %vm2814, %v2855, %v2857
    %v2859 = vrot.slane %v1911, 6
    %v2860 = vsel %vm2814, %v2857, %v2859
    %v2861 = vrot.slane %v1916, 6
    %v2862 = vsel %vm2814, %v2859, %v2861
    %v2863 = vrot.slane %v1921, 6
    %v2864 = vsel %vm2814, %v2861, %v2863
    %v2865 = vrot.slane %v1926, 6
    %v2866 = vsel %vm2814, %v2863, %v2865
    %v2867 = vrot.slane %v1931, 6
    %v2868 = vsel %vm2814, %v2865, %v2867
    %2869 = vrot.lane.b32.xlu0 %v2817, 80
    %v2870 = vpop.permute.xlu0 %2869
    %2871 = vrot.lane.b32.xlu0 %v2819, 80
    %v2872 = vpop.permute.xlu0 %2871
    %2873 = vrot.lane.b32.xlu0 %v2821, 80
    %v2874 = vpop.permute.xlu0 %2873
    %2875 = vrot.lane.b32.xlu0 %v2823, 80
    %v2876 = vpop.permute.xlu0 %2875
    %2877 = vrot.lane.b32.xlu0 %v2825, 80
    %v2878 = vpop.permute.xlu0 %2877
    %2879 = vrot.lane.b32.xlu0 %v2827, 80
    %v2880 = vpop.permute.xlu0 %2879
    %2881 = vrot.lane.b32.xlu0 %v2829, 80
    %v2882 = vpop.permute.xlu0 %2881
    %2883 = vrot.lane.b32.xlu0 %v2831, 80
    %v2884 = vpop.permute.xlu0 %2883
    %2885 = vrot.lane.b32.xlu0 %v2833, 80
    %v2886 = vpop.permute.xlu0 %2885
    %2887 = vrot.lane.b32.xlu0 %v2835, 80
    %v2888 = vpop.permute.xlu0 %2887
    %2889 = vrot.lane.b32.xlu0 %v2837, 80
    %v2890 = vpop.permute.xlu0 %2889
    %2891 = vrot.lane.b32.xlu0 %v2839, 80
    %v2892 = vpop.permute.xlu0 %2891
    %2893 = vrot.lane.b32.xlu0 %v2841, 80
    %v2894 = vpop.permute.xlu0 %2893
    %2895 = vrot.lane.b32.xlu0 %v2840, 80
    %v2896 = vpop.permute.xlu0 %2895
    %2897 = vrot.lane.b32.xlu0 %v2844, 80
    %v2898 = vpop.permute.xlu0 %2897
    %2899 = vrot.lane.b32.xlu0 %v2846, 80
    %v2900 = vpop.permute.xlu0 %2899
    %2901 = vrot.lane.b32.xlu0 %v2848, 80
    %v2902 = vpop.permute.xlu0 %2901
    %2903 = vrot.lane.b32.xlu0 %v2850, 80
    %v2904 = vpop.permute.xlu0 %2903
    %2905 = vrot.lane.b32.xlu0 %v2852, 80
    %v2906 = vpop.permute.xlu0 %2905
    %2907 = vrot.lane.b32.xlu0 %v2854, 80
    %v2908 = vpop.permute.xlu0 %2907
    %2909 = vrot.lane.b32.xlu0 %v2856, 80
    %v2910 = vpop.permute.xlu0 %2909
    %2911 = vrot.lane.b32.xlu0 %v2858, 80
    %v2912 = vpop.permute.xlu0 %2911
    %2913 = vrot.lane.b32.xlu0 %v2860, 80
    %v2914 = vpop.permute.xlu0 %2913
    %2915 = vrot.lane.b32.xlu0 %v2862, 80
    %v2916 = vpop.permute.xlu0 %2915
    %2917 = vrot.lane.b32.xlu0 %v2864, 80
    %v2918 = vpop.permute.xlu0 %2917
    %2919 = vrot.lane.b32.xlu0 %v2866, 80
    %v2920 = vpop.permute.xlu0 %2919
    %2921 = vrot.lane.b32.xlu0 %v2868, 80
    %v2922 = vpop.permute.xlu0 %2921
    %2923 = vrot.lane.b32.xlu0 %v2867, 80
    %v2924 = vpop.permute.xlu0 %2923
    %v2953 = vadd.f32 %v2786, %v2870
    %v2954 = vadd.f32 %v2787, %v2872
    %v2955 = vadd.f32 %v2788, %v2874
    %v2956 = vadd.f32 %v2789, %v2876
    %v2957 = vadd.f32 %v2790, %v2878
    %v2958 = vadd.f32 %v2791, %v2880
    %v2959 = vadd.f32 %v2792, %v2882
    %v2960 = vadd.f32 %v2793, %v2884
    %v2961 = vadd.f32 %v2794, %v2886
    %v2962 = vadd.f32 %v2795, %v2888
    %v2963 = vadd.f32 %v2796, %v2890
    %v2964 = vadd.f32 %v2797, %v2892
    %v2965 = vadd.f32 %v2798, %v2894
    %v2966 = vadd.f32 %v2799, %v2896
    %v2967 = vadd.f32 %v2800, %v2898
    %v2968 = vadd.f32 %v2801, %v2900
    %v2969 = vadd.f32 %v2802, %v2902
    %v2970 = vadd.f32 %v2803, %v2904
    %v2971 = vadd.f32 %v2804, %v2906
    %v2972 = vadd.f32 %v2805, %v2908
    %v2973 = vadd.f32 %v2806, %v2910
    %v2974 = vadd.f32 %v2807, %v2912
    %v2975 = vadd.f32 %v2808, %v2914
    %v2976 = vadd.f32 %v2809, %v2916
    %v2977 = vadd.f32 %v2810, %v2918
    %v2978 = vadd.f32 %v2811, %v2920
    %v2979 = vadd.f32 %v2812, %v2922
    %v2980 = vadd.f32 %v2813, %v2924
    %vm2981 = vcmask 1040384
    %v2982 = vrot.slane %v1776, 7
    %v2983 = vrot.slane %v1781, 7
    %v2984 = vsel %vm2981, %v2982, %v2983
    %v2985 = vrot.slane %v1786, 7
    %v2986 = vsel %vm2981, %v2983, %v2985
    %v2987 = vrot.slane %v1791, 7
    %v2988 = vsel %vm2981, %v2985, %v2987
    %v2989 = vrot.slane %v1796, 7
    %v2990 = vsel %vm2981, %v2987, %v2989
    %v2991 = vrot.slane %v1801, 7
    %v2992 = vsel %vm2981, %v2989, %v2991
    %v2993 = vrot.slane %v1806, 7
    %v2994 = vsel %vm2981, %v2991, %v2993
    %v2995 = vrot.slane %v1811, 7
    %v2996 = vsel %vm2981, %v2993, %v2995
    %v2997 = vrot.slane %v1816, 7
    %v2998 = vsel %vm2981, %v2995, %v2997
    %v2999 = vrot.slane %v1821, 7
    %v3000 = vsel %vm2981, %v2997, %v2999
    %v3001 = vrot.slane %v1826, 7
    %v3002 = vsel %vm2981, %v2999, %v3001
    %v3003 = vrot.slane %v1831, 7
    %v3004 = vsel %vm2981, %v3001, %v3003
    %v3005 = vrot.slane %v1836, 7
    %v3006 = vsel %vm2981, %v3003, %v3005
    %v3007 = vrot.slane %v1841, 7
    %v3008 = vsel %vm2981, %v3005, %v3007
    %v3009 = vrot.slane %v1866, 7
    %v3010 = vrot.slane %v1871, 7
    %v3011 = vsel %vm2981, %v3009, %v3010
    %v3012 = vrot.slane %v1876, 7
    %v3013 = vsel %vm2981, %v3010, %v3012
    %v3014 = vrot.slane %v1881, 7
    %v3015 = vsel %vm2981, %v3012, %v3014
    %v3016 = vrot.slane %v1886, 7
    %v3017 = vsel %vm2981, %v3014, %v3016
    %v3018 = vrot.slane %v1891, 7
    %v3019 = vsel %vm2981, %v3016, %v3018
    %v3020 = vrot.slane %v1896, 7
    %v3021 = vsel %vm2981, %v3018, %v3020
    %v3022 = vrot.slane %v1901, 7
    %v3023 = vsel %vm2981, %v3020, %v3022
    %v3024 = vrot.slane %v1906, 7
    %v3025 = vsel %vm2981, %v3022, %v3024
    %v3026 = vrot.slane %v1911, 7
    %v3027 = vsel %vm2981, %v3024, %v3026
    %v3028 = vrot.slane %v1916, 7
    %v3029 = vsel %vm2981, %v3026, %v3028
    %v3030 = vrot.slane %v1921, 7
    %v3031 = vsel %vm2981, %v3028, %v3030
    %v3032 = vrot.slane %v1926, 7
    %v3033 = vsel %vm2981, %v3030, %v3032
    %v3034 = vrot.slane %v1931, 7
    %v3035 = vsel %vm2981, %v3032, %v3034
    %3036 = vrot.lane.b32.xlu0 %v2984, 72
    %v3037 = vpop.permute.xlu0 %3036
    %3038 = vrot.lane.b32.xlu0 %v2986, 72
    %v3039 = vpop.permute.xlu0 %3038
    %3040 = vrot.lane.b32.xlu0 %v2988, 72
    %v3041 = vpop.permute.xlu0 %3040
    %3042 = vrot.lane.b32.xlu0 %v2990, 72
    %v3043 = vpop.permute.xlu0 %3042
    %3044 = vrot.lane.b32.xlu0 %v2992, 72
    %v3045 = vpop.permute.xlu0 %3044
    %3046 = vrot.lane.b32.xlu0 %v2994, 72
    %v3047 = vpop.permute.xlu0 %3046
    %3048 = vrot.lane.b32.xlu0 %v2996, 72
    %v3049 = vpop.permute.xlu0 %3048
    %3050 = vrot.lane.b32.xlu0 %v2998, 72
    %v3051 = vpop.permute.xlu0 %3050
    %3052 = vrot.lane.b32.xlu0 %v3000, 72
    %v3053 = vpop.permute.xlu0 %3052
    %3054 = vrot.lane.b32.xlu0 %v3002, 72
    %v3055 = vpop.permute.xlu0 %3054
    %3056 = vrot.lane.b32.xlu0 %v3004, 72
    %v3057 = vpop.permute.xlu0 %3056
    %3058 = vrot.lane.b32.xlu0 %v3006, 72
    %v3059 = vpop.permute.xlu0 %3058
    %3060 = vrot.lane.b32.xlu0 %v3008, 72
    %v3061 = vpop.permute.xlu0 %3060
    %3062 = vrot.lane.b32.xlu0 %v3007, 72
    %v3063 = vpop.permute.xlu0 %3062
    %3064 = vrot.lane.b32.xlu0 %v3011, 72
    %v3065 = vpop.permute.xlu0 %3064
    %3066 = vrot.lane.b32.xlu0 %v3013, 72
    %v3067 = vpop.permute.xlu0 %3066
    %3068 = vrot.lane.b32.xlu0 %v3015, 72
    %v3069 = vpop.permute.xlu0 %3068
    %3070 = vrot.lane.b32.xlu0 %v3017, 72
    %v3071 = vpop.permute.xlu0 %3070
    %3072 = vrot.lane.b32.xlu0 %v3019, 72
    %v3073 = vpop.permute.xlu0 %3072
    %3074 = vrot.lane.b32.xlu0 %v3021, 72
    %v3075 = vpop.permute.xlu0 %3074
    %3076 = vrot.lane.b32.xlu0 %v3023, 72
    %v3077 = vpop.permute.xlu0 %3076
    %3078 = vrot.lane.b32.xlu0 %v3025, 72
    %v3079 = vpop.permute.xlu0 %3078
    %3080 = vrot.lane.b32.xlu0 %v3027, 72
    %v3081 = vpop.permute.xlu0 %3080
    %3082 = vrot.lane.b32.xlu0 %v3029, 72
    %v3083 = vpop.permute.xlu0 %3082
    %3084 = vrot.lane.b32.xlu0 %v3031, 72
    %v3085 = vpop.permute.xlu0 %3084
    %3086 = vrot.lane.b32.xlu0 %v3033, 72
    %v3087 = vpop.permute.xlu0 %3086
    %3088 = vrot.lane.b32.xlu0 %v3035, 72
    %v3089 = vpop.permute.xlu0 %3088
    %3090 = vrot.lane.b32.xlu0 %v3034, 72
    %v3091 = vpop.permute.xlu0 %3090
    %v3120 = vadd.f32 %v2953, %v3037
    %v3121 = vadd.f32 %v2954, %v3039
    %v3122 = vadd.f32 %v2955, %v3041
    %v3123 = vadd.f32 %v2956, %v3043
    %v3124 = vadd.f32 %v2957, %v3045
    %v3125 = vadd.f32 %v2958, %v3047
    %v3126 = vadd.f32 %v2959, %v3049
    %v3127 = vadd.f32 %v2960, %v3051
    %v3128 = vadd.f32 %v2961, %v3053
    %v3129 = vadd.f32 %v2962, %v3055
    %v3130 = vadd.f32 %v2963, %v3057
    %v3131 = vadd.f32 %v2964, %v3059
    %v3132 = vadd.f32 %v2965, %v3061
    %v3133 = vadd.f32 %v2966, %v3063
    %v3134 = vadd.f32 %v2967, %v3065
    %v3135 = vadd.f32 %v2968, %v3067
    %v3136 = vadd.f32 %v2969, %v3069
    %v3137 = vadd.f32 %v2970, %v3071
    %v3138 = vadd.f32 %v2971, %v3073
    %v3139 = vadd.f32 %v2972, %v3075
    %v3140 = vadd.f32 %v2973, %v3077
    %v3141 = vadd.f32 %v2974, %v3079
    %v3142 = vadd.f32 %v2975, %v3081
    %v3143 = vadd.f32 %v2976, %v3083
    %v3144 = vadd.f32 %v2977, %v3085
    %v3145 = vadd.f32 %v2978, %v3087
    %v3146 = vadd.f32 %v2979, %v3089
    %v3147 = vadd.f32 %v2980, %v3091
    %3152 = vrot.lane.b32.xlu0 %v1786, 64
    %v3153 = vpop.permute.xlu0 %3152
    %3154 = vrot.lane.b32.xlu0 %v1791, 64
    %v3155 = vpop.permute.xlu0 %3154
    %3156 = vrot.lane.b32.xlu0 %v1796, 64
    %v3157 = vpop.permute.xlu0 %3156
    %3158 = vrot.lane.b32.xlu0 %v1801, 64
    %v3159 = vpop.permute.xlu0 %3158
    %3160 = vrot.lane.b32.xlu0 %v1806, 64
    %v3161 = vpop.permute.xlu0 %3160
    %3162 = vrot.lane.b32.xlu0 %v1811, 64
    %v3163 = vpop.permute.xlu0 %3162
    %3164 = vrot.lane.b32.xlu0 %v1816, 64
    %v3165 = vpop.permute.xlu0 %3164
    %3166 = vrot.lane.b32.xlu0 %v1821, 64
    %v3167 = vpop.permute.xlu0 %3166
    %3168 = vrot.lane.b32.xlu0 %v1826, 64
    %v3169 = vpop.permute.xlu0 %3168
    %3170 = vrot.lane.b32.xlu0 %v1831, 64
    %v3171 = vpop.permute.xlu0 %3170
    %3172 = vrot.lane.b32.xlu0 %v1836, 64
    %v3173 = vpop.permute.xlu0 %3172
    %3174 = vrot.lane.b32.xlu0 %v1841, 64
    %v3175 = vpop.permute.xlu0 %3174
    %3176 = vrot.lane.b32.xlu0 %v1846, 64
    %v3177 = vpop.permute.xlu0 %3176
    %3178 = vrot.lane.b32.xlu0 %v1851, 64
    %v3179 = vpop.permute.xlu0 %3178
    %3180 = vrot.lane.b32.xlu0 %v1876, 64
    %v3181 = vpop.permute.xlu0 %3180
    %3182 = vrot.lane.b32.xlu0 %v1881, 64
    %v3183 = vpop.permute.xlu0 %3182
    %3184 = vrot.lane.b32.xlu0 %v1886, 64
    %v3185 = vpop.permute.xlu0 %3184
    %3186 = vrot.lane.b32.xlu0 %v1891, 64
    %v3187 = vpop.permute.xlu0 %3186
    %3188 = vrot.lane.b32.xlu0 %v1896, 64
    %v3189 = vpop.permute.xlu0 %3188
    %3190 = vrot.lane.b32.xlu0 %v1901, 64
    %v3191 = vpop.permute.xlu0 %3190
    %3192 = vrot.lane.b32.xlu0 %v1906, 64
    %v3193 = vpop.permute.xlu0 %3192
    %3194 = vrot.lane.b32.xlu0 %v1911, 64
    %v3195 = vpop.permute.xlu0 %3194
    %3196 = vrot.lane.b32.xlu0 %v1916, 64
    %v3197 = vpop.permute.xlu0 %3196
    %3198 = vrot.lane.b32.xlu0 %v1921, 64
    %v3199 = vpop.permute.xlu0 %3198
    %3200 = vrot.lane.b32.xlu0 %v1926, 64
    %v3201 = vpop.permute.xlu0 %3200
    %3202 = vrot.lane.b32.xlu0 %v1931, 64
    %v3203 = vpop.permute.xlu0 %3202
    %3204 = vrot.lane.b32.xlu0 %v1936, 64
    %v3205 = vpop.permute.xlu0 %3204
    %3206 = vrot.lane.b32.xlu0 %v1941, 64
    %v3207 = vpop.permute.xlu0 %3206
    %v3236 = vadd.f32 %v3120, %v3153
    %v3237 = vadd.f32 %v3121, %v3155
    %v3238 = vadd.f32 %v3122, %v3157
    %v3239 = vadd.f32 %v3123, %v3159
    %v3240 = vadd.f32 %v3124, %v3161
    %v3241 = vadd.f32 %v3125, %v3163
    %v3242 = vadd.f32 %v3126, %v3165
    %v3243 = vadd.f32 %v3127, %v3167
    %v3244 = vadd.f32 %v3128, %v3169
    %v3245 = vadd.f32 %v3129, %v3171
    %v3246 = vadd.f32 %v3130, %v3173
    %v3247 = vadd.f32 %v3131, %v3175
    %v3248 = vadd.f32 %v3132, %v3177
    %v3249 = vadd.f32 %v3133, %v3179
    %v3250 = vadd.f32 %v3134, %v3181
    %v3251 = vadd.f32 %v3135, %v3183
    %v3252 = vadd.f32 %v3136, %v3185
    %v3253 = vadd.f32 %v3137, %v3187
    %v3254 = vadd.f32 %v3138, %v3189
    %v3255 = vadd.f32 %v3139, %v3191
    %v3256 = vadd.f32 %v3140, %v3193
    %v3257 = vadd.f32 %v3141, %v3195
    %v3258 = vadd.f32 %v3142, %v3197
    %v3259 = vadd.f32 %v3143, %v3199
    %v3260 = vadd.f32 %v3144, %v3201
    %v3261 = vadd.f32 %v3145, %v3203
    %v3262 = vadd.f32 %v3146, %v3205
    %v3263 = vadd.f32 %v3147, %v3207
    %v3264 = vrot.slane %v1841, 1
    %v3265 = vsel %vm1977, %v2003, %v3264
    %v3266 = vrot.slane %v1846, 1
    %v3267 = vsel %vm1977, %v3264, %v3266
    %v3268 = vrot.slane %v1851, 1
    %v3269 = vsel %vm1977, %v3266, %v3268
    %v3270 = vrot.slane %v1931, 1
    %v3271 = vsel %vm1977, %v2030, %v3270
    %v3272 = vrot.slane %v1936, 1
    %v3273 = vsel %vm1977, %v3270, %v3272
    %v3274 = vrot.slane %v1941, 1
    %v3275 = vsel %vm1977, %v3272, %v3274
    %3276 = vrot.lane.b32.xlu0 %v1986, 56
    %v3277 = vpop.permute.xlu0 %3276
    %3278 = vrot.lane.b32.xlu0 %v1988, 56
    %v3279 = vpop.permute.xlu0 %3278
    %3280 = vrot.lane.b32.xlu0 %v1990, 56
    %v3281 = vpop.permute.xlu0 %3280
    %3282 = vrot.lane.b32.xlu0 %v1992, 56
    %v3283 = vpop.permute.xlu0 %3282
    %3284 = vrot.lane.b32.xlu0 %v1994, 56
    %v3285 = vpop.permute.xlu0 %3284
    %3286 = vrot.lane.b32.xlu0 %v1996, 56
    %v3287 = vpop.permute.xlu0 %3286
    %3288 = vrot.lane.b32.xlu0 %v1998, 56
    %v3289 = vpop.permute.xlu0 %3288
    %3290 = vrot.lane.b32.xlu0 %v2000, 56
    %v3291 = vpop.permute.xlu0 %3290
    %3292 = vrot.lane.b32.xlu0 %v2002, 56
    %v3293 = vpop.permute.xlu0 %3292
    %3294 = vrot.lane.b32.xlu0 %v2004, 56
    %v3295 = vpop.permute.xlu0 %3294
    %3296 = vrot.lane.b32.xlu0 %v3265, 56
    %v3297 = vpop.permute.xlu0 %3296
    %3298 = vrot.lane.b32.xlu0 %v3267, 56
    %v3299 = vpop.permute.xlu0 %3298
    %3300 = vrot.lane.b32.xlu0 %v3269, 56
    %v3301 = vpop.permute.xlu0 %3300
    %3302 = vrot.lane.b32.xlu0 %v3268, 56
    %v3303 = vpop.permute.xlu0 %3302
    %3304 = vrot.lane.b32.xlu0 %v2013, 56
    %v3305 = vpop.permute.xlu0 %3304
    %3306 = vrot.lane.b32.xlu0 %v2015, 56
    %v3307 = vpop.permute.xlu0 %3306
    %3308 = vrot.lane.b32.xlu0 %v2017, 56
    %v3309 = vpop.permute.xlu0 %3308
    %3310 = vrot.lane.b32.xlu0 %v2019, 56
    %v3311 = vpop.permute.xlu0 %3310
    %3312 = vrot.lane.b32.xlu0 %v2021, 56
    %v3313 = vpop.permute.xlu0 %3312
    %3314 = vrot.lane.b32.xlu0 %v2023, 56
    %v3315 = vpop.permute.xlu0 %3314
    %3316 = vrot.lane.b32.xlu0 %v2025, 56
    %v3317 = vpop.permute.xlu0 %3316
    %3318 = vrot.lane.b32.xlu0 %v2027, 56
    %v3319 = vpop.permute.xlu0 %3318
    %3320 = vrot.lane.b32.xlu0 %v2029, 56
    %v3321 = vpop.permute.xlu0 %3320
    %3322 = vrot.lane.b32.xlu0 %v2031, 56
    %v3323 = vpop.permute.xlu0 %3322
    %3324 = vrot.lane.b32.xlu0 %v3271, 56
    %v3325 = vpop.permute.xlu0 %3324
    %3326 = vrot.lane.b32.xlu0 %v3273, 56
    %v3327 = vpop.permute.xlu0 %3326
    %3328 = vrot.lane.b32.xlu0 %v3275, 56
    %v3329 = vpop.permute.xlu0 %3328
    %3330 = vrot.lane.b32.xlu0 %v3274, 56
    %v3331 = vpop.permute.xlu0 %3330
    %v3360 = vadd.f32 %v3236, %v3277
    %v3361 = vadd.f32 %v3237, %v3279
    %v3362 = vadd.f32 %v3238, %v3281
    %v3363 = vadd.f32 %v3239, %v3283
    %v3364 = vadd.f32 %v3240, %v3285
    %v3365 = vadd.f32 %v3241, %v3287
    %v3366 = vadd.f32 %v3242, %v3289
    %v3367 = vadd.f32 %v3243, %v3291
    %v3368 = vadd.f32 %v3244, %v3293
    %v3369 = vadd.f32 %v3245, %v3295
    %v3370 = vadd.f32 %v3246, %v3297
    %v3371 = vadd.f32 %v3247, %v3299
    %v3372 = vadd.f32 %v3248, %v3301
    %v3373 = vadd.f32 %v3249, %v3303
    %v3374 = vadd.f32 %v3250, %v3305
    %v3375 = vadd.f32 %v3251, %v3307
    %v3376 = vadd.f32 %v3252, %v3309
    %v3377 = vadd.f32 %v3253, %v3311
    %v3378 = vadd.f32 %v3254, %v3313
    %v3379 = vadd.f32 %v3255, %v3315
    %v3380 = vadd.f32 %v3256, %v3317
    %v3381 = vadd.f32 %v3257, %v3319
    %v3382 = vadd.f32 %v3258, %v3321
    %v3383 = vadd.f32 %v3259, %v3323
    %v3384 = vadd.f32 %v3260, %v3325
    %v3385 = vadd.f32 %v3261, %v3327
    %v3386 = vadd.f32 %v3262, %v3329
    %v3387 = vadd.f32 %v3263, %v3331
    %v3388 = vrot.slane %v1841, 2
    %v3389 = vsel %vm2144, %v2170, %v3388
    %v3390 = vrot.slane %v1846, 2
    %v3391 = vsel %vm2144, %v3388, %v3390
    %v3392 = vrot.slane %v1851, 2
    %v3393 = vsel %vm2144, %v3390, %v3392
    %v3394 = vrot.slane %v1931, 2
    %v3395 = vsel %vm2144, %v2197, %v3394
    %v3396 = vrot.slane %v1936, 2
    %v3397 = vsel %vm2144, %v3394, %v3396
    %v3398 = vrot.slane %v1941, 2
    %v3399 = vsel %vm2144, %v3396, %v3398
    %3400 = vrot.lane.b32.xlu0 %v2153, 48
    %v3401 = vpop.permute.xlu0 %3400
    %3402 = vrot.lane.b32.xlu0 %v2155, 48
    %v3403 = vpop.permute.xlu0 %3402
    %3404 = vrot.lane.b32.xlu0 %v2157, 48
    %v3405 = vpop.permute.xlu0 %3404
    %3406 = vrot.lane.b32.xlu0 %v2159, 48
    %v3407 = vpop.permute.xlu0 %3406
    %3408 = vrot.lane.b32.xlu0 %v2161, 48
    %v3409 = vpop.permute.xlu0 %3408
    %3410 = vrot.lane.b32.xlu0 %v2163, 48
    %v3411 = vpop.permute.xlu0 %3410
    %3412 = vrot.lane.b32.xlu0 %v2165, 48
    %v3413 = vpop.permute.xlu0 %3412
    %3414 = vrot.lane.b32.xlu0 %v2167, 48
    %v3415 = vpop.permute.xlu0 %3414
    %3416 = vrot.lane.b32.xlu0 %v2169, 48
    %v3417 = vpop.permute.xlu0 %3416
    %3418 = vrot.lane.b32.xlu0 %v2171, 48
    %v3419 = vpop.permute.xlu0 %3418
    %3420 = vrot.lane.b32.xlu0 %v3389, 48
    %v3421 = vpop.permute.xlu0 %3420
    %3422 = vrot.lane.b32.xlu0 %v3391, 48
    %v3423 = vpop.permute.xlu0 %3422
    %3424 = vrot.lane.b32.xlu0 %v3393, 48
    %v3425 = vpop.permute.xlu0 %3424
    %3426 = vrot.lane.b32.xlu0 %v3392, 48
    %v3427 = vpop.permute.xlu0 %3426
    %3428 = vrot.lane.b32.xlu0 %v2180, 48
    %v3429 = vpop.permute.xlu0 %3428
    %3430 = vrot.lane.b32.xlu0 %v2182, 48
    %v3431 = vpop.permute.xlu0 %3430
    %3432 = vrot.lane.b32.xlu0 %v2184, 48
    %v3433 = vpop.permute.xlu0 %3432
    %3434 = vrot.lane.b32.xlu0 %v2186, 48
    %v3435 = vpop.permute.xlu0 %3434
    %3436 = vrot.lane.b32.xlu0 %v2188, 48
    %v3437 = vpop.permute.xlu0 %3436
    %3438 = vrot.lane.b32.xlu0 %v2190, 48
    %v3439 = vpop.permute.xlu0 %3438
    %3440 = vrot.lane.b32.xlu0 %v2192, 48
    %v3441 = vpop.permute.xlu0 %3440
    %3442 = vrot.lane.b32.xlu0 %v2194, 48
    %v3443 = vpop.permute.xlu0 %3442
    %3444 = vrot.lane.b32.xlu0 %v2196, 48
    %v3445 = vpop.permute.xlu0 %3444
    %3446 = vrot.lane.b32.xlu0 %v2198, 48
    %v3447 = vpop.permute.xlu0 %3446
    %3448 = vrot.lane.b32.xlu0 %v3395, 48
    %v3449 = vpop.permute.xlu0 %3448
    %3450 = vrot.lane.b32.xlu0 %v3397, 48
    %v3451 = vpop.permute.xlu0 %3450
    %3452 = vrot.lane.b32.xlu0 %v3399, 48
    %v3453 = vpop.permute.xlu0 %3452
    %3454 = vrot.lane.b32.xlu0 %v3398, 48
    %v3455 = vpop.permute.xlu0 %3454
    %v3484 = vadd.f32 %v3360, %v3401
    %v3485 = vadd.f32 %v3361, %v3403
    %v3486 = vadd.f32 %v3362, %v3405
    %v3487 = vadd.f32 %v3363, %v3407
    %v3488 = vadd.f32 %v3364, %v3409
    %v3489 = vadd.f32 %v3365, %v3411
    %v3490 = vadd.f32 %v3366, %v3413
    %v3491 = vadd.f32 %v3367, %v3415
    %v3492 = vadd.f32 %v3368, %v3417
    %v3493 = vadd.f32 %v3369, %v3419
    %v3494 = vadd.f32 %v3370, %v3421
    %v3495 = vadd.f32 %v3371, %v3423
    %v3496 = vadd.f32 %v3372, %v3425
    %v3497 = vadd.f32 %v3373, %v3427
    %v3498 = vadd.f32 %v3374, %v3429
    %v3499 = vadd.f32 %v3375, %v3431
    %v3500 = vadd.f32 %v3376, %v3433
    %v3501 = vadd.f32 %v3377, %v3435
    %v3502 = vadd.f32 %v3378, %v3437
    %v3503 = vadd.f32 %v3379, %v3439
    %v3504 = vadd.f32 %v3380, %v3441
    %v3505 = vadd.f32 %v3381, %v3443
    %v3506 = vadd.f32 %v3382, %v3445
    %v3507 = vadd.f32 %v3383, %v3447
    %v3508 = vadd.f32 %v3384, %v3449
    %v3509 = vadd.f32 %v3385, %v3451
    %v3510 = vadd.f32 %v3386, %v3453
    %v3511 = vadd.f32 %v3387, %v3455
    %v3512 = vrot.slane %v1841, 3
    %v3513 = vsel %vm2311, %v2337, %v3512
    %v3514 = vrot.slane %v1846, 3
    %v3515 = vsel %vm2311, %v3512, %v3514
    %v3516 = vrot.slane %v1851, 3
    %v3517 = vsel %vm2311, %v3514, %v3516
    %v3518 = vrot.slane %v1931, 3
    %v3519 = vsel %vm2311, %v2364, %v3518
    %v3520 = vrot.slane %v1936, 3
    %v3521 = vsel %vm2311, %v3518, %v3520
    %v3522 = vrot.slane %v1941, 3
    %v3523 = vsel %vm2311, %v3520, %v3522
    %3524 = vrot.lane.b32.xlu0 %v2320, 40
    %v3525 = vpop.permute.xlu0 %3524
    %3526 = vrot.lane.b32.xlu0 %v2322, 40
    %v3527 = vpop.permute.xlu0 %3526
    %3528 = vrot.lane.b32.xlu0 %v2324, 40
    %v3529 = vpop.permute.xlu0 %3528
    %3530 = vrot.lane.b32.xlu0 %v2326, 40
    %v3531 = vpop.permute.xlu0 %3530
    %3532 = vrot.lane.b32.xlu0 %v2328, 40
    %v3533 = vpop.permute.xlu0 %3532
    %3534 = vrot.lane.b32.xlu0 %v2330, 40
    %v3535 = vpop.permute.xlu0 %3534
    %3536 = vrot.lane.b32.xlu0 %v2332, 40
    %v3537 = vpop.permute.xlu0 %3536
    %3538 = vrot.lane.b32.xlu0 %v2334, 40
    %v3539 = vpop.permute.xlu0 %3538
    %3540 = vrot.lane.b32.xlu0 %v2336, 40
    %v3541 = vpop.permute.xlu0 %3540
    %3542 = vrot.lane.b32.xlu0 %v2338, 40
    %v3543 = vpop.permute.xlu0 %3542
    %3544 = vrot.lane.b32.xlu0 %v3513, 40
    %v3545 = vpop.permute.xlu0 %3544
    %3546 = vrot.lane.b32.xlu0 %v3515, 40
    %v3547 = vpop.permute.xlu0 %3546
    %3548 = vrot.lane.b32.xlu0 %v3517, 40
    %v3549 = vpop.permute.xlu0 %3548
    %3550 = vrot.lane.b32.xlu0 %v3516, 40
    %v3551 = vpop.permute.xlu0 %3550
    %3552 = vrot.lane.b32.xlu0 %v2347, 40
    %v3553 = vpop.permute.xlu0 %3552
    %3554 = vrot.lane.b32.xlu0 %v2349, 40
    %v3555 = vpop.permute.xlu0 %3554
    %3556 = vrot.lane.b32.xlu0 %v2351, 40
    %v3557 = vpop.permute.xlu0 %3556
    %3558 = vrot.lane.b32.xlu0 %v2353, 40
    %v3559 = vpop.permute.xlu0 %3558
    %3560 = vrot.lane.b32.xlu0 %v2355, 40
    %v3561 = vpop.permute.xlu0 %3560
    %3562 = vrot.lane.b32.xlu0 %v2357, 40
    %v3563 = vpop.permute.xlu0 %3562
    %3564 = vrot.lane.b32.xlu0 %v2359, 40
    %v3565 = vpop.permute.xlu0 %3564
    %3566 = vrot.lane.b32.xlu0 %v2361, 40
    %v3567 = vpop.permute.xlu0 %3566
    %3568 = vrot.lane.b32.xlu0 %v2363, 40
    %v3569 = vpop.permute.xlu0 %3568
    %3570 = vrot.lane.b32.xlu0 %v2365, 40
    %v3571 = vpop.permute.xlu0 %3570
    %3572 = vrot.lane.b32.xlu0 %v3519, 40
    %v3573 = vpop.permute.xlu0 %3572
    %3574 = vrot.lane.b32.xlu0 %v3521, 40
    %v3575 = vpop.permute.xlu0 %3574
    %3576 = vrot.lane.b32.xlu0 %v3523, 40
    %v3577 = vpop.permute.xlu0 %3576
    %3578 = vrot.lane.b32.xlu0 %v3522, 40
    %v3579 = vpop.permute.xlu0 %3578
    %v3608 = vadd.f32 %v3484, %v3525
    %v3609 = vadd.f32 %v3485, %v3527
    %v3610 = vadd.f32 %v3486, %v3529
    %v3611 = vadd.f32 %v3487, %v3531
    %v3612 = vadd.f32 %v3488, %v3533
    %v3613 = vadd.f32 %v3489, %v3535
    %v3614 = vadd.f32 %v3490, %v3537
    %v3615 = vadd.f32 %v3491, %v3539
    %v3616 = vadd.f32 %v3492, %v3541
    %v3617 = vadd.f32 %v3493, %v3543
    %v3618 = vadd.f32 %v3494, %v3545
    %v3619 = vadd.f32 %v3495, %v3547
    %v3620 = vadd.f32 %v3496, %v3549
    %v3621 = vadd.f32 %v3497, %v3551
    %v3622 = vadd.f32 %v3498, %v3553
    %v3623 = vadd.f32 %v3499, %v3555
    %v3624 = vadd.f32 %v3500, %v3557
    %v3625 = vadd.f32 %v3501, %v3559
    %v3626 = vadd.f32 %v3502, %v3561
    %v3627 = vadd.f32 %v3503, %v3563
    %v3628 = vadd.f32 %v3504, %v3565
    %v3629 = vadd.f32 %v3505, %v3567
    %v3630 = vadd.f32 %v3506, %v3569
    %v3631 = vadd.f32 %v3507, %v3571
    %v3632 = vadd.f32 %v3508, %v3573
    %v3633 = vadd.f32 %v3509, %v3575
    %v3634 = vadd.f32 %v3510, %v3577
    %v3635 = vadd.f32 %v3511, %v3579
    %v3638 = vrot.slane %v1846, 4
    %v3639 = vsel %vm2480, %v2506, %v3638
    %v3640 = vrot.slane %v1851, 4
    %v3641 = vsel %vm2480, %v3638, %v3640
    %v3642 = vrot.slane %v1856, 4
    %v3643 = vsel %vm2480, %v3640, %v3642
    %v3644 = vrot.slane %v1936, 4
    %v3645 = vsel %vm2480, %v2533, %v3644
    %v3646 = vrot.slane %v1941, 4
    %v3647 = vsel %vm2480, %v3644, %v3646
    %v3648 = vrot.slane %v1946, 4
    %v3649 = vsel %vm2480, %v3646, %v3648
    %3650 = vrot.lane.b32.xlu0 %v2489, 32
    %v3651 = vpop.permute.xlu0 %3650
    %3652 = vrot.lane.b32.xlu0 %v2491, 32
    %v3653 = vpop.permute.xlu0 %3652
    %3654 = vrot.lane.b32.xlu0 %v2493, 32
    %v3655 = vpop.permute.xlu0 %3654
    %3656 = vrot.lane.b32.xlu0 %v2495, 32
    %v3657 = vpop.permute.xlu0 %3656
    %3658 = vrot.lane.b32.xlu0 %v2497, 32
    %v3659 = vpop.permute.xlu0 %3658
    %3660 = vrot.lane.b32.xlu0 %v2499, 32
    %v3661 = vpop.permute.xlu0 %3660
    %3662 = vrot.lane.b32.xlu0 %v2501, 32
    %v3663 = vpop.permute.xlu0 %3662
    %3664 = vrot.lane.b32.xlu0 %v2503, 32
    %v3665 = vpop.permute.xlu0 %3664
    %3666 = vrot.lane.b32.xlu0 %v2505, 32
    %v3667 = vpop.permute.xlu0 %3666
    %3668 = vrot.lane.b32.xlu0 %v2507, 32
    %v3669 = vpop.permute.xlu0 %3668
    %3670 = vrot.lane.b32.xlu0 %v3639, 32
    %v3671 = vpop.permute.xlu0 %3670
    %3672 = vrot.lane.b32.xlu0 %v3641, 32
    %v3673 = vpop.permute.xlu0 %3672
    %3674 = vrot.lane.b32.xlu0 %v3643, 32
    %v3675 = vpop.permute.xlu0 %3674
    %3676 = vrot.lane.b32.xlu0 %v3642, 32
    %v3677 = vpop.permute.xlu0 %3676
    %3678 = vrot.lane.b32.xlu0 %v2516, 32
    %v3679 = vpop.permute.xlu0 %3678
    %3680 = vrot.lane.b32.xlu0 %v2518, 32
    %v3681 = vpop.permute.xlu0 %3680
    %3682 = vrot.lane.b32.xlu0 %v2520, 32
    %v3683 = vpop.permute.xlu0 %3682
    %3684 = vrot.lane.b32.xlu0 %v2522, 32
    %v3685 = vpop.permute.xlu0 %3684
    %3686 = vrot.lane.b32.xlu0 %v2524, 32
    %v3687 = vpop.permute.xlu0 %3686
    %3688 = vrot.lane.b32.xlu0 %v2526, 32
    %v3689 = vpop.permute.xlu0 %3688
    %3690 = vrot.lane.b32.xlu0 %v2528, 32
    %v3691 = vpop.permute.xlu0 %3690
    %3692 = vrot.lane.b32.xlu0 %v2530, 32
    %v3693 = vpop.permute.xlu0 %3692
    %3694 = vrot.lane.b32.xlu0 %v2532, 32
    %v3695 = vpop.permute.xlu0 %3694
    %3696 = vrot.lane.b32.xlu0 %v2534, 32
    %v3697 = vpop.permute.xlu0 %3696
    %3698 = vrot.lane.b32.xlu0 %v3645, 32
    %v3699 = vpop.permute.xlu0 %3698
    %3700 = vrot.lane.b32.xlu0 %v3647, 32
    %v3701 = vpop.permute.xlu0 %3700
    %3702 = vrot.lane.b32.xlu0 %v3649, 32
    %v3703 = vpop.permute.xlu0 %3702
    %3704 = vrot.lane.b32.xlu0 %v3648, 32
    %v3705 = vpop.permute.xlu0 %3704
    %v3734 = vadd.f32 %v3608, %v3651
    %v3735 = vadd.f32 %v3609, %v3653
    %v3736 = vadd.f32 %v3610, %v3655
    %v3737 = vadd.f32 %v3611, %v3657
    %v3738 = vadd.f32 %v3612, %v3659
    %v3739 = vadd.f32 %v3613, %v3661
    %v3740 = vadd.f32 %v3614, %v3663
    %v3741 = vadd.f32 %v3615, %v3665
    %v3742 = vadd.f32 %v3616, %v3667
    %v3743 = vadd.f32 %v3617, %v3669
    %v3744 = vadd.f32 %v3618, %v3671
    %v3745 = vadd.f32 %v3619, %v3673
    %v3746 = vadd.f32 %v3620, %v3675
    %v3747 = vadd.f32 %v3621, %v3677
    %v3748 = vadd.f32 %v3622, %v3679
    %v3749 = vadd.f32 %v3623, %v3681
    %v3750 = vadd.f32 %v3624, %v3683
    %v3751 = vadd.f32 %v3625, %v3685
    %v3752 = vadd.f32 %v3626, %v3687
    %v3753 = vadd.f32 %v3627, %v3689
    %v3754 = vadd.f32 %v3628, %v3691
    %v3755 = vadd.f32 %v3629, %v3693
    %v3756 = vadd.f32 %v3630, %v3695
    %v3757 = vadd.f32 %v3631, %v3697
    %v3758 = vadd.f32 %v3632, %v3699
    %v3759 = vadd.f32 %v3633, %v3701
    %v3760 = vadd.f32 %v3634, %v3703
    %v3761 = vadd.f32 %v3635, %v3705
    %v3762 = vrot.slane %v1846, 5
    %v3763 = vsel %vm2647, %v2673, %v3762
    %v3764 = vrot.slane %v1851, 5
    %v3765 = vsel %vm2647, %v3762, %v3764
    %v3766 = vrot.slane %v1856, 5
    %v3767 = vsel %vm2647, %v3764, %v3766
    %v3768 = vrot.slane %v1936, 5
    %v3769 = vsel %vm2647, %v2700, %v3768
    %v3770 = vrot.slane %v1941, 5
    %v3771 = vsel %vm2647, %v3768, %v3770
    %v3772 = vrot.slane %v1946, 5
    %v3773 = vsel %vm2647, %v3770, %v3772
    %3774 = vrot.lane.b32.xlu0 %v2656, 24
    %v3775 = vpop.permute.xlu0 %3774
    %3776 = vrot.lane.b32.xlu0 %v2658, 24
    %v3777 = vpop.permute.xlu0 %3776
    %3778 = vrot.lane.b32.xlu0 %v2660, 24
    %v3779 = vpop.permute.xlu0 %3778
    %3780 = vrot.lane.b32.xlu0 %v2662, 24
    %v3781 = vpop.permute.xlu0 %3780
    %3782 = vrot.lane.b32.xlu0 %v2664, 24
    %v3783 = vpop.permute.xlu0 %3782
    %3784 = vrot.lane.b32.xlu0 %v2666, 24
    %v3785 = vpop.permute.xlu0 %3784
    %3786 = vrot.lane.b32.xlu0 %v2668, 24
    %v3787 = vpop.permute.xlu0 %3786
    %3788 = vrot.lane.b32.xlu0 %v2670, 24
    %v3789 = vpop.permute.xlu0 %3788
    %3790 = vrot.lane.b32.xlu0 %v2672, 24
    %v3791 = vpop.permute.xlu0 %3790
    %3792 = vrot.lane.b32.xlu0 %v2674, 24
    %v3793 = vpop.permute.xlu0 %3792
    %3794 = vrot.lane.b32.xlu0 %v3763, 24
    %v3795 = vpop.permute.xlu0 %3794
    %3796 = vrot.lane.b32.xlu0 %v3765, 24
    %v3797 = vpop.permute.xlu0 %3796
    %3798 = vrot.lane.b32.xlu0 %v3767, 24
    %v3799 = vpop.permute.xlu0 %3798
    %3800 = vrot.lane.b32.xlu0 %v3766, 24
    %v3801 = vpop.permute.xlu0 %3800
    %3802 = vrot.lane.b32.xlu0 %v2683, 24
    %v3803 = vpop.permute.xlu0 %3802
    %3804 = vrot.lane.b32.xlu0 %v2685, 24
    %v3805 = vpop.permute.xlu0 %3804
    %3806 = vrot.lane.b32.xlu0 %v2687, 24
    %v3807 = vpop.permute.xlu0 %3806
    %3808 = vrot.lane.b32.xlu0 %v2689, 24
    %v3809 = vpop.permute.xlu0 %3808
    %3810 = vrot.lane.b32.xlu0 %v2691, 24
    %v3811 = vpop.permute.xlu0 %3810
    %3812 = vrot.lane.b32.xlu0 %v2693, 24
    %v3813 = vpop.permute.xlu0 %3812
    %3814 = vrot.lane.b32.xlu0 %v2695, 24
    %v3815 = vpop.permute.xlu0 %3814
    %3816 = vrot.lane.b32.xlu0 %v2697, 24
    %v3817 = vpop.permute.xlu0 %3816
    %3818 = vrot.lane.b32.xlu0 %v2699, 24
    %v3819 = vpop.permute.xlu0 %3818
    %3820 = vrot.lane.b32.xlu0 %v2701, 24
    %v3821 = vpop.permute.xlu0 %3820
    %3822 = vrot.lane.b32.xlu0 %v3769, 24
    %v3823 = vpop.permute.xlu0 %3822
    %3824 = vrot.lane.b32.xlu0 %v3771, 24
    %v3825 = vpop.permute.xlu0 %3824
    %3826 = vrot.lane.b32.xlu0 %v3773, 24
    %v3827 = vpop.permute.xlu0 %3826
    %3828 = vrot.lane.b32.xlu0 %v3772, 24
    %v3829 = vpop.permute.xlu0 %3828
    %v3858 = vadd.f32 %v3734, %v3775
    %v3859 = vadd.f32 %v3735, %v3777
    %v3860 = vadd.f32 %v3736, %v3779
    %v3861 = vadd.f32 %v3737, %v3781
    %v3862 = vadd.f32 %v3738, %v3783
    %v3863 = vadd.f32 %v3739, %v3785
    %v3864 = vadd.f32 %v3740, %v3787
    %v3865 = vadd.f32 %v3741, %v3789
    %v3866 = vadd.f32 %v3742, %v3791
    %v3867 = vadd.f32 %v3743, %v3793
    %v3868 = vadd.f32 %v3744, %v3795
    %v3869 = vadd.f32 %v3745, %v3797
    %v3870 = vadd.f32 %v3746, %v3799
    %v3871 = vadd.f32 %v3747, %v3801
    %v3872 = vadd.f32 %v3748, %v3803
    %v3873 = vadd.f32 %v3749, %v3805
    %v3874 = vadd.f32 %v3750, %v3807
    %v3875 = vadd.f32 %v3751, %v3809
    %v3876 = vadd.f32 %v3752, %v3811
    %v3877 = vadd.f32 %v3753, %v3813
    %v3878 = vadd.f32 %v3754, %v3815
    %v3879 = vadd.f32 %v3755, %v3817
    %v3880 = vadd.f32 %v3756, %v3819
    %v3881 = vadd.f32 %v3757, %v3821
    %v3882 = vadd.f32 %v3758, %v3823
    %v3883 = vadd.f32 %v3759, %v3825
    %v3884 = vadd.f32 %v3760, %v3827
    %v3885 = vadd.f32 %v3761, %v3829
    %v3886 = vrot.slane %v1846, 6
    %v3887 = vsel %vm2814, %v2840, %v3886
    %v3888 = vrot.slane %v1851, 6
    %v3889 = vsel %vm2814, %v3886, %v3888
    %v3890 = vrot.slane %v1856, 6
    %v3891 = vsel %vm2814, %v3888, %v3890
    %v3892 = vrot.slane %v1936, 6
    %v3893 = vsel %vm2814, %v2867, %v3892
    %v3894 = vrot.slane %v1941, 6
    %v3895 = vsel %vm2814, %v3892, %v3894
    %v3896 = vrot.slane %v1946, 6
    %v3897 = vsel %vm2814, %v3894, %v3896
    %3898 = vrot.lane.b32.xlu0 %v2823, 16
    %v3899 = vpop.permute.xlu0 %3898
    %3900 = vrot.lane.b32.xlu0 %v2825, 16
    %v3901 = vpop.permute.xlu0 %3900
    %3902 = vrot.lane.b32.xlu0 %v2827, 16
    %v3903 = vpop.permute.xlu0 %3902
    %3904 = vrot.lane.b32.xlu0 %v2829, 16
    %v3905 = vpop.permute.xlu0 %3904
    %3906 = vrot.lane.b32.xlu0 %v2831, 16
    %v3907 = vpop.permute.xlu0 %3906
    %3908 = vrot.lane.b32.xlu0 %v2833, 16
    %v3909 = vpop.permute.xlu0 %3908
    %3910 = vrot.lane.b32.xlu0 %v2835, 16
    %v3911 = vpop.permute.xlu0 %3910
    %3912 = vrot.lane.b32.xlu0 %v2837, 16
    %v3913 = vpop.permute.xlu0 %3912
    %3914 = vrot.lane.b32.xlu0 %v2839, 16
    %v3915 = vpop.permute.xlu0 %3914
    %3916 = vrot.lane.b32.xlu0 %v2841, 16
    %v3917 = vpop.permute.xlu0 %3916
    %3918 = vrot.lane.b32.xlu0 %v3887, 16
    %v3919 = vpop.permute.xlu0 %3918
    %3920 = vrot.lane.b32.xlu0 %v3889, 16
    %v3921 = vpop.permute.xlu0 %3920
    %3922 = vrot.lane.b32.xlu0 %v3891, 16
    %v3923 = vpop.permute.xlu0 %3922
    %3924 = vrot.lane.b32.xlu0 %v3890, 16
    %v3925 = vpop.permute.xlu0 %3924
    %3926 = vrot.lane.b32.xlu0 %v2850, 16
    %v3927 = vpop.permute.xlu0 %3926
    %3928 = vrot.lane.b32.xlu0 %v2852, 16
    %v3929 = vpop.permute.xlu0 %3928
    %3930 = vrot.lane.b32.xlu0 %v2854, 16
    %v3931 = vpop.permute.xlu0 %3930
    %3932 = vrot.lane.b32.xlu0 %v2856, 16
    %v3933 = vpop.permute.xlu0 %3932
    %3934 = vrot.lane.b32.xlu0 %v2858, 16
    %v3935 = vpop.permute.xlu0 %3934
    %3936 = vrot.lane.b32.xlu0 %v2860, 16
    %v3937 = vpop.permute.xlu0 %3936
    %3938 = vrot.lane.b32.xlu0 %v2862, 16
    %v3939 = vpop.permute.xlu0 %3938
    %3940 = vrot.lane.b32.xlu0 %v2864, 16
    %v3941 = vpop.permute.xlu0 %3940
    %3942 = vrot.lane.b32.xlu0 %v2866, 16
    %v3943 = vpop.permute.xlu0 %3942
    %3944 = vrot.lane.b32.xlu0 %v2868, 16
    %v3945 = vpop.permute.xlu0 %3944
    %3946 = vrot.lane.b32.xlu0 %v3893, 16
    %v3947 = vpop.permute.xlu0 %3946
    %3948 = vrot.lane.b32.xlu0 %v3895, 16
    %v3949 = vpop.permute.xlu0 %3948
    %3950 = vrot.lane.b32.xlu0 %v3897, 16
    %v3951 = vpop.permute.xlu0 %3950
    %3952 = vrot.lane.b32.xlu0 %v3896, 16
    %v3953 = vpop.permute.xlu0 %3952
    %v3982 = vadd.f32 %v3858, %v3899
    %v3983 = vadd.f32 %v3859, %v3901
    %v3984 = vadd.f32 %v3860, %v3903
    %v3985 = vadd.f32 %v3861, %v3905
    %v3986 = vadd.f32 %v3862, %v3907
    %v3987 = vadd.f32 %v3863, %v3909
    %v3988 = vadd.f32 %v3864, %v3911
    %v3989 = vadd.f32 %v3865, %v3913
    %v3990 = vadd.f32 %v3866, %v3915
    %v3991 = vadd.f32 %v3867, %v3917
    %v3992 = vadd.f32 %v3868, %v3919
    %v3993 = vadd.f32 %v3869, %v3921
    %v3994 = vadd.f32 %v3870, %v3923
    %v3995 = vadd.f32 %v3871, %v3925
    %v3996 = vadd.f32 %v3872, %v3927
    %v3997 = vadd.f32 %v3873, %v3929
    %v3998 = vadd.f32 %v3874, %v3931
    %v3999 = vadd.f32 %v3875, %v3933
    %v4000 = vadd.f32 %v3876, %v3935
    %v4001 = vadd.f32 %v3877, %v3937
    %v4002 = vadd.f32 %v3878, %v3939
    %v4003 = vadd.f32 %v3879, %v3941
    %v4004 = vadd.f32 %v3880, %v3943
    %v4005 = vadd.f32 %v3881, %v3945
    %v4006 = vadd.f32 %v3882, %v3947
    %v4007 = vadd.f32 %v3883, %v3949
    %v4008 = vadd.f32 %v3884, %v3951
    %v4009 = vadd.f32 %v3885, %v3953
    %v4010 = vrot.slane %v1846, 7
    %v4011 = vsel %vm2981, %v3007, %v4010
    %v4012 = vrot.slane %v1851, 7
    %v4013 = vsel %vm2981, %v4010, %v4012
    %v4014 = vrot.slane %v1856, 7
    %v4015 = vsel %vm2981, %v4012, %v4014
    %v4016 = vrot.slane %v1936, 7
    %v4017 = vsel %vm2981, %v3034, %v4016
    %v4018 = vrot.slane %v1941, 7
    %v4019 = vsel %vm2981, %v4016, %v4018
    %v4020 = vrot.slane %v1946, 7
    %v4021 = vsel %vm2981, %v4018, %v4020
    %4022 = vrot.lane.b32.xlu0 %v2990, 8
    %v4023 = vpop.permute.xlu0 %4022
    %4024 = vrot.lane.b32.xlu0 %v2992, 8
    %v4025 = vpop.permute.xlu0 %4024
    %4026 = vrot.lane.b32.xlu0 %v2994, 8
    %v4027 = vpop.permute.xlu0 %4026
    %4028 = vrot.lane.b32.xlu0 %v2996, 8
    %v4029 = vpop.permute.xlu0 %4028
    %4030 = vrot.lane.b32.xlu0 %v2998, 8
    %v4031 = vpop.permute.xlu0 %4030
    %4032 = vrot.lane.b32.xlu0 %v3000, 8
    %v4033 = vpop.permute.xlu0 %4032
    %4034 = vrot.lane.b32.xlu0 %v3002, 8
    %v4035 = vpop.permute.xlu0 %4034
    %4036 = vrot.lane.b32.xlu0 %v3004, 8
    %v4037 = vpop.permute.xlu0 %4036
    %4038 = vrot.lane.b32.xlu0 %v3006, 8
    %v4039 = vpop.permute.xlu0 %4038
    %4040 = vrot.lane.b32.xlu0 %v3008, 8
    %v4041 = vpop.permute.xlu0 %4040
    %4042 = vrot.lane.b32.xlu0 %v4011, 8
    %v4043 = vpop.permute.xlu0 %4042
    %4044 = vrot.lane.b32.xlu0 %v4013, 8
    %v4045 = vpop.permute.xlu0 %4044
    %4046 = vrot.lane.b32.xlu0 %v4015, 8
    %v4047 = vpop.permute.xlu0 %4046
    %4048 = vrot.lane.b32.xlu0 %v4014, 8
    %v4049 = vpop.permute.xlu0 %4048
    %4050 = vrot.lane.b32.xlu0 %v3017, 8
    %v4051 = vpop.permute.xlu0 %4050
    %4052 = vrot.lane.b32.xlu0 %v3019, 8
    %v4053 = vpop.permute.xlu0 %4052
    %4054 = vrot.lane.b32.xlu0 %v3021, 8
    %v4055 = vpop.permute.xlu0 %4054
    %4056 = vrot.lane.b32.xlu0 %v3023, 8
    %v4057 = vpop.permute.xlu0 %4056
    %4058 = vrot.lane.b32.xlu0 %v3025, 8
    %v4059 = vpop.permute.xlu0 %4058
    %4060 = vrot.lane.b32.xlu0 %v3027, 8
    %v4061 = vpop.permute.xlu0 %4060
    %4062 = vrot.lane.b32.xlu0 %v3029, 8
    %v4063 = vpop.permute.xlu0 %4062
    %4064 = vrot.lane.b32.xlu0 %v3031, 8
    %v4065 = vpop.permute.xlu0 %4064
    %4066 = vrot.lane.b32.xlu0 %v3033, 8
    %v4067 = vpop.permute.xlu0 %4066
    %4068 = vrot.lane.b32.xlu0 %v3035, 8
    %v4069 = vpop.permute.xlu0 %4068
    %4070 = vrot.lane.b32.xlu0 %v4017, 8
    %v4071 = vpop.permute.xlu0 %4070
    %4072 = vrot.lane.b32.xlu0 %v4019, 8
    %v4073 = vpop.permute.xlu0 %4072
    %4074 = vrot.lane.b32.xlu0 %v4021, 8
    %v4075 = vpop.permute.xlu0 %4074
    %4076 = vrot.lane.b32.xlu0 %v4020, 8
    %v4077 = vpop.permute.xlu0 %4076
    %v4106 = vadd.f32 %v3982, %v4023
    %v4107 = vadd.f32 %v3983, %v4025
    %v4108 = vadd.f32 %v3984, %v4027
    %v4109 = vadd.f32 %v3985, %v4029
    %v4110 = vadd.f32 %v3986, %v4031
    %v4111 = vadd.f32 %v3987, %v4033
    %v4112 = vadd.f32 %v3988, %v4035
    %v4113 = vadd.f32 %v3989, %v4037
    %v4114 = vadd.f32 %v3990, %v4039
    %v4115 = vadd.f32 %v3991, %v4041
    %v4116 = vadd.f32 %v3992, %v4043
    %v4117 = vadd.f32 %v3993, %v4045
    %v4118 = vadd.f32 %v3994, %v4047
    %v4119 = vadd.f32 %v3995, %v4049
    %v4120 = vadd.f32 %v3996, %v4051
    %v4121 = vadd.f32 %v3997, %v4053
    %v4122 = vadd.f32 %v3998, %v4055
    %v4123 = vadd.f32 %v3999, %v4057
    %v4124 = vadd.f32 %v4000, %v4059
    %v4125 = vadd.f32 %v4001, %v4061
    %v4126 = vadd.f32 %v4002, %v4063
    %v4127 = vadd.f32 %v4003, %v4065
    %v4128 = vadd.f32 %v4004, %v4067
    %v4129 = vadd.f32 %v4005, %v4069
    %v4130 = vadd.f32 %v4006, %v4071
    %v4131 = vadd.f32 %v4007, %v4073
    %v4132 = vadd.f32 %v4008, %v4075
    %v4133 = vadd.f32 %v4009, %v4077
    %v4134 = vld [vmem:[%s4] sm:$0x1]
    %v4136 = vlaneseq
    %v4137 = vshrl.u32 %v4136, 7
    %v4138 = vsub.s32 0, %v4137
    %v4139 = vrot.slane %v4134, %v4138
    %v4141 = vadd.f32 %v4106, %v4139
    %v4142 = vadd.f32 %v4107, %v4139
    %v4143 = vadd.f32 %v4108, %v4139
    %v4144 = vadd.f32 %v4109, %v4139
    %v4145 = vadd.f32 %v4110, %v4139
    %v4146 = vadd.f32 %v4111, %v4139
    %v4147 = vadd.f32 %v4112, %v4139
    %v4148 = vadd.f32 %v4113, %v4139
    %v4149 = vadd.f32 %v4114, %v4139
    %v4150 = vadd.f32 %v4115, %v4139
    %v4151 = vadd.f32 %v4116, %v4139
    %v4152 = vadd.f32 %v4117, %v4139
    %v4153 = vadd.f32 %v4118, %v4139
    %v4154 = vadd.f32 %v4119, %v4139
    %v4155 = vadd.f32 %v4120, %v4139
    %v4156 = vadd.f32 %v4121, %v4139
    %v4157 = vadd.f32 %v4122, %v4139
    %v4158 = vadd.f32 %v4123, %v4139
    %v4159 = vadd.f32 %v4124, %v4139
    %v4160 = vadd.f32 %v4125, %v4139
    %v4161 = vadd.f32 %v4126, %v4139
    %v4162 = vadd.f32 %v4127, %v4139
    %v4163 = vadd.f32 %v4128, %v4139
    %v4164 = vadd.f32 %v4129, %v4139
    %v4165 = vadd.f32 %v4130, %v4139
    %v4166 = vadd.f32 %v4131, %v4139
    %v4167 = vadd.f32 %v4132, %v4139
    %v4168 = vadd.f32 %v4133, %v4139
    %v4169 = vmax.f32 %v4141, 0.0
    %v4170 = vmax.f32 %v4142, 0.0
    %v4171 = vmax.f32 %v4143, 0.0
    %v4172 = vmax.f32 %v4144, 0.0
    %v4173 = vmax.f32 %v4145, 0.0
    %v4174 = vmax.f32 %v4146, 0.0
    %v4175 = vmax.f32 %v4147, 0.0
    %v4176 = vmax.f32 %v4148, 0.0
    %v4177 = vmax.f32 %v4149, 0.0
    %v4178 = vmax.f32 %v4150, 0.0
    %v4179 = vmax.f32 %v4151, 0.0
    %v4180 = vmax.f32 %v4152, 0.0
    %v4181 = vmax.f32 %v4153, 0.0
    %v4182 = vmax.f32 %v4154, 0.0
    %v4183 = vmax.f32 %v4155, 0.0
    %v4184 = vmax.f32 %v4156, 0.0
    %v4185 = vmax.f32 %v4157, 0.0
    %v4186 = vmax.f32 %v4158, 0.0
    %v4187 = vmax.f32 %v4159, 0.0
    %v4188 = vmax.f32 %v4160, 0.0
    %v4189 = vmax.f32 %v4161, 0.0
    %v4190 = vmax.f32 %v4162, 0.0
    %v4191 = vmax.f32 %v4163, 0.0
    %v4192 = vmax.f32 %v4164, 0.0
    %v4193 = vmax.f32 %v4165, 0.0
    %v4194 = vmax.f32 %v4166, 0.0
    %v4195 = vmax.f32 %v4167, 0.0
    %v4196 = vmax.f32 %v4168, 0.0
    %4225 = vrot.lane.b32.xlu0 %v4169, 8
    %v4226 = vpop.permute.xlu0 %4225
    %4227 = vrot.lane.b32.xlu0 %v4170, 8
    %v4228 = vpop.permute.xlu0 %4227
    %4229 = vrot.lane.b32.xlu0 %v4171, 8
    %v4230 = vpop.permute.xlu0 %4229
    %4231 = vrot.lane.b32.xlu0 %v4172, 8
    %v4232 = vpop.permute.xlu0 %4231
    %4233 = vrot.lane.b32.xlu0 %v4173, 8
    %v4234 = vpop.permute.xlu0 %4233
    %4235 = vrot.lane.b32.xlu0 %v4174, 8
    %v4236 = vpop.permute.xlu0 %4235
    %4237 = vrot.lane.b32.xlu0 %v4175, 8
    %v4238 = vpop.permute.xlu0 %4237
    %4239 = vrot.lane.b32.xlu0 %v4176, 8
    %v4240 = vpop.permute.xlu0 %4239
    %4241 = vrot.lane.b32.xlu0 %v4177, 8
    %v4242 = vpop.permute.xlu0 %4241
    %4243 = vrot.lane.b32.xlu0 %v4178, 8
    %v4244 = vpop.permute.xlu0 %4243
    %4245 = vrot.lane.b32.xlu0 %v4179, 8
    %v4246 = vpop.permute.xlu0 %4245
    %4247 = vrot.lane.b32.xlu0 %v4180, 8
    %v4248 = vpop.permute.xlu0 %4247
    %4249 = vrot.lane.b32.xlu0 %v4181, 8
    %v4250 = vpop.permute.xlu0 %4249
    %4251 = vrot.lane.b32.xlu0 %v4182, 8
    %v4252 = vpop.permute.xlu0 %4251
    %4253 = vrot.lane.b32.xlu0 %v4183, 8
    %v4254 = vpop.permute.xlu0 %4253
    %4255 = vrot.lane.b32.xlu0 %v4184, 8
    %v4256 = vpop.permute.xlu0 %4255
    %4257 = vrot.lane.b32.xlu0 %v4185, 8
    %v4258 = vpop.permute.xlu0 %4257
    %4259 = vrot.lane.b32.xlu0 %v4186, 8
    %v4260 = vpop.permute.xlu0 %4259
    %4261 = vrot.lane.b32.xlu0 %v4187, 8
    %v4262 = vpop.permute.xlu0 %4261
    %4263 = vrot.lane.b32.xlu0 %v4188, 8
    %v4264 = vpop.permute.xlu0 %4263
    %4265 = vrot.lane.b32.xlu0 %v4189, 8
    %v4266 = vpop.permute.xlu0 %4265
    %4267 = vrot.lane.b32.xlu0 %v4190, 8
    %v4268 = vpop.permute.xlu0 %4267
    %4269 = vrot.lane.b32.xlu0 %v4191, 8
    %v4270 = vpop.permute.xlu0 %4269
    %4271 = vrot.lane.b32.xlu0 %v4192, 8
    %v4272 = vpop.permute.xlu0 %4271
    %4273 = vrot.lane.b32.xlu0 %v4193, 8
    %v4274 = vpop.permute.xlu0 %4273
    %4275 = vrot.lane.b32.xlu0 %v4194, 8
    %v4276 = vpop.permute.xlu0 %4275
    %4277 = vrot.lane.b32.xlu0 %v4195, 8
    %v4278 = vpop.permute.xlu0 %4277
    %4279 = vrot.lane.b32.xlu0 %v4196, 8
    %v4280 = vpop.permute.xlu0 %4279
    %4309 = vrot.lane.b32.xlu0 %v4169, 16
    %v4310 = vpop.permute.xlu0 %4309
    %4311 = vrot.lane.b32.xlu0 %v4170, 16
    %v4312 = vpop.permute.xlu0 %4311
    %4313 = vrot.lane.b32.xlu0 %v4171, 16
    %v4314 = vpop.permute.xlu0 %4313
    %4315 = vrot.lane.b32.xlu0 %v4172, 16
    %v4316 = vpop.permute.xlu0 %4315
    %4317 = vrot.lane.b32.xlu0 %v4173, 16
    %v4318 = vpop.permute.xlu0 %4317
    %4319 = vrot.lane.b32.xlu0 %v4174, 16
    %v4320 = vpop.permute.xlu0 %4319
    %4321 = vrot.lane.b32.xlu0 %v4175, 16
    %v4322 = vpop.permute.xlu0 %4321
    %4323 = vrot.lane.b32.xlu0 %v4176, 16
    %v4324 = vpop.permute.xlu0 %4323
    %4325 = vrot.lane.b32.xlu0 %v4177, 16
    %v4326 = vpop.permute.xlu0 %4325
    %4327 = vrot.lane.b32.xlu0 %v4178, 16
    %v4328 = vpop.permute.xlu0 %4327
    %4329 = vrot.lane.b32.xlu0 %v4179, 16
    %v4330 = vpop.permute.xlu0 %4329
    %4331 = vrot.lane.b32.xlu0 %v4180, 16
    %v4332 = vpop.permute.xlu0 %4331
    %4333 = vrot.lane.b32.xlu0 %v4181, 16
    %v4334 = vpop.permute.xlu0 %4333
    %4335 = vrot.lane.b32.xlu0 %v4182, 16
    %v4336 = vpop.permute.xlu0 %4335
    %4337 = vrot.lane.b32.xlu0 %v4183, 16
    %v4338 = vpop.permute.xlu0 %4337
    %4339 = vrot.lane.b32.xlu0 %v4184, 16
    %v4340 = vpop.permute.xlu0 %4339
    %4341 = vrot.lane.b32.xlu0 %v4185, 16
    %v4342 = vpop.permute.xlu0 %4341
    %4343 = vrot.lane.b32.xlu0 %v4186, 16
    %v4344 = vpop.permute.xlu0 %4343
    %4345 = vrot.lane.b32.xlu0 %v4187, 16
    %v4346 = vpop.permute.xlu0 %4345
    %4347 = vrot.lane.b32.xlu0 %v4188, 16
    %v4348 = vpop.permute.xlu0 %4347
    %4349 = vrot.lane.b32.xlu0 %v4189, 16
    %v4350 = vpop.permute.xlu0 %4349
    %4351 = vrot.lane.b32.xlu0 %v4190, 16
    %v4352 = vpop.permute.xlu0 %4351
    %4353 = vrot.lane.b32.xlu0 %v4191, 16
    %v4354 = vpop.permute.xlu0 %4353
    %4355 = vrot.lane.b32.xlu0 %v4192, 16
    %v4356 = vpop.permute.xlu0 %4355
    %4357 = vrot.lane.b32.xlu0 %v4193, 16
    %v4358 = vpop.permute.xlu0 %4357
    %4359 = vrot.lane.b32.xlu0 %v4194, 16
    %v4360 = vpop.permute.xlu0 %4359
    %4361 = vrot.lane.b32.xlu0 %v4195, 16
    %v4362 = vpop.permute.xlu0 %4361
    %4363 = vrot.lane.b32.xlu0 %v4196, 16
    %v4364 = vpop.permute.xlu0 %4363
    %4393 = vrot.lane.b32.xlu0 %v4169, 24
    %v4394 = vpop.permute.xlu0 %4393
    %4395 = vrot.lane.b32.xlu0 %v4170, 24
    %v4396 = vpop.permute.xlu0 %4395
    %4397 = vrot.lane.b32.xlu0 %v4171, 24
    %v4398 = vpop.permute.xlu0 %4397
    %4399 = vrot.lane.b32.xlu0 %v4172, 24
    %v4400 = vpop.permute.xlu0 %4399
    %4401 = vrot.lane.b32.xlu0 %v4173, 24
    %v4402 = vpop.permute.xlu0 %4401
    %4403 = vrot.lane.b32.xlu0 %v4174, 24
    %v4404 = vpop.permute.xlu0 %4403
    %4405 = vrot.lane.b32.xlu0 %v4175, 24
    %v4406 = vpop.permute.xlu0 %4405
    %4407 = vrot.lane.b32.xlu0 %v4176, 24
    %v4408 = vpop.permute.xlu0 %4407
    %4409 = vrot.lane.b32.xlu0 %v4177, 24
    %v4410 = vpop.permute.xlu0 %4409
    %4411 = vrot.lane.b32.xlu0 %v4178, 24
    %v4412 = vpop.permute.xlu0 %4411
    %4413 = vrot.lane.b32.xlu0 %v4179, 24
    %v4414 = vpop.permute.xlu0 %4413
    %4415 = vrot.lane.b32.xlu0 %v4180, 24
    %v4416 = vpop.permute.xlu0 %4415
    %4417 = vrot.lane.b32.xlu0 %v4181, 24
    %v4418 = vpop.permute.xlu0 %4417
    %4419 = vrot.lane.b32.xlu0 %v4182, 24
    %v4420 = vpop.permute.xlu0 %4419
    %4421 = vrot.lane.b32.xlu0 %v4183, 24
    %v4422 = vpop.permute.xlu0 %4421
    %4423 = vrot.lane.b32.xlu0 %v4184, 24
    %v4424 = vpop.permute.xlu0 %4423
    %4425 = vrot.lane.b32.xlu0 %v4185, 24
    %v4426 = vpop.permute.xlu0 %4425
    %4427 = vrot.lane.b32.xlu0 %v4186, 24
    %v4428 = vpop.permute.xlu0 %4427
    %4429 = vrot.lane.b32.xlu0 %v4187, 24
    %v4430 = vpop.permute.xlu0 %4429
    %4431 = vrot.lane.b32.xlu0 %v4188, 24
    %v4432 = vpop.permute.xlu0 %4431
    %4433 = vrot.lane.b32.xlu0 %v4189, 24
    %v4434 = vpop.permute.xlu0 %4433
    %4435 = vrot.lane.b32.xlu0 %v4190, 24
    %v4436 = vpop.permute.xlu0 %4435
    %4437 = vrot.lane.b32.xlu0 %v4191, 24
    %v4438 = vpop.permute.xlu0 %4437
    %4439 = vrot.lane.b32.xlu0 %v4192, 24
    %v4440 = vpop.permute.xlu0 %4439
    %4441 = vrot.lane.b32.xlu0 %v4193, 24
    %v4442 = vpop.permute.xlu0 %4441
    %4443 = vrot.lane.b32.xlu0 %v4194, 24
    %v4444 = vpop.permute.xlu0 %4443
    %4445 = vrot.lane.b32.xlu0 %v4195, 24
    %v4446 = vpop.permute.xlu0 %4445
    %4447 = vrot.lane.b32.xlu0 %v4196, 24
    %v4448 = vpop.permute.xlu0 %4447
    %4477 = vrot.lane.b32.xlu0 %v4169, 32
    %v4478 = vpop.permute.xlu0 %4477
    %4479 = vrot.lane.b32.xlu0 %v4170, 32
    %v4480 = vpop.permute.xlu0 %4479
    %4481 = vrot.lane.b32.xlu0 %v4171, 32
    %v4482 = vpop.permute.xlu0 %4481
    %4483 = vrot.lane.b32.xlu0 %v4172, 32
    %v4484 = vpop.permute.xlu0 %4483
    %4485 = vrot.lane.b32.xlu0 %v4173, 32
    %v4486 = vpop.permute.xlu0 %4485
    %4487 = vrot.lane.b32.xlu0 %v4174, 32
    %v4488 = vpop.permute.xlu0 %4487
    %4489 = vrot.lane.b32.xlu0 %v4175, 32
    %v4490 = vpop.permute.xlu0 %4489
    %4491 = vrot.lane.b32.xlu0 %v4176, 32
    %v4492 = vpop.permute.xlu0 %4491
    %4493 = vrot.lane.b32.xlu0 %v4177, 32
    %v4494 = vpop.permute.xlu0 %4493
    %4495 = vrot.lane.b32.xlu0 %v4178, 32
    %v4496 = vpop.permute.xlu0 %4495
    %4497 = vrot.lane.b32.xlu0 %v4179, 32
    %v4498 = vpop.permute.xlu0 %4497
    %4499 = vrot.lane.b32.xlu0 %v4180, 32
    %v4500 = vpop.permute.xlu0 %4499
    %4501 = vrot.lane.b32.xlu0 %v4181, 32
    %v4502 = vpop.permute.xlu0 %4501
    %4503 = vrot.lane.b32.xlu0 %v4182, 32
    %v4504 = vpop.permute.xlu0 %4503
    %4505 = vrot.lane.b32.xlu0 %v4183, 32
    %v4506 = vpop.permute.xlu0 %4505
    %4507 = vrot.lane.b32.xlu0 %v4184, 32
    %v4508 = vpop.permute.xlu0 %4507
    %4509 = vrot.lane.b32.xlu0 %v4185, 32
    %v4510 = vpop.permute.xlu0 %4509
    %4511 = vrot.lane.b32.xlu0 %v4186, 32
    %v4512 = vpop.permute.xlu0 %4511
    %4513 = vrot.lane.b32.xlu0 %v4187, 32
    %v4514 = vpop.permute.xlu0 %4513
    %4515 = vrot.lane.b32.xlu0 %v4188, 32
    %v4516 = vpop.permute.xlu0 %4515
    %4517 = vrot.lane.b32.xlu0 %v4189, 32
    %v4518 = vpop.permute.xlu0 %4517
    %4519 = vrot.lane.b32.xlu0 %v4190, 32
    %v4520 = vpop.permute.xlu0 %4519
    %4521 = vrot.lane.b32.xlu0 %v4191, 32
    %v4522 = vpop.permute.xlu0 %4521
    %4523 = vrot.lane.b32.xlu0 %v4192, 32
    %v4524 = vpop.permute.xlu0 %4523
    %4525 = vrot.lane.b32.xlu0 %v4193, 32
    %v4526 = vpop.permute.xlu0 %4525
    %4527 = vrot.lane.b32.xlu0 %v4194, 32
    %v4528 = vpop.permute.xlu0 %4527
    %4529 = vrot.lane.b32.xlu0 %v4195, 32
    %v4530 = vpop.permute.xlu0 %4529
    %4531 = vrot.lane.b32.xlu0 %v4196, 32
    %v4532 = vpop.permute.xlu0 %4531
    %4561 = vrot.lane.b32.xlu0 %v4169, 40
    %v4562 = vpop.permute.xlu0 %4561
    %4563 = vrot.lane.b32.xlu0 %v4170, 40
    %v4564 = vpop.permute.xlu0 %4563
    %4565 = vrot.lane.b32.xlu0 %v4171, 40
    %v4566 = vpop.permute.xlu0 %4565
    %4567 = vrot.lane.b32.xlu0 %v4172, 40
    %v4568 = vpop.permute.xlu0 %4567
    %4569 = vrot.lane.b32.xlu0 %v4173, 40
    %v4570 = vpop.permute.xlu0 %4569
    %4571 = vrot.lane.b32.xlu0 %v4174, 40
    %v4572 = vpop.permute.xlu0 %4571
    %4573 = vrot.lane.b32.xlu0 %v4175, 40
    %v4574 = vpop.permute.xlu0 %4573
    %4575 = vrot.lane.b32.xlu0 %v4176, 40
    %v4576 = vpop.permute.xlu0 %4575
    %4577 = vrot.lane.b32.xlu0 %v4177, 40
    %v4578 = vpop.permute.xlu0 %4577
    %4579 = vrot.lane.b32.xlu0 %v4178, 40
    %v4580 = vpop.permute.xlu0 %4579
    %4581 = vrot.lane.b32.xlu0 %v4179, 40
    %v4582 = vpop.permute.xlu0 %4581
    %4583 = vrot.lane.b32.xlu0 %v4180, 40
    %v4584 = vpop.permute.xlu0 %4583
    %4585 = vrot.lane.b32.xlu0 %v4181, 40
    %v4586 = vpop.permute.xlu0 %4585
    %4587 = vrot.lane.b32.xlu0 %v4182, 40
    %v4588 = vpop.permute.xlu0 %4587
    %4589 = vrot.lane.b32.xlu0 %v4183, 40
    %v4590 = vpop.permute.xlu0 %4589
    %4591 = vrot.lane.b32.xlu0 %v4184, 40
    %v4592 = vpop.permute.xlu0 %4591
    %4593 = vrot.lane.b32.xlu0 %v4185, 40
    %v4594 = vpop.permute.xlu0 %4593
    %4595 = vrot.lane.b32.xlu0 %v4186, 40
    %v4596 = vpop.permute.xlu0 %4595
    %4597 = vrot.lane.b32.xlu0 %v4187, 40
    %v4598 = vpop.permute.xlu0 %4597
    %4599 = vrot.lane.b32.xlu0 %v4188, 40
    %v4600 = vpop.permute.xlu0 %4599
    %4601 = vrot.lane.b32.xlu0 %v4189, 40
    %v4602 = vpop.permute.xlu0 %4601
    %4603 = vrot.lane.b32.xlu0 %v4190, 40
    %v4604 = vpop.permute.xlu0 %4603
    %4605 = vrot.lane.b32.xlu0 %v4191, 40
    %v4606 = vpop.permute.xlu0 %4605
    %4607 = vrot.lane.b32.xlu0 %v4192, 40
    %v4608 = vpop.permute.xlu0 %4607
    %4609 = vrot.lane.b32.xlu0 %v4193, 40
    %v4610 = vpop.permute.xlu0 %4609
    %4611 = vrot.lane.b32.xlu0 %v4194, 40
    %v4612 = vpop.permute.xlu0 %4611
    %4613 = vrot.lane.b32.xlu0 %v4195, 40
    %v4614 = vpop.permute.xlu0 %4613
    %4615 = vrot.lane.b32.xlu0 %v4196, 40
    %v4616 = vpop.permute.xlu0 %4615
    %4645 = vrot.lane.b32.xlu0 %v4169, 48
    %v4646 = vpop.permute.xlu0 %4645
    %4647 = vrot.lane.b32.xlu0 %v4170, 48
    %v4648 = vpop.permute.xlu0 %4647
    %4649 = vrot.lane.b32.xlu0 %v4171, 48
    %v4650 = vpop.permute.xlu0 %4649
    %4651 = vrot.lane.b32.xlu0 %v4172, 48
    %v4652 = vpop.permute.xlu0 %4651
    %4653 = vrot.lane.b32.xlu0 %v4173, 48
    %v4654 = vpop.permute.xlu0 %4653
    %4655 = vrot.lane.b32.xlu0 %v4174, 48
    %v4656 = vpop.permute.xlu0 %4655
    %4657 = vrot.lane.b32.xlu0 %v4175, 48
    %v4658 = vpop.permute.xlu0 %4657
    %4659 = vrot.lane.b32.xlu0 %v4176, 48
    %v4660 = vpop.permute.xlu0 %4659
    %4661 = vrot.lane.b32.xlu0 %v4177, 48
    %v4662 = vpop.permute.xlu0 %4661
    %4663 = vrot.lane.b32.xlu0 %v4178, 48
    %v4664 = vpop.permute.xlu0 %4663
    %4665 = vrot.lane.b32.xlu0 %v4179, 48
    %v4666 = vpop.permute.xlu0 %4665
    %4667 = vrot.lane.b32.xlu0 %v4180, 48
    %v4668 = vpop.permute.xlu0 %4667
    %4669 = vrot.lane.b32.xlu0 %v4181, 48
    %v4670 = vpop.permute.xlu0 %4669
    %4671 = vrot.lane.b32.xlu0 %v4182, 48
    %v4672 = vpop.permute.xlu0 %4671
    %4673 = vrot.lane.b32.xlu0 %v4183, 48
    %v4674 = vpop.permute.xlu0 %4673
    %4675 = vrot.lane.b32.xlu0 %v4184, 48
    %v4676 = vpop.permute.xlu0 %4675
    %4677 = vrot.lane.b32.xlu0 %v4185, 48
    %v4678 = vpop.permute.xlu0 %4677
    %4679 = vrot.lane.b32.xlu0 %v4186, 48
    %v4680 = vpop.permute.xlu0 %4679
    %4681 = vrot.lane.b32.xlu0 %v4187, 48
    %v4682 = vpop.permute.xlu0 %4681
    %4683 = vrot.lane.b32.xlu0 %v4188, 48
    %v4684 = vpop.permute.xlu0 %4683
    %4685 = vrot.lane.b32.xlu0 %v4189, 48
    %v4686 = vpop.permute.xlu0 %4685
    %4687 = vrot.lane.b32.xlu0 %v4190, 48
    %v4688 = vpop.permute.xlu0 %4687
    %4689 = vrot.lane.b32.xlu0 %v4191, 48
    %v4690 = vpop.permute.xlu0 %4689
    %4691 = vrot.lane.b32.xlu0 %v4192, 48
    %v4692 = vpop.permute.xlu0 %4691
    %4693 = vrot.lane.b32.xlu0 %v4193, 48
    %v4694 = vpop.permute.xlu0 %4693
    %4695 = vrot.lane.b32.xlu0 %v4194, 48
    %v4696 = vpop.permute.xlu0 %4695
    %4697 = vrot.lane.b32.xlu0 %v4195, 48
    %v4698 = vpop.permute.xlu0 %4697
    %4699 = vrot.lane.b32.xlu0 %v4196, 48
    %v4700 = vpop.permute.xlu0 %4699
    %4729 = vrot.lane.b32.xlu0 %v4169, 56
    %v4730 = vpop.permute.xlu0 %4729
    %4731 = vrot.lane.b32.xlu0 %v4170, 56
    %v4732 = vpop.permute.xlu0 %4731
    %4733 = vrot.lane.b32.xlu0 %v4171, 56
    %v4734 = vpop.permute.xlu0 %4733
    %4735 = vrot.lane.b32.xlu0 %v4172, 56
    %v4736 = vpop.permute.xlu0 %4735
    %4737 = vrot.lane.b32.xlu0 %v4173, 56
    %v4738 = vpop.permute.xlu0 %4737
    %4739 = vrot.lane.b32.xlu0 %v4174, 56
    %v4740 = vpop.permute.xlu0 %4739
    %4741 = vrot.lane.b32.xlu0 %v4175, 56
    %v4742 = vpop.permute.xlu0 %4741
    %4743 = vrot.lane.b32.xlu0 %v4176, 56
    %v4744 = vpop.permute.xlu0 %4743
    %4745 = vrot.lane.b32.xlu0 %v4177, 56
    %v4746 = vpop.permute.xlu0 %4745
    %4747 = vrot.lane.b32.xlu0 %v4178, 56
    %v4748 = vpop.permute.xlu0 %4747
    %4749 = vrot.lane.b32.xlu0 %v4179, 56
    %v4750 = vpop.permute.xlu0 %4749
    %4751 = vrot.lane.b32.xlu0 %v4180, 56
    %v4752 = vpop.permute.xlu0 %4751
    %4753 = vrot.lane.b32.xlu0 %v4181, 56
    %v4754 = vpop.permute.xlu0 %4753
    %4755 = vrot.lane.b32.xlu0 %v4182, 56
    %v4756 = vpop.permute.xlu0 %4755
    %4757 = vrot.lane.b32.xlu0 %v4183, 56
    %v4758 = vpop.permute.xlu0 %4757
    %4759 = vrot.lane.b32.xlu0 %v4184, 56
    %v4760 = vpop.permute.xlu0 %4759
    %4761 = vrot.lane.b32.xlu0 %v4185, 56
    %v4762 = vpop.permute.xlu0 %4761
    %4763 = vrot.lane.b32.xlu0 %v4186, 56
    %v4764 = vpop.permute.xlu0 %4763
    %4765 = vrot.lane.b32.xlu0 %v4187, 56
    %v4766 = vpop.permute.xlu0 %4765
    %4767 = vrot.lane.b32.xlu0 %v4188, 56
    %v4768 = vpop.permute.xlu0 %4767
    %4769 = vrot.lane.b32.xlu0 %v4189, 56
    %v4770 = vpop.permute.xlu0 %4769
    %4771 = vrot.lane.b32.xlu0 %v4190, 56
    %v4772 = vpop.permute.xlu0 %4771
    %4773 = vrot.lane.b32.xlu0 %v4191, 56
    %v4774 = vpop.permute.xlu0 %4773
    %4775 = vrot.lane.b32.xlu0 %v4192, 56
    %v4776 = vpop.permute.xlu0 %4775
    %4777 = vrot.lane.b32.xlu0 %v4193, 56
    %v4778 = vpop.permute.xlu0 %4777
    %4779 = vrot.lane.b32.xlu0 %v4194, 56
    %v4780 = vpop.permute.xlu0 %4779
    %4781 = vrot.lane.b32.xlu0 %v4195, 56
    %v4782 = vpop.permute.xlu0 %4781
    %4783 = vrot.lane.b32.xlu0 %v4196, 56
    %v4784 = vpop.permute.xlu0 %4783
    %vm4813 = vcmask 64512
    %v4814 = vsel %vm4813, %v4169, %v4226
    %v4815 = vsel %vm4813, %v4170, %v4228
    %v4816 = vsel %vm4813, %v4171, %v4230
    %v4817 = vsel %vm4813, %v4172, %v4232
    %v4818 = vsel %vm4813, %v4173, %v4234
    %v4819 = vsel %vm4813, %v4174, %v4236
    %v4820 = vsel %vm4813, %v4175, %v4238
    %v4821 = vsel %vm4813, %v4176, %v4240
    %v4822 = vsel %vm4813, %v4177, %v4242
    %v4823 = vsel %vm4813, %v4178, %v4244
    %v4824 = vsel %vm4813, %v4179, %v4246
    %v4825 = vsel %vm4813, %v4180, %v4248
    %v4826 = vsel %vm4813, %v4181, %v4250
    %v4827 = vsel %vm4813, %v4182, %v4252
    %v4828 = vsel %vm4813, %v4183, %v4254
    %v4829 = vsel %vm4813, %v4184, %v4256
    %v4830 = vsel %vm4813, %v4185, %v4258
    %v4831 = vsel %vm4813, %v4186, %v4260
    %v4832 = vsel %vm4813, %v4187, %v4262
    %v4833 = vsel %vm4813, %v4188, %v4264
    %v4834 = vsel %vm4813, %v4189, %v4266
    %v4835 = vsel %vm4813, %v4190, %v4268
    %v4836 = vsel %vm4813, %v4191, %v4270
    %v4837 = vsel %vm4813, %v4192, %v4272
    %v4838 = vsel %vm4813, %v4193, %v4274
    %v4839 = vsel %vm4813, %v4194, %v4276
    %v4840 = vsel %vm4813, %v4195, %v4278
    %v4841 = vsel %vm4813, %v4196, %v4280
    %v4842 = vsel %vm182, %v4814, %v4310
    %v4843 = vsel %vm182, %v4815, %v4312
    %v4844 = vsel %vm182, %v4816, %v4314
    %v4845 = vsel %vm182, %v4817, %v4316
    %v4846 = vsel %vm182, %v4818, %v4318
    %v4847 = vsel %vm182, %v4819, %v4320
    %v4848 = vsel %vm182, %v4820, %v4322
    %v4849 = vsel %vm182, %v4821, %v4324
    %v4850 = vsel %vm182, %v4822, %v4326
    %v4851 = vsel %vm182, %v4823, %v4328
    %v4852 = vsel %vm182, %v4824, %v4330
    %v4853 = vsel %vm182, %v4825, %v4332
    %v4854 = vsel %vm182, %v4826, %v4334
    %v4855 = vsel %vm182, %v4827, %v4336
    %v4856 = vsel %vm182, %v4828, %v4338
    %v4857 = vsel %vm182, %v4829, %v4340
    %v4858 = vsel %vm182, %v4830, %v4342
    %v4859 = vsel %vm182, %v4831, %v4344
    %v4860 = vsel %vm182, %v4832, %v4346
    %v4861 = vsel %vm182, %v4833, %v4348
    %v4862 = vsel %vm182, %v4834, %v4350
    %v4863 = vsel %vm182, %v4835, %v4352
    %v4864 = vsel %vm182, %v4836, %v4354
    %v4865 = vsel %vm182, %v4837, %v4356
    %v4866 = vsel %vm182, %v4838, %v4358
    %v4867 = vsel %vm182, %v4839, %v4360
    %v4868 = vsel %vm182, %v4840, %v4362
    %v4869 = vsel %vm182, %v4841, %v4364
    %vm4870 = vcmask 195584
    %v4871 = vsel %vm4870, %v4842, %v4394
    %v4872 = vsel %vm4870, %v4843, %v4396
    %v4873 = vsel %vm4870, %v4844, %v4398
    %v4874 = vsel %vm4870, %v4845, %v4400
    %v4875 = vsel %vm4870, %v4846, %v4402
    %v4876 = vsel %vm4870, %v4847, %v4404
    %v4877 = vsel %vm4870, %v4848, %v4406
    %v4878 = vsel %vm4870, %v4849, %v4408
    %v4879 = vsel %vm4870, %v4850, %v4410
    %v4880 = vsel %vm4870, %v4851, %v4412
    %v4881 = vsel %vm4870, %v4852, %v4414
    %v4882 = vsel %vm4870, %v4853, %v4416
    %v4883 = vsel %vm4870, %v4854, %v4418
    %v4884 = vsel %vm4870, %v4855, %v4420
    %v4885 = vsel %vm4870, %v4856, %v4422
    %v4886 = vsel %vm4870, %v4857, %v4424
    %v4887 = vsel %vm4870, %v4858, %v4426
    %v4888 = vsel %vm4870, %v4859, %v4428
    %v4889 = vsel %vm4870, %v4860, %v4430
    %v4890 = vsel %vm4870, %v4861, %v4432
    %v4891 = vsel %vm4870, %v4862, %v4434
    %v4892 = vsel %vm4870, %v4863, %v4436
    %v4893 = vsel %vm4870, %v4864, %v4438
    %v4894 = vsel %vm4870, %v4865, %v4440
    %v4895 = vsel %vm4870, %v4866, %v4442
    %v4896 = vsel %vm4870, %v4867, %v4444
    %v4897 = vsel %vm4870, %v4868, %v4446
    %v4898 = vsel %vm4870, %v4869, %v4448
    %vm4899 = vcmask 261120
    %v4900 = vsel %vm4899, %v4871, %v4478
    %v4901 = vsel %vm4899, %v4872, %v4480
    %v4902 = vsel %vm4899, %v4873, %v4482
    %v4903 = vsel %vm4899, %v4874, %v4484
    %v4904 = vsel %vm4899, %v4875, %v4486
    %v4905 = vsel %vm4899, %v4876, %v4488
    %v4906 = vsel %vm4899, %v4877, %v4490
    %v4907 = vsel %vm4899, %v4878, %v4492
    %v4908 = vsel %vm4899, %v4879, %v4494
    %v4909 = vsel %vm4899, %v4880, %v4496
    %v4910 = vsel %vm4899, %v4881, %v4498
    %v4911 = vsel %vm4899, %v4882, %v4500
    %v4912 = vsel %vm4899, %v4883, %v4502
    %v4913 = vsel %vm4899, %v4884, %v4504
    %v4914 = vsel %vm4899, %v4885, %v4506
    %v4915 = vsel %vm4899, %v4886, %v4508
    %v4916 = vsel %vm4899, %v4887, %v4510
    %v4917 = vsel %vm4899, %v4888, %v4512
    %v4918 = vsel %vm4899, %v4889, %v4514
    %v4919 = vsel %vm4899, %v4890, %v4516
    %v4920 = vsel %vm4899, %v4891, %v4518
    %v4921 = vsel %vm4899, %v4892, %v4520
    %v4922 = vsel %vm4899, %v4893, %v4522
    %v4923 = vsel %vm4899, %v4894, %v4524
    %v4924 = vsel %vm4899, %v4895, %v4526
    %v4925 = vsel %vm4899, %v4896, %v4528
    %v4926 = vsel %vm4899, %v4897, %v4530
    %v4927 = vsel %vm4899, %v4898, %v4532
    %vm4928 = vcmask 326656
    %v4929 = vsel %vm4928, %v4900, %v4562
    %v4930 = vsel %vm4928, %v4901, %v4564
    %v4931 = vsel %vm4928, %v4902, %v4566
    %v4932 = vsel %vm4928, %v4903, %v4568
    %v4933 = vsel %vm4928, %v4904, %v4570
    %v4934 = vsel %vm4928, %v4905, %v4572
    %v4935 = vsel %vm4928, %v4906, %v4574
    %v4936 = vsel %vm4928, %v4907, %v4576
    %v4937 = vsel %vm4928, %v4908, %v4578
    %v4938 = vsel %vm4928, %v4909, %v4580
    %v4939 = vsel %vm4928, %v4910, %v4582
    %v4940 = vsel %vm4928, %v4911, %v4584
    %v4941 = vsel %vm4928, %v4912, %v4586
    %v4942 = vsel %vm4928, %v4913, %v4588
    %v4943 = vsel %vm4928, %v4914, %v4590
    %v4944 = vsel %vm4928, %v4915, %v4592
    %v4945 = vsel %vm4928, %v4916, %v4594
    %v4946 = vsel %vm4928, %v4917, %v4596
    %v4947 = vsel %vm4928, %v4918, %v4598
    %v4948 = vsel %vm4928, %v4919, %v4600
    %v4949 = vsel %vm4928, %v4920, %v4602
    %v4950 = vsel %vm4928, %v4921, %v4604
    %v4951 = vsel %vm4928, %v4922, %v4606
    %v4952 = vsel %vm4928, %v4923, %v4608
    %v4953 = vsel %vm4928, %v4924, %v4610
    %v4954 = vsel %vm4928, %v4925, %v4612
    %v4955 = vsel %vm4928, %v4926, %v4614
    %v4956 = vsel %vm4928, %v4927, %v4616
    %vm4957 = vcmask 392192
    %v4958 = vsel %vm4957, %v4929, %v4646
    %v4959 = vsel %vm4957, %v4930, %v4648
    %v4960 = vsel %vm4957, %v4931, %v4650
    %v4961 = vsel %vm4957, %v4932, %v4652
    %v4962 = vsel %vm4957, %v4933, %v4654
    %v4963 = vsel %vm4957, %v4934, %v4656
    %v4964 = vsel %vm4957, %v4935, %v4658
    %v4965 = vsel %vm4957, %v4936, %v4660
    %v4966 = vsel %vm4957, %v4937, %v4662
    %v4967 = vsel %vm4957, %v4938, %v4664
    %v4968 = vsel %vm4957, %v4939, %v4666
    %v4969 = vsel %vm4957, %v4940, %v4668
    %v4970 = vsel %vm4957, %v4941, %v4670
    %v4971 = vsel %vm4957, %v4942, %v4672
    %v4972 = vsel %vm4957, %v4943, %v4674
    %v4973 = vsel %vm4957, %v4944, %v4676
    %v4974 = vsel %vm4957, %v4945, %v4678
    %v4975 = vsel %vm4957, %v4946, %v4680
    %v4976 = vsel %vm4957, %v4947, %v4682
    %v4977 = vsel %vm4957, %v4948, %v4684
    %v4978 = vsel %vm4957, %v4949, %v4686
    %v4979 = vsel %vm4957, %v4950, %v4688
    %v4980 = vsel %vm4957, %v4951, %v4690
    %v4981 = vsel %vm4957, %v4952, %v4692
    %v4982 = vsel %vm4957, %v4953, %v4694
    %v4983 = vsel %vm4957, %v4954, %v4696
    %v4984 = vsel %vm4957, %v4955, %v4698
    %v4985 = vsel %vm4957, %v4956, %v4700
    %vm4986 = vcmask 457728
    %v4987 = vsel %vm4986, %v4958, %v4730
    %v4988 = vsel %vm4986, %v4959, %v4732
    %v4989 = vsel %vm4986, %v4960, %v4734
    %v4990 = vsel %vm4986, %v4961, %v4736
    %v4991 = vsel %vm4986, %v4962, %v4738
    %v4992 = vsel %vm4986, %v4963, %v4740
    %v4993 = vsel %vm4986, %v4964, %v4742
    %v4994 = vsel %vm4986, %v4965, %v4744
    %v4995 = vsel %vm4986, %v4966, %v4746
    %v4996 = vsel %vm4986, %v4967, %v4748
    %v4997 = vsel %vm4986, %v4968, %v4750
    %v4998 = vsel %vm4986, %v4969, %v4752
    %v4999 = vsel %vm4986, %v4970, %v4754
    %v5000 = vsel %vm4986, %v4971, %v4756
    %v5001 = vsel %vm4986, %v4972, %v4758
    %v5002 = vsel %vm4986, %v4973, %v4760
    %v5003 = vsel %vm4986, %v4974, %v4762
    %v5004 = vsel %vm4986, %v4975, %v4764
    %v5005 = vsel %vm4986, %v4976, %v4766
    %v5006 = vsel %vm4986, %v4977, %v4768
    %v5007 = vsel %vm4986, %v4978, %v4770
    %v5008 = vsel %vm4986, %v4979, %v4772
    %v5009 = vsel %vm4986, %v4980, %v4774
    %v5010 = vsel %vm4986, %v4981, %v4776
    %v5011 = vsel %vm4986, %v4982, %v4778
    %v5012 = vsel %vm4986, %v4983, %v4780
    %v5013 = vsel %vm4986, %v4984, %v4782
    %v5014 = vsel %vm4986, %v4985, %v4784
    %v5015 = vld [vmem:[%s5] sm:$0xff]
    %v5016 = vld [vmem:[%s5 + $0x8] sm:$0xff]
    %v5017 = vld [vmem:[%s5 + $0x10] sm:$0xff]
    %v5018 = vld [vmem:[%s5 + $0x18] sm:$0xff]
    %v5019 = vld [vmem:[%s5 + $0x20] sm:$0xff]
    %v5020 = vld [vmem:[%s5 + $0x28] sm:$0xff]
    %v5021 = vld [vmem:[%s5 + $0x30] sm:$0xff]
    %v5022 = vld [vmem:[%s5 + $0x38] sm:$0xff]
    %v5023 = vld [vmem:[%s5 + $0x40] sm:$0xff]
    %v5024 = vld [vmem:[%s5 + $0x48] sm:$0xff]
    %v5025 = vld [vmem:[%s5 + $0x50] sm:$0xff]
    %v5026 = vld [vmem:[%s5 + $0x58] sm:$0xff]
    %v5027 = vld [vmem:[%s5 + $0x60] sm:$0xff]
    %v5028 = vld [vmem:[%s5 + $0x68] sm:$0x1]
    %v5029 = vmul.f32 %v4987, %v5015
    %v5030 = vmul.f32 %v4988, %v5016
    %v5031 = vmul.f32 %v4989, %v5017
    %v5032 = vmul.f32 %v4990, %v5018
    %v5033 = vmul.f32 %v4991, %v5019
    %v5034 = vmul.f32 %v4992, %v5020
    %v5035 = vmul.f32 %v4993, %v5021
    %v5036 = vmul.f32 %v4994, %v5022
    %v5037 = vmul.f32 %v4995, %v5023
    %v5038 = vmul.f32 %v4996, %v5024
    %v5039 = vmul.f32 %v4997, %v5025
    %v5040 = vmul.f32 %v4998, %v5026
    %v5041 = vmul.f32 %v4999, %v5027
    %v5042 = vmul.f32 %v5000, %v5028
    %v5043 = vmul.f32 %v5001, %v5015
    %v5044 = vmul.f32 %v5002, %v5016
    %v5045 = vmul.f32 %v5003, %v5017
    %v5046 = vmul.f32 %v5004, %v5018
    %v5047 = vmul.f32 %v5005, %v5019
    %v5048 = vmul.f32 %v5006, %v5020
    %v5049 = vmul.f32 %v5007, %v5021
    %v5050 = vmul.f32 %v5008, %v5022
    %v5051 = vmul.f32 %v5009, %v5023
    %v5052 = vmul.f32 %v5010, %v5024
    %v5053 = vmul.f32 %v5011, %v5025
    %v5054 = vmul.f32 %v5012, %v5026
    %v5055 = vmul.f32 %v5013, %v5027
    %v5056 = vmul.f32 %v5014, %v5028
    %v5057 = vsel %vm1595, %v5029, 0.0
    %v5058 = vsel %vm1595, %v5030, 0.0
    %v5059 = vadd.f32 %v5057, %v5058
    %v5060 = vsel %vm1595, %v5031, 0.0
    %v5061 = vadd.f32 %v5059, %v5060
    %v5062 = vsel %vm1595, %v5032, 0.0
    %v5063 = vadd.f32 %v5061, %v5062
    %v5064 = vsel %vm1595, %v5033, 0.0
    %v5065 = vadd.f32 %v5063, %v5064
    %v5066 = vsel %vm1595, %v5034, 0.0
    %v5067 = vadd.f32 %v5065, %v5066
    %v5068 = vsel %vm1595, %v5035, 0.0
    %v5069 = vadd.f32 %v5067, %v5068
    %v5070 = vsel %vm1595, %v5036, 0.0
    %v5071 = vadd.f32 %v5069, %v5070
    %v5072 = vsel %vm1595, %v5037, 0.0
    %v5073 = vadd.f32 %v5071, %v5072
    %v5074 = vsel %vm1595, %v5038, 0.0
    %v5075 = vadd.f32 %v5073, %v5074
    %v5076 = vsel %vm1595, %v5039, 0.0
    %v5077 = vadd.f32 %v5075, %v5076
    %v5078 = vsel %vm1595, %v5040, 0.0
    %v5079 = vadd.f32 %v5077, %v5078
    %v5080 = vsel %vm1595, %v5041, 0.0
    %v5081 = vadd.f32 %v5079, %v5080
    %vm5082 = vcmask 516096
    %v5083 = vsel %vm5082, %v5042, 0.0
    %v5084 = vadd.f32 %v5081, %v5083
    %v5085 = vrot.slane %v5084, 4
    %v5086 = vadd.f32 %v5084, %v5085
    %v5087 = vrot.slane %v5086, 2
    %v5088 = vadd.f32 %v5086, %v5087
    %v5089 = vrot.slane %v5088, 1
    %v5090 = vadd.f32 %v5088, %v5089
    %v5091 = vsel %vm1595, %v5043, 0.0
    %v5092 = vsel %vm1595, %v5044, 0.0
    %v5093 = vadd.f32 %v5091, %v5092
    %v5094 = vsel %vm1595, %v5045, 0.0
    %v5095 = vadd.f32 %v5093, %v5094
    %v5096 = vsel %vm1595, %v5046, 0.0
    %v5097 = vadd.f32 %v5095, %v5096
    %v5098 = vsel %vm1595, %v5047, 0.0
    %v5099 = vadd.f32 %v5097, %v5098
    %v5100 = vsel %vm1595, %v5048, 0.0
    %v5101 = vadd.f32 %v5099, %v5100
    %v5102 = vsel %vm1595, %v5049, 0.0
    %v5103 = vadd.f32 %v5101, %v5102
    %v5104 = vsel %vm1595, %v5050, 0.0
    %v5105 = vadd.f32 %v5103, %v5104
    %v5106 = vsel %vm1595, %v5051, 0.0
    %v5107 = vadd.f32 %v5105, %v5106
    %v5108 = vsel %vm1595, %v5052, 0.0
    %v5109 = vadd.f32 %v5107, %v5108
    %v5110 = vsel %vm1595, %v5053, 0.0
    %v5111 = vadd.f32 %v5109, %v5110
    %v5112 = vsel %vm1595, %v5054, 0.0
    %v5113 = vadd.f32 %v5111, %v5112
    %v5114 = vsel %vm1595, %v5055, 0.0
    %v5115 = vadd.f32 %v5113, %v5114
    %v5116 = vsel %vm5082, %v5056, 0.0
    %v5117 = vadd.f32 %v5115, %v5116
    %v5118 = vrot.slane %v5117, 4
    %v5119 = vadd.f32 %v5117, %v5118
    %v5120 = vrot.slane %v5119, 2
    %v5121 = vadd.f32 %v5119, %v5120
    %v5122 = vrot.slane %v5121, 1
    %v5123 = vadd.f32 %v5121, %v5122
    %v5124 = vld [vmem:[%s7] sm:$0xff]
    %v5125 = vld [vmem:[%s7 + $0x8] sm:$0xff]
    %v5126 = vld [vmem:[%s7 + $0x10] sm:$0xff]
    %v5127 = vld [vmem:[%s7 + $0x18] sm:$0xff]
    %v5128 = vld [vmem:[%s7 + $0x20] sm:$0xff]
    %v5129 = vld [vmem:[%s7 + $0x28] sm:$0xff]
    %v5130 = vld [vmem:[%s7 + $0x30] sm:$0xff]
    %v5131 = vld [vmem:[%s7 + $0x38] sm:$0xff]
    %v5132 = vld [vmem:[%s6] sm:$0x1]
    %v5134 = vlaneseq
    %v5135 = vshrl.u32 %v5134, 7
    %v5136 = vsub.s32 0, %v5135
    %v5137 = vrot.slane %v5132, %v5136
    %vm5141 = vcmask 1041409
    %v5142 = vsel %vm5141, %v5123, %v5090
    %v5143 = vsel %vm1595, %v5142, 0
    %5145 = vmatprep.subr.mxu0 0.0
    %5146 = vmatpush1.msra.mxu0 %v5124
    %5147 = vmatprep.subr.mxu0 0.0
    %5148 = vmatpush1.msra.mxu0 %v5125
    %5149 = vmatprep.subr.mxu0 0.0
    %5150 = vmatpush1.msra.mxu0 %v5126
    %5151 = vmatprep.subr.mxu0 0.0
    %5152 = vmatpush1.msra.mxu0 %v5127
    %5153 = vmatprep.subr.mxu0 0.0
    %5154 = vmatpush1.msra.mxu0 %v5128
    %5155 = vmatprep.subr.mxu0 0.0
    %5156 = vmatpush1.msra.mxu0 %v5129
    %5157 = vmatprep.subr.mxu0 0.0
    %5158 = vmatpush1.msra.mxu0 %v5130
    %5159 = vmatprep.subr.mxu0 0.0
    %5160 = vmatpush1.msra.mxu0 %v5131
    %5161 = vmatprep.subr.mxu0 0.0
    %5162 = vmatpush1.msra.mxu0 0.0
    %5163 = vmatprep.subr.mxu0 0.0
    %5164 = vmatpush1.msra.mxu0 0.0
    %5165 = vmatprep.subr.mxu0 0.0
    %5166 = vmatpush1.msra.mxu0 0.0
    %5167 = vmatprep.subr.mxu0 0.0
    %5168 = vmatpush1.msra.mxu0 0.0
    %5169 = vmatprep.subr.mxu0 0.0
    %5170 = vmatpush1.msra.mxu0 0.0
    %5171 = vmatprep.subr.mxu0 0.0
    %5172 = vmatpush1.msra.mxu0 0.0
    %5173 = vmatprep.subr.mxu0 0.0
    %5174 = vmatpush1.msra.mxu0 0.0
    %5175 = vmatprep.subr.mxu0 0.0
    %5176 = vmatpush1.msra.mxu0 0.0
    %5177 = vmatprep.subr.mxu0 0.0
    %5178 = vmatpush1.msra.mxu0 0.0
    %5179 = vmatprep.subr.mxu0 0.0
    %5180 = vmatpush1.msra.mxu0 0.0
    %5181 = vmatprep.subr.mxu0 0.0
    %5182 = vmatpush1.msra.mxu0 0.0
    %5183 = vmatprep.subr.mxu0 0.0
    %5184 = vmatpush1.msra.mxu0 0.0
    %5185 = vmatprep.subr.mxu0 0.0
    %5186 = vmatpush1.msra.mxu0 0.0
    %5187 = vmatprep.subr.mxu0 0.0
    %5188 = vmatpush1.msra.mxu0 0.0
    %5189 = vmatprep.subr.mxu0 0.0
    %5190 = vmatpush1.msra.mxu0 0.0
    %5191 = vmatprep.subr.mxu0 0.0
    %5192 = vmatpush1.msra.mxu0 0.0
    %5193 = vmatprep.subr.mxu0 0.0
    %5194 = vmatpush1.msra.mxu0 0.0
    %5195 = vmatprep.subr.mxu0 0.0
    %5196 = vmatpush1.msra.mxu0 0.0
    %5197 = vmatprep.subr.mxu0 0.0
    %5198 = vmatpush1.msra.mxu0 0.0
    %5199 = vmatprep.subr.mxu0 0.0
    %5200 = vmatpush1.msra.mxu0 0.0
    %5201 = vmatprep.subr.mxu0 0.0
    %5202 = vmatpush1.msra.mxu0 0.0
    %5203 = vmatprep.subr.mxu0 0.0
    %5204 = vmatpush1.msra.mxu0 0.0
    %5205 = vmatprep.subr.mxu0 0.0
    %5206 = vmatpush1.msra.mxu0 0.0
    %5207 = vmatprep.subr.mxu0 0.0
    %5208 = vmatpush1.msra.mxu0 0.0
    %5209 = vmatprep.mubr.f32.mxu0 0.0
    %5210 = vmatmul.mubr.f32.gmra.mrb[0].mxu0 %v5143
    %v5211 = vpop.f32.mrb[0].mxu0
    %v5212 = vadd.f32 %v5137, %v5211
    %v5213 = vpop.f32.mrb[0].mxu0
    %5214 = vdwg.mxu0
    %v5215 = vmax.f32 %v5212, 0.0
    %v5216 = vld [vmem:[%s8] sm:$0xff]
    %v5217 = vld [vmem:[%s9] sm:$0x1]
    %v5219 = vlaneseq
    %v5220 = vshrl.u32 %v5219, 7
    %v5221 = vsub.s32 0, %v5220
    %v5222 = vrot.slane %v5217, %v5221
    %v5225 = vsel %vm4813, %v5215, 0
    %5227 = vmatprep.subr.mxu0 0.0
    %5228 = vmatpush1.msra.mxu0 %v5216
    %5229 = vmatprep.subr.mxu0 0.0
    %5230 = vmatpush1.msra.mxu0 0.0
    %5231 = vmatprep.subr.mxu0 0.0
    %5232 = vmatpush1.msra.mxu0 0.0
    %5233 = vmatprep.subr.mxu0 0.0
    %5234 = vmatpush1.msra.mxu0 0.0
    %5235 = vmatprep.subr.mxu0 0.0
    %5236 = vmatpush1.msra.mxu0 0.0
    %5237 = vmatprep.subr.mxu0 0.0
    %5238 = vmatpush1.msra.mxu0 0.0
    %5239 = vmatprep.subr.mxu0 0.0
    %5240 = vmatpush1.msra.mxu0 0.0
    %5241 = vmatprep.subr.mxu0 0.0
    %5242 = vmatpush1.msra.mxu0 0.0
    %5243 = vmatprep.subr.mxu0 0.0
    %5244 = vmatpush1.msra.mxu0 0.0
    %5245 = vmatprep.subr.mxu0 0.0
    %5246 = vmatpush1.msra.mxu0 0.0
    %5247 = vmatprep.subr.mxu0 0.0
    %5248 = vmatpush1.msra.mxu0 0.0
    %5249 = vmatprep.subr.mxu0 0.0
    %5250 = vmatpush1.msra.mxu0 0.0
    %5251 = vmatprep.subr.mxu0 0.0
    %5252 = vmatpush1.msra.mxu0 0.0
    %5253 = vmatprep.subr.mxu0 0.0
    %5254 = vmatpush1.msra.mxu0 0.0
    %5255 = vmatprep.subr.mxu0 0.0
    %5256 = vmatpush1.msra.mxu0 0.0
    %5257 = vmatprep.subr.mxu0 0.0
    %5258 = vmatpush1.msra.mxu0 0.0
    %5259 = vmatprep.subr.mxu0 0.0
    %5260 = vmatpush1.msra.mxu0 0.0
    %5261 = vmatprep.subr.mxu0 0.0
    %5262 = vmatpush1.msra.mxu0 0.0
    %5263 = vmatprep.subr.mxu0 0.0
    %5264 = vmatpush1.msra.mxu0 0.0
    %5265 = vmatprep.subr.mxu0 0.0
    %5266 = vmatpush1.msra.mxu0 0.0
    %5267 = vmatprep.subr.mxu0 0.0
    %5268 = vmatpush1.msra.mxu0 0.0
    %5269 = vmatprep.subr.mxu0 0.0
    %5270 = vmatpush1.msra.mxu0 0.0
    %5271 = vmatprep.subr.mxu0 0.0
    %5272 = vmatpush1.msra.mxu0 0.0
    %5273 = vmatprep.subr.mxu0 0.0
    %5274 = vmatpush1.msra.mxu0 0.0
    %5275 = vmatprep.subr.mxu0 0.0
    %5276 = vmatpush1.msra.mxu0 0.0
    %5277 = vmatprep.subr.mxu0 0.0
    %5278 = vmatpush1.msra.mxu0 0.0
    %5279 = vmatprep.subr.mxu0 0.0
    %5280 = vmatpush1.msra.mxu0 0.0
    %5281 = vmatprep.subr.mxu0 0.0
    %5282 = vmatpush1.msra.mxu0 0.0
    %5283 = vmatprep.subr.mxu0 0.0
    %5284 = vmatpush1.msra.mxu0 0.0
    %5285 = vmatprep.subr.mxu0 0.0
    %5286 = vmatpush1.msra.mxu0 0.0
    %5287 = vmatprep.subr.mxu0 0.0
    %5288 = vmatpush1.msra.mxu0 0.0
    %5289 = vmatprep.subr.mxu0 0.0
    %5290 = vmatpush1.msra.mxu0 0.0
    %5291 = vmatprep.mubr.f32.mxu0 0.0
    %5292 = vmatmul.mubr.f32.gmra.mrb[0].mxu0 %v5225
    %v5293 = vpop.f32.mrb[0].mxu0
    %v5294 = vadd.f32 %v5222, %v5293
    %v5295 = vpop.f32.mrb[0].mxu0
    %5296 = vdwg.mxu0
    %vm5297 = vcmask 74752
    %5298 = vst.msk [vmem:[#allocation2] sm:$0x3] %vm5297, %v5294
    // Predicated region
    $region42: #{substitute_cnn_forward.1} parent=1 // pred_check
      _
    $region43: #{substitute_cnn_forward.1} parent=1 // pred_check_branch
      %5300 = sbr.rel (0) target = $region45
    $region44: #{substitute_cnn_forward.1} parent=1 // pred_region
      %s5302 = ssub.s32 32, 32
      %5303 = vsyncadd [#allocation3], %s5302
      %s5305 = sshll.u32 [#allocation2], 4
      %s5306 = int_to_ptr.vmem [resolvable:$true] %s5305
      %5308 = dma.vmem_to_hbm [thread:$0]  %s5306, 32, %s10, [#allocation3]
    $region45: #{substitute_cnn_forward.1} parent=1 // pred_fallthru
      _
    // Predicated region
    $region46: #{substitute_cnn_forward.1} parent=1 // pred_check
      _
    $region47: #{substitute_cnn_forward.1} parent=1 // pred_check_branch
      %5310 = sbr.rel (0) target = $region49
    $region48: #{substitute_cnn_forward.1} parent=1 // pred_region
      %5311 = dma.done [#allocation3], 32
    $region49: #{substitute_cnn_forward.1} parent=1 // pred_fallthru
      _
    %5312 = vsyncpa [#allocation3], 1

</llo_original>
